<compile_context>
chip_gen: v7x
topology: tpu7x:2x2x1
jax: 0.10.0
libtpu: 0.0.40
codegen_flags: <defaults>
</compile_context>

<pallas_src>
import jax
import jax.numpy as jnp
from jax import lax
from jax.experimental import pallas as pl
from jax.experimental.pallas import tpu as pltpu

# ---- model / action-dict config (small synthetic sizes) ----
INPUT_SIZE = 32
HIDDEN_SIZE = 32          # stacked-layer weight layout assumes input_size == hidden_size
NUM_LAYERS = 2
NUM_NTS = 10
NT_PAD = 16               # nt embedding table padded to 16 rows in the slab
MAX_CHILDREN = 4
PAD_A, SHIFT_A, REDUCE_A = 0, 1, 2
NT_BEGIN = 3              # action ids >= NT_BEGIN are NT(X) actions

assert 4 * INPUT_SIZE == 128 and 4 * HIDDEN_SIZE == 128

# ---- packed-weight slab layout (rows of a (SLAB_ROWS, 128) bf16 array) ----
def _align8(x):
    return (x + 7) & ~7

OFF_WHFB = 0                                        # [whf; whb]      (2D, 4D)
OFF_WIF = OFF_WHFB + 2 * INPUT_SIZE                 # wif             (D, 4D)
OFF_WIB = OFF_WIF + INPUT_SIZE                      # wib             (D, 4D)
OFF_BF = _align8(OFF_WIB + INPUT_SIZE)              # bf              (1, 4D)
OFF_BB = OFF_BF + 8                                 # bb              (1, 4D)
OFF_WO = OFF_BB + 8                                 # wo (cols 0:D)   (2D, D)
OFF_BO = OFF_WO + 2 * INPUT_SIZE                    # bo (cols 0:D)   (1, D)
OFF_NT = OFF_BO + 8                                 # nt_emb          (10, D)
OFF_WIH = OFF_NT + NT_PAD                           # stack wih flat  (L*D, 4H)
OFF_WHH = OFF_WIH + NUM_LAYERS * INPUT_SIZE         # stack whh flat  (L*H, 4H)
OFF_SB = OFF_WHH + NUM_LAYERS * HIDDEN_SIZE         # stack bias      (L, 4H)
SLAB_ROWS = _align8(OFF_SB + NUM_LAYERS)
for _o in (OFF_WHFB, OFF_WIF, OFF_WIB, OFF_BF, OFF_BB, OFF_WO, OFF_BO, OFF_NT,
           OFF_WIH, OFF_WHH, OFF_SB, SLAB_ROWS):
    assert _o % 8 == 0


# --------------------------------------------------------------------------
# Fused, sequence-level RNNGCell kernel
# --------------------------------------------------------------------------
def _rnng_fused_kernel(
    # scalar prefetch (SMEM)
    any_red_ref,
    # per-step VMEM inputs (block (1, ...), auto-pipelined)
    act_ref, ptr_ref, red_ref, ch_ref, len_ref,
    # sequence-constant VMEM inputs (DMA'd once, stay resident)
    wv_ref, h0_ref, c0_ref, w_ref,
    # outputs
    top_ref, hout_ref, cout_ref,
    # scratch
    comp_ref,
):
    step = pl.program_id(0)
    B = act_ref.shape[1]
    S = wv_ref.shape[1]
    D = wv_ref.shape[2]
    C = ch_ref.shape[2]
    T = C + 2
    L = hout_ref.shape[0]
    H = hout_ref.shape[2]

    # ---- step 0: seed the VMEM-resident state carried in the output blocks
    @pl.when(step == 0)
    def _init():
        hout_ref[...] = h0_ref[...]
        cout_ref[...] = c0_ref[...]
        comp_ref[...] = jnp.zeros_like(comp_ref)

    def lstm_gates(gates, c_prev, n):
        sig = jax.nn.sigmoid(gates)
        th = jnp.tanh(gates)
        i, f, o = sig[:, 0:n], sig[:, n:2 * n], sig[:, 3 * n:4 * n]
        g = th[:, 2 * n:3 * n]
        c_new = f * c_prev + i * g
        return o * jnp.tanh(c_new), c_new

    def nt_gather(ids):
        # exact one-hot (B, 16) @ nt_emb (16, 4D) row gather on the MXU
        oh = (lax.broadcasted_iota(jnp.int32, (B, NT_PAD), 1) == ids
              ).astype(jnp.bfloat16)
        tab = w_ref[OFF_NT:OFF_NT + NT_PAD, :]
        return jnp.dot(oh, tab, preferred_element_type=jnp.float32)[:, :D]

    # ---- SHIFT / NT half of the action dispatch (hoisted above the pl.when
    # so it can be scheduled under the composition's MXU/EUP latency) --------
    act = act_ref[0]                                      # (B, 1) int32
    ptr = jnp.clip(ptr_ref[0], 0, S - 1)                  # (B, 1)
    iota_b = lax.broadcasted_iota(jnp.int32, (B, 1), 0)
    flat = iota_b * S + ptr                               # flat gather index
    oh_s = (lax.broadcasted_iota(jnp.int32, (B, B * S), 1) == flat
            ).astype(jnp.float32)
    wv_flat = wv_ref[...].reshape(B * S, D)
    shifted = jnp.dot(oh_s, wv_flat, preferred_element_type=jnp.float32)
    nt_rows = nt_gather(jnp.clip(act - NT_BEGIN, 0, NUM_NTS - 1))
    base = jnp.where(act == SHIFT_A, shifted, 0.0)
    base = jnp.where(act >= NT_BEGIN, nt_rows, base)      # (B, D)

    # ---- LSTMComposition (skipped entirely on steps with no REDUCE) --------
    @pl.when(any_red_ref[step] == 1)
    def _composition():
        lengths = len_ref[0] + 2                          # (B, 1) int32
        red_nt = nt_gather(jnp.clip(red_ref[0], 0, NUM_NTS - 1))     # (B, D)
        ch = ch_ref[0]                                    # (B, C, D)

        # x_t slab ([NT, children..., 0] with slot lengths-1 overwritten by NT)
        zero_bd = jnp.zeros((B, D), jnp.float32)
        rows = []
        for t in range(T):
            xt = red_nt if t == 0 else (ch[:, t - 1, :] if t <= C else zero_bd)
            rows.append(jnp.where(lengths == (t + 1), red_nt, xt))
        x_all = jnp.concatenate(rows, axis=0).astype(jnp.bfloat16)    # (T*B, D)

        # input-side matmuls hoisted off the serial recurrence
        xw_f = jnp.dot(x_all, w_ref[OFF_WIF:OFF_WIF + D, :],
                       preferred_element_type=jnp.float32) \
            + w_ref[OFF_BF:OFF_BF + 1, :].astype(jnp.float32)
        xw_b = jnp.dot(x_all, w_ref[OFF_WIB:OFF_WIB + D, :],
                       preferred_element_type=jnp.float32) \
            + w_ref[OFF_BB:OFF_BB + 1, :].astype(jnp.float32)

        # fwd/bwd chains packed block-diagonally: rows 0..B-1 = forward,
        # rows B..2B-1 = backward; one (2B,2D)@(2D,4D) push per time step.
        whfb = w_ref[OFF_WHFB:OFF_WHFB + 2 * D, :]        # [whf; whb]
        row2 = lax.broadcasted_iota(jnp.int32, (2 * B, 1), 0)
        is_top = row2 < B
        lm1_2 = jnp.concatenate([lengths - 1, lengths - 1], axis=0)
        h = jnp.zeros((2 * B, D), jnp.float32)
        c = jnp.zeros((2 * B, D), jnp.float32)
        fwd = zero_bd
        bwd = zero_bd
        for t in range(T - 1):
            tb = T - 1 - t
            # packed-sequence start: reset the backward half only
            reset = jnp.logical_and(jnp.logical_not(is_top), lm1_2 <= tb)
            h = jnp.where(reset, 0.0, h)
            c = jnp.where(reset, 0.0, c)
            hd = jnp.concatenate([jnp.where(is_top, h, 0.0),
                                  jnp.where(is_top, 0.0, h)], axis=1)
            gx = jnp.concatenate([xw_f[t * B:(t + 1) * B],
                                  xw_b[tb * B:(tb + 1) * B]], axis=0)
            gates = gx + jnp.dot(hd.astype(jnp.bfloat16), whfb,
                                 preferred_element_type=jnp.float32)
            h, c = lstm_gates(gates, c, D)
            fwd = jnp.where(lengths == (t + 2), h[:B], fwd)   # h_fwd[lengths-2]
            if tb == 1:
                bwd = h[B:]                                   # h_bwd[1]

        cat = jnp.concatenate([fwd, bwd], axis=-1).astype(jnp.bfloat16)
        out = jnp.dot(cat, w_ref[OFF_WO:OFF_WO + 2 * D, :],
                      preferred_element_type=jnp.float32) \
            + w_ref[OFF_BO:OFF_BO + 1, :].astype(jnp.float32)
        comp_ref[...] = jnp.maximum(out, 0.0)[:, :D]          # Linear + ReLU

    # REDUCE rows take the composition output; other rows keep the base rows.
    new_input = jnp.where(act == REDUCE_A, comp_ref[...], base)

    # ---- MultiLayerLSTMCell step --------------------------------------------
    h_prev = hout_ref[...]                                    # carried state
    c_prev = cout_ref[...]

    # h_prev @ W_hh for all layers in one block-diagonal MXU push
    zer = jnp.zeros((B, H), jnp.float32)
    hdiag = jnp.concatenate(
        [jnp.concatenate([h_prev[l] if k == l else zer for k in range(L)],
                         axis=1) for l in range(L)], axis=0)  # (L*B, L*H)
    hh_all = jnp.dot(hdiag.astype(jnp.bfloat16),
                     w_ref[OFF_WHH:OFF_WHH + L * H, :],
                     preferred_element_type=jnp.float32)      # (L*B, 4H)
    sb = w_ref[OFF_SB:OFF_SB + L, :].astype(jnp.float32)      # (L, 4H)

    inp = new_input
    for l in range(L):
        gates = (jnp.dot(inp.astype(jnp.bfloat16),
                         w_ref[OFF_WIH + l * D:OFF_WIH + (l + 1) * D, :],
                         preferred_element_type=jnp.float32)
                 + hh_all[l * B:(l + 1) * B] + sb[l:l + 1])
        h_new, c_new = lstm_gates(gates, c_prev[l], H)
        hout_ref[l] = h_new
        cout_ref[l] = c_new
        inp = h_new                      # inter-layer dropout = identity (eval)
    top_ref[0] = inp                     # per-step top-of-stack hidden


# --------------------------------------------------------------------------
# pallas_call wrapper
# --------------------------------------------------------------------------
def _step_spec(shape):
    nd = len(shape)
    return pl.BlockSpec((1,) + tuple(shape[1:]),
                        lambda s, *_, _nd=nd: (s,) + (0,) * (_nd - 1))


def _const_spec(shape):
    nd = len(shape)
    return pl.BlockSpec(tuple(shape), lambda s, *_, _nd=nd: (0,) * _nd)


def _pack_weight_slab(params):
    """Pack every weight / bias / embedding into one (SLAB_ROWS, 128) bf16 slab."""
    D, H, L = INPUT_SIZE, HIDDEN_SIZE, NUM_LAYERS
    slab = jnp.zeros((SLAB_ROWS, 128), jnp.float32)

    def put(s, r, m):
        return s.at[r:r + m.shape[0], :m.shape[1]].set(m)

    slab = put(slab, OFF_WHFB,
               jnp.concatenate([params['comp_whf'], params['comp_whb']], axis=0))
    slab = put(slab, OFF_WIF, params['comp_wif'])
    slab = put(slab, OFF_WIB, params['comp_wib'])
    slab = put(slab, OFF_BF, params['comp_bf'])
    slab = put(slab, OFF_BB, params['comp_bb'])
    slab = put(slab, OFF_WO, params['comp_wo'])
    slab = put(slab, OFF_BO, params['comp_bo'])
    slab = put(slab, OFF_NT, params['nt_emb'])
    slab = put(slab, OFF_WIH, params['stack_wih'].reshape(L * D, 4 * H))
    slab = put(slab, OFF_WHH, params['stack_whh'].reshape(L * H, 4 * H))
    slab = put(slab, OFF_SB, params['stack_b'].reshape(L, 4 * H))
    return slab.astype(jnp.bfloat16)


def _rnng_fused_call(any_reduce, actions3, pointer3, red3, children, len3,
                     word_vecs, h0, c0, wslab):
    num_steps = actions3.shape[0]
    L, B, H = h0.shape
    D = word_vecs.shape[-1]
    grid_spec = pltpu.PrefetchScalarGridSpec(
        num_scalar_prefetch=1,
        grid=(num_steps,),
        in_specs=[_step_spec(actions3.shape), _step_spec(pointer3.shape),
                  _step_spec(red3.shape), _step_spec(children.shape),
                  _step_spec(len3.shape),
                  _const_spec(word_vecs.shape), _const_spec(h0.shape),
                  _const_spec(c0.shape), _const_spec(wslab.shape)],
        out_specs=(pl.BlockSpec((1, B, H), lambda s, *_: (s, 0, 0)),
                   _const_spec((L, B, H)), _const_spec((L, B, H))),
        scratch_shapes=[pltpu.VMEM((B, D), jnp.float32)])
    return pl.pallas_call(
        _rnng_fused_kernel,
        grid_spec=grid_spec,
        out_shape=(jax.ShapeDtypeStruct((num_steps, B, H), jnp.float32),
                   jax.ShapeDtypeStruct((L, B, H), jnp.float32),
                   jax.ShapeDtypeStruct((L, B, H), jnp.float32)),
        compiler_params=pltpu.CompilerParams(
            dimension_semantics=("arbitrary",)),   # steps are serially dependent
    )(any_reduce, actions3, pointer3, red3, children, len3,
      word_vecs, h0, c0, wslab)


@jax.jit
def rnng_cell_forward(params, word_vecs, actions, pointer, h_prev, c_prev,
                      children, ch_lengths, reduced_nt_ids):
    """RNNGCell.forward applied over a sequence of steps (eval mode,
    use_elman=False, LSTMComposition), fully fused into one pallas_call.

    Per-step inputs have a leading num_steps axis; h/c use the kernel-canonical
    lane-dense (L, B, H) layout.  Returns (per-step top hidden (T, B, H),
    final hidden (L, B, H), final cell (L, B, H)).
    """
    # TODO(synk): FixedStack bookkeeping (do_shift/do_nt/do_reduce pointer/tree
    # updates, collect_reduced_children) is FLOP-free index bookkeeping and is
    # not modeled; its per-step outputs (children, ch_lengths, reduced_nt_ids,
    # pointer) are taken as explicit inputs here.
    L, B, H = h_prev.shape
    pad = (-B) % 8                          # fill all 8 f32 sublanes per vreg
    if pad:
        word_vecs = jnp.pad(word_vecs, ((0, pad), (0, 0), (0, 0)))
        children = jnp.pad(children, ((0, 0), (0, pad), (0, 0), (0, 0)))
        h_prev = jnp.pad(h_prev, ((0, 0), (0, pad), (0, 0)))
        c_prev = jnp.pad(c_prev, ((0, 0), (0, pad), (0, 0)))
        actions = jnp.pad(actions, ((0, 0), (0, pad)))       # PAD_A == 0
        pointer = jnp.pad(pointer, ((0, 0), (0, pad)))
        ch_lengths = jnp.pad(ch_lengths, ((0, 0), (0, pad)))
        reduced_nt_ids = jnp.pad(reduced_nt_ids, ((0, 0), (0, pad)))

    any_reduce = jnp.any(actions == REDUCE_A, axis=1).astype(jnp.int32)
    wslab = _pack_weight_slab(params)
    a3 = actions.astype(jnp.int32)[:, :, None]
    p3 = pointer.astype(jnp.int32)[:, :, None]
    r3 = reduced_nt_ids.astype(jnp.int32)[:, :, None]
    l3 = ch_lengths.astype(jnp.int32)[:, :, None]

    tops, h_new, c_new = _rnng_fused_call(
        any_reduce, a3, p3, r3, children, l3, word_vecs, h_prev, c_prev, wslab)
    if pad:
        tops, h_new, c_new = tops[:, :B], h_new[:, :B], c_new[:, :B]
    return tops, h_new, c_new


# --------------------------------------------------------------------------
# Parameters (deterministic synthetic init; weights stored transposed (in, 4H)
# relative to torch so x @ W lowers straight onto the MXU).
# --------------------------------------------------------------------------
def init_params(key):
    D, H, L = INPUT_SIZE, HIDDEN_SIZE, NUM_LAYERS
    assert D == H, "stacked-layer weight layout assumes input_size == hidden_size"
    ks = jax.random.split(key, 12)

    def w(k, shape, scale=0.1):
        return (scale * jax.random.normal(k, shape)).astype(jnp.float32)

    return dict(
        nt_emb=w(ks[0], (NUM_NTS, D)),
        # MultiLayerLSTMCell (bias = b_ih + b_hh combined)
        stack_wih=w(ks[1], (L, D, 4 * H)),
        stack_whh=w(ks[2], (L, H, 4 * H)),
        stack_b=w(ks[3], (L, 1, 4 * H)),
        # LSTMComposition: bidirectional LSTM + output Linear
        comp_wif=w(ks[4], (D, 4 * D)),
        comp_whf=w(ks[5], (D, 4 * D)),
        comp_bf=w(ks[6], (1, 4 * D)),
        comp_wib=w(ks[7], (D, 4 * D)),
        comp_whb=w(ks[8], (D, 4 * D)),
        comp_bb=w(ks[9], (1, 4 * D)),
        comp_wo=w(ks[10], (2 * D, D)),
        comp_bo=w(ks[11], (1, D)),
    )


# --------------------------------------------------------------------------
# Pure-JAX reference of the same forward pass (correctness check only)
# --------------------------------------------------------------------------
def _lstm_cell_ref(x, h, c, wi, wh, b):
    hp = jax.lax.Precision.HIGHEST
    gates = jnp.dot(x, wi, precision=hp) + jnp.dot(h, wh, precision=hp) + b
    Dh = h.shape[-1]
    i = jax.nn.sigmoid(gates[:, 0 * Dh:1 * Dh])
    f = jax.nn.sigmoid(gates[:, 1 * Dh:2 * Dh])
    g = jnp.tanh(gates[:, 2 * Dh:3 * Dh])
    o = jax.nn.sigmoid(gates[:, 3 * Dh:4 * Dh])
    c2 = f * c + i * g
    return o * jnp.tanh(c2), c2


def _rnng_step_ref(params, word_vecs, actions, pointer,
                   h_prev, c_prev, children, ch_lengths, reduced_nt_ids):
    hp = jax.lax.Precision.HIGHEST
    B, S, D = word_vecs.shape
    L = h_prev.shape[0]
    T = children.shape[1] + 2

    # LSTMComposition (packed bidirectional LSTM emulated with length masks)
    red_nt = params['nt_emb'][jnp.clip(reduced_nt_ids, 0, NUM_NTS - 1)]
    lengths = ch_lengths + 2
    elems = jnp.concatenate(
        [red_nt[:, None, :], children, jnp.zeros((B, 1, D), jnp.float32)], axis=1)
    tids = jnp.arange(T)[None, :, None]
    elems = jnp.where(tids == (lengths[:, None, None] - 1), red_nt[:, None, :], elems)

    zero = jnp.zeros((B, D), jnp.float32)
    h = c = zero
    fwd = zero
    for t in range(T):
        h, c = _lstm_cell_ref(elems[:, t], h, c,
                              params['comp_wif'], params['comp_whf'], params['comp_bf'])
        fwd = jnp.where((lengths == t + 2)[:, None], h, fwd)
    h = c = zero
    bwd = zero
    for t in range(T - 1, 0, -1):
        reset = ((lengths - 1) <= t)[:, None]
        h = jnp.where(reset, 0.0, h)
        c = jnp.where(reset, 0.0, c)
        h, c = _lstm_cell_ref(elems[:, t], h, c,
                              params['comp_wib'], params['comp_whb'], params['comp_bb'])
        if t == 1:
            bwd = h
    cat = jnp.concatenate([fwd, bwd], axis=-1)
    new_child = jax.nn.relu(jnp.dot(cat, params['comp_wo'], precision=hp)
                            + params['comp_bo'])

    # per-row action dispatch
    shifted = word_vecs[jnp.arange(B), jnp.clip(pointer, 0, S - 1)]
    nt_embs = params['nt_emb'][jnp.clip(actions - NT_BEGIN, 0, NUM_NTS - 1)]
    new_input = jnp.zeros((B, D), jnp.float32)
    new_input = jnp.where((actions == SHIFT_A)[:, None], shifted, new_input)
    new_input = jnp.where((actions >= NT_BEGIN)[:, None], nt_embs, new_input)
    new_input = jnp.where((actions == REDUCE_A)[:, None], new_child, new_input)

    # MultiLayerLSTMCell step
    inp = new_input
    hs, cs = [], []
    for l in range(L):
        h_new, c_new = _lstm_cell_ref(inp, h_prev[l], c_prev[l],
                                      params['stack_wih'][l], params['stack_whh'][l],
                                      params['stack_b'][l])
        hs.append(h_new)
        cs.append(c_new)
        inp = h_new
    return inp, jnp.stack(hs), jnp.stack(cs)


def rnng_forward_ref(params, word_vecs, actions, pointer, h0, c0,
                     children, ch_lengths, reduced_nt_ids):
    h, c = h0, c0
    tops = []
    for s in range(actions.shape[0]):
        top, h, c = _rnng_step_ref(params, word_vecs, actions[s], pointer[s],
                                   h, c, children[s], ch_lengths[s],
                                   reduced_nt_ids[s])
        tops.append(top)
    return jnp.stack(tops), h, c


# --------------------------------------------------------------------------
if __name__ == "__main__":
    key = jax.random.PRNGKey(0)
    kp, k1, k2, k3, k4, k5, k6, k7 = jax.random.split(key, 8)
    B, S, NS = 4, 8, 6

    params = init_params(kp)
    word_vecs = jax.random.normal(k1, (B, S, INPUT_SIZE), jnp.float32)
    actions = jnp.array(
        [[SHIFT_A, NT_BEGIN + 2, SHIFT_A, NT_BEGIN + 1],
         [NT_BEGIN + 0, SHIFT_A, SHIFT_A, SHIFT_A],
         [SHIFT_A, SHIFT_A, REDUCE_A, SHIFT_A],
         [SHIFT_A, REDUCE_A, SHIFT_A, REDUCE_A],
         [REDUCE_A, SHIFT_A, NT_BEGIN + 3, SHIFT_A],
         [PAD_A, PAD_A, REDUCE_A, SHIFT_A]], jnp.int32)          # (NS, B)
    pointer = jax.random.randint(k2, (NS, B), 0, S, jnp.int32)
    h0 = 0.1 * jax.random.normal(k3, (NUM_LAYERS, B, HIDDEN_SIZE), jnp.float32)
    c0 = 0.1 * jax.random.normal(k4, (NUM_LAYERS, B, HIDDEN_SIZE), jnp.float32)
    children = jax.random.normal(k5, (NS, B, MAX_CHILDREN, INPUT_SIZE), jnp.float32)
    ch_lengths = jax.random.randint(k6, (NS, B), 1, MAX_CHILDREN + 1, jnp.int32)
    reduced_nt_ids = jax.random.randint(k7, (NS, B), 0, NUM_NTS, jnp.int32)

    tops, new_hidden, new_cell = rnng_cell_forward(
        params, word_vecs, actions, pointer, h0, c0,
        children, ch_lengths, reduced_nt_ids)
    jax.block_until_ready((tops, new_hidden, new_cell))

    assert tops.shape == (NS, B, HIDDEN_SIZE)
    assert new_hidden.shape == (NUM_LAYERS, B, HIDDEN_SIZE)
    assert new_cell.shape == (NUM_LAYERS, B, HIDDEN_SIZE)

    # correctness vs pure-JAX reference of the same math (reference uses
    # HIGHEST matmul precision; kernel runs bf16 MXU with f32 accumulation,
    # accumulated over NS recurrent steps -> 2e-2 tolerance).
    ref_tops, ref_h, ref_c = jax.jit(rnng_forward_ref)(
        params, word_vecs, actions, pointer, h0, c0,
        children, ch_lengths, reduced_nt_ids)
    for got, want in ((tops, ref_tops), (new_hidden, ref_h), (new_cell, ref_c)):
        err = float(jnp.max(jnp.abs(got - want)))
        assert jnp.allclose(got, want, atol=2e-2, rtol=2e-2), err

    print("KERNEL_OK")
</pallas_src>

<mosaic_0001>
module attributes {stable_mosaic.version = 11 : i64} {
  func.func @_rnng_fused_kernel(%arg0: i32, %arg1: memref<6xi32, #tpu.memory_space<smem>>, %arg2: memref<1x8x1xi32, #tpu.memory_space<vmem>>, %arg3: memref<1x8x1xi32, #tpu.memory_space<vmem>>, %arg4: memref<1x8x1xi32, #tpu.memory_space<vmem>>, %arg5: memref<1x8x4x32xf32, #tpu.memory_space<vmem>>, %arg6: memref<1x8x1xi32, #tpu.memory_space<vmem>>, %arg7: memref<8x8x32xf32, #tpu.memory_space<vmem>>, %arg8: memref<2x8x32xf32, #tpu.memory_space<vmem>>, %arg9: memref<2x8x32xf32, #tpu.memory_space<vmem>>, %arg10: memref<368x128xbf16, #tpu.memory_space<vmem>>, %arg11: memref<1x8x32xf32, #tpu.memory_space<vmem>>, %arg12: memref<2x8x32xf32, #tpu.memory_space<vmem>>, %arg13: memref<2x8x32xf32, #tpu.memory_space<vmem>>, %arg14: memref<8x32xf32, #tpu.memory_space<vmem>>) attributes {dimension_semantics = [#tpu.dimension_semantics<arbitrary>], iteration_bounds = array<i64: 6>, scalar_prefetch = 1 : i64, scratch_operands = 1 : i64, tpu.core_type = #tpu.core_type<tc>, window_params = [{transform_indices = @transform_0, window_bounds = array<i64: 1, 8, 1>}, {transform_indices = @transform_1, window_bounds = array<i64: 1, 8, 1>}, {transform_indices = @transform_2, window_bounds = array<i64: 1, 8, 1>}, {transform_indices = @transform_3, window_bounds = array<i64: 1, 8, 4, 32>}, {transform_indices = @transform_4, window_bounds = array<i64: 1, 8, 1>}, {pipeline_mode = #tpu.pipeline_mode<synchronous>, transform_indices = @transform_5, window_bounds = array<i64: 8, 8, 32>}, {pipeline_mode = #tpu.pipeline_mode<synchronous>, transform_indices = @transform_6, window_bounds = array<i64: 2, 8, 32>}, {pipeline_mode = #tpu.pipeline_mode<synchronous>, transform_indices = @transform_7, window_bounds = array<i64: 2, 8, 32>}, {pipeline_mode = #tpu.pipeline_mode<synchronous>, transform_indices = @transform_8, window_bounds = array<i64: 368, 128>}, {transform_indices = @transform_9, window_bounds = array<i64: 1, 8, 32>}, {pipeline_mode = #tpu.pipeline_mode<synchronous>, transform_indices = @transform_10, window_bounds = array<i64: 2, 8, 32>}, {pipeline_mode = #tpu.pipeline_mode<synchronous>, transform_indices = @transform_11, window_bounds = array<i64: 2, 8, 32>}]} {
    %c0_i32 = arith.constant 0 : i32
    %0 = arith.cmpi eq, %arg0, %c0_i32 : i32
    %1 = arith.extui %0 : i1 to i32
    %c0_i32_0 = arith.constant 0 : i32
    %2 = arith.cmpi ne, %1, %c0_i32_0 : i32
    scf.if %2 {
      %c0_49 = arith.constant 0 : index
      %c0_50 = arith.constant 0 : index
      %c0_51 = arith.constant 0 : index
      %140 = vector.load %arg8[%c0_49, %c0_50, %c0_51] : memref<2x8x32xf32, #tpu.memory_space<vmem>>, vector<2x8x32xf32>
      %c0_52 = arith.constant 0 : index
      %c0_53 = arith.constant 0 : index
      %c0_54 = arith.constant 0 : index
      %141 = vector.load %arg12[%c0_52, %c0_53, %c0_54] : memref<2x8x32xf32, #tpu.memory_space<vmem>>, vector<2x8x32xf32>
      tpu.vector_store %arg12[%c0_52, %c0_53, %c0_54], %140 {strides = array<i32>} : memref<2x8x32xf32, #tpu.memory_space<vmem>>, vector<2x8x32xf32>,
      %c0_55 = arith.constant 0 : index
      %c0_56 = arith.constant 0 : index
      %c0_57 = arith.constant 0 : index
      %142 = vector.load %arg9[%c0_55, %c0_56, %c0_57] : memref<2x8x32xf32, #tpu.memory_space<vmem>>, vector<2x8x32xf32>
      %c0_58 = arith.constant 0 : index
      %c0_59 = arith.constant 0 : index
      %c0_60 = arith.constant 0 : index
      %143 = vector.load %arg13[%c0_58, %c0_59, %c0_60] : memref<2x8x32xf32, #tpu.memory_space<vmem>>, vector<2x8x32xf32>
      tpu.vector_store %arg13[%c0_58, %c0_59, %c0_60], %142 {strides = array<i32>} : memref<2x8x32xf32, #tpu.memory_space<vmem>>, vector<2x8x32xf32>,
      %cst_61 = arith.constant 0.000000e+00 : f32
      %144 = vector.broadcast %cst_61 : f32 to vector<8x32xf32>
      %c0_62 = arith.constant 0 : index
      %c0_63 = arith.constant 0 : index
      %145 = vector.load %arg14[%c0_62, %c0_63] : memref<8x32xf32, #tpu.memory_space<vmem>>, vector<8x32xf32>
      tpu.vector_store %arg14[%c0_62, %c0_63], %144 {strides = array<i32>} : memref<8x32xf32, #tpu.memory_space<vmem>>, vector<8x32xf32>,
    } else {
    }
    %c0 = arith.constant 0 : index
    %c0_1 = arith.constant 0 : index
    %c0_2 = arith.constant 0 : index
    %3 = vector.load %arg2[%c0, %c0_1, %c0_2] : memref<1x8x1xi32, #tpu.memory_space<vmem>>, vector<1x8x1xi32>
    %4 = vector.shape_cast %3 : vector<1x8x1xi32> to vector<8x1xi32>
    %c0_3 = arith.constant 0 : index
    %c0_4 = arith.constant 0 : index
    %c0_5 = arith.constant 0 : index
    %5 = vector.load %arg3[%c0_3, %c0_4, %c0_5] : memref<1x8x1xi32, #tpu.memory_space<vmem>>, vector<1x8x1xi32>
    %6 = vector.shape_cast %5 : vector<1x8x1xi32> to vector<8x1xi32>
    %c0_i32_6 = arith.constant 0 : i32
    %c7_i32 = arith.constant 7 : i32
    %7 = vector.broadcast %c0_i32_6 : i32 to vector<8x1xi32>
    %8 = arith.maxsi %7, %6 : vector<8x1xi32>
    %9 = vector.broadcast %c7_i32 : i32 to vector<8x1xi32>
    %10 = arith.minsi %9, %8 : vector<8x1xi32>
    %11 = tpu.iota {dimensions = array<i32: 0>} : vector<8x1xi32>
    %c8_i32 = arith.constant 8 : i32
    %12 = vector.broadcast %c8_i32 : i32 to vector<8x1xi32>
    %13 = arith.muli %11, %12 : vector<8x1xi32>
    %14 = arith.addi %13, %10 : vector<8x1xi32>
    %15 = tpu.iota {dimensions = array<i32: 1>} : vector<8x64xi32>
    %16 = vector.broadcast %14 : vector<8x1xi32> to vector<8x64xi32>
    %17 = arith.cmpi eq, %15, %16 : vector<8x64xi32>
    %18 = arith.extui %17 : vector<8x64xi1> to vector<8x64xi32>
    %19 = arith.sitofp %18 : vector<8x64xi32> to vector<8x64xf32>
    %c0_7 = arith.constant 0 : index
    %c0_8 = arith.constant 0 : index
    %c0_9 = arith.constant 0 : index
    %20 = vector.load %arg7[%c0_7, %c0_8, %c0_9] : memref<8x8x32xf32, #tpu.memory_space<vmem>>, vector<8x8x32xf32>
    %21 = vector.shape_cast %20 : vector<8x8x32xf32> to vector<64x32xf32>
    %cst = arith.constant dense<0.000000e+00> : vector<8x32xf32>
    %22 = tpu.matmul %19, %21, %cst {dimension_numbers = #tpu.dot_dimension_numbers<[1], [0], [0], [1], [0, 0, 1, 1], [], []>} : vector<8x64xf32>, vector<64x32xf32>, vector<8x32xf32> -> vector<8x32xf32>
    %c3_i32 = arith.constant 3 : i32
    %23 = vector.broadcast %c3_i32 : i32 to vector<8x1xi32>
    %24 = arith.subi %4, %23 : vector<8x1xi32>
    %c0_i32_10 = arith.constant 0 : i32
    %c9_i32 = arith.constant 9 : i32
    %25 = vector.broadcast %c0_i32_10 : i32 to vector<8x1xi32>
    %26 = arith.maxsi %25, %24 : vector<8x1xi32>
    %27 = vector.broadcast %c9_i32 : i32 to vector<8x1xi32>
    %28 = arith.minsi %27, %26 : vector<8x1xi32>
    %29 = tpu.iota {dimensions = array<i32: 1>} : vector<8x16xi32>
    %30 = vector.broadcast %28 : vector<8x1xi32> to vector<8x16xi32>
    %31 = arith.cmpi eq, %29, %30 : vector<8x16xi32>
    %32 = arith.extui %31 : vector<8x16xi1> to vector<8x16xi32>
    %33 = arith.sitofp %32 : vector<8x16xi32> to vector<8x16xf32>
    %34 = arith.truncf %33 : vector<8x16xf32> to vector<8x16xbf16>
    %c216 = arith.constant 216 : index
    %c0_11 = arith.constant 0 : index
    %35 = vector.load %arg10[%c216, %c0_11] : memref<368x128xbf16, #tpu.memory_space<vmem>>, vector<16x128xbf16>
    %cst_12 = arith.constant dense<0.000000e+00> : vector<8x128xf32>
    %36 = tpu.matmul %34, %35, %cst_12 {dimension_numbers = #tpu.dot_dimension_numbers<[1], [0], [0], [1], [0, 0, 1, 1], [], []>} : vector<8x16xbf16>, vector<16x128xbf16>, vector<8x128xf32> -> vector<8x128xf32>
    %37 = vector.extract_strided_slice %36 {offsets = [0, 0], sizes = [8, 32], strides = [1, 1]} : vector<8x128xf32> to vector<8x32xf32>
    %c1_i32 = arith.constant 1 : i32
    %38 = vector.broadcast %c1_i32 : i32 to vector<8x1xi32>
    %39 = arith.cmpi eq, %4, %38 : vector<8x1xi32>
    %cst_13 = arith.constant 0.000000e+00 : f32
    %40 = vector.shape_cast %39 : vector<8x1xi1> to vector<8x1xi1>
    %41 = vector.broadcast %40 : vector<8x1xi1> to vector<8x32xi1>
    %42 = vector.broadcast %cst_13 : f32 to vector<8x32xf32>
    %43 = arith.select %41, %22, %42 : vector<8x32xi1>, vector<8x32xf32>
    %c3_i32_14 = arith.constant 3 : i32
    %44 = vector.broadcast %c3_i32_14 : i32 to vector<8x1xi32>
    %45 = arith.cmpi sge, %4, %44 : vector<8x1xi32>
    %46 = vector.shape_cast %45 : vector<8x1xi1> to vector<8x1xi1>
    %47 = vector.broadcast %46 : vector<8x1xi1> to vector<8x32xi1>
    %48 = arith.select %47, %37, %43 : vector<8x32xi1>, vector<8x32xf32>
    %49 = arith.index_cast %arg0 : i32 to index
    %50 = memref.load %arg1[%49] : memref<6xi32, #tpu.memory_space<smem>>
    %c1_i32_15 = arith.constant 1 : i32
    %51 = arith.cmpi eq, %50, %c1_i32_15 : i32
    %52 = arith.extui %51 : i1 to i32
    %c0_i32_16 = arith.constant 0 : i32
    %53 = arith.cmpi ne, %52, %c0_i32_16 : i32
    scf.if %53 {
      %c0_49 = arith.constant 0 : index
      %c0_50 = arith.constant 0 : index
      %c0_51 = arith.constant 0 : index
      %140 = vector.load %arg6[%c0_49, %c0_50, %c0_51] : memref<1x8x1xi32, #tpu.memory_space<vmem>>, vector<1x8x1xi32>
      %141 = vector.shape_cast %140 : vector<1x8x1xi32> to vector<8x1xi32>
      %c2_i32_52 = arith.constant 2 : i32
      %142 = vector.broadcast %c2_i32_52 : i32 to vector<8x1xi32>
      %143 = arith.addi %141, %142 : vector<8x1xi32>
      %c0_53 = arith.constant 0 : index
      %c0_54 = arith.constant 0 : index
      %c0_55 = arith.constant 0 : index
      %144 = vector.load %arg4[%c0_53, %c0_54, %c0_55] : memref<1x8x1xi32, #tpu.memory_space<vmem>>, vector<1x8x1xi32>
      %145 = vector.shape_cast %144 : vector<1x8x1xi32> to vector<8x1xi32>
      %c0_i32_56 = arith.constant 0 : i32
      %c9_i32_57 = arith.constant 9 : i32
      %146 = vector.broadcast %c0_i32_56 : i32 to vector<8x1xi32>
      %147 = arith.maxsi %146, %145 : vector<8x1xi32>
      %148 = vector.broadcast %c9_i32_57 : i32 to vector<8x1xi32>
      %149 = arith.minsi %148, %147 : vector<8x1xi32>
      %150 = tpu.iota {dimensions = array<i32: 1>} : vector<8x16xi32>
      %151 = vector.broadcast %149 : vector<8x1xi32> to vector<8x16xi32>
      %152 = arith.cmpi eq, %150, %151 : vector<8x16xi32>
      %153 = arith.extui %152 : vector<8x16xi1> to vector<8x16xi32>
      %154 = arith.sitofp %153 : vector<8x16xi32> to vector<8x16xf32>
      %155 = arith.truncf %154 : vector<8x16xf32> to vector<8x16xbf16>
      %c216_58 = arith.constant 216 : index
      %c0_59 = arith.constant 0 : index
      %156 = vector.load %arg10[%c216_58, %c0_59] : memref<368x128xbf16, #tpu.memory_space<vmem>>, vector<16x128xbf16>
      %cst_60 = arith.constant dense<0.000000e+00> : vector<8x128xf32>
      %157 = tpu.matmul %155, %156, %cst_60 {dimension_numbers = #tpu.dot_dimension_numbers<[1], [0], [0], [1], [0, 0, 1, 1], [], []>} : vector<8x16xbf16>, vector<16x128xbf16>, vector<8x128xf32> -> vector<8x128xf32>
      %158 = vector.extract_strided_slice %157 {offsets = [0, 0], sizes = [8, 32], strides = [1, 1]} : vector<8x128xf32> to vector<8x32xf32>
      %c0_61 = arith.constant 0 : index
      %c0_62 = arith.constant 0 : index
      %c0_63 = arith.constant 0 : index
      %c0_64 = arith.constant 0 : index
      %159 = vector.load %arg5[%c0_61, %c0_62, %c0_63, %c0_64] : memref<1x8x4x32xf32, #tpu.memory_space<vmem>>, vector<1x8x4x32xf32>
      %160 = vector.shape_cast %159 : vector<1x8x4x32xf32> to vector<8x4x32xf32>
      %cst_65 = arith.constant 0.000000e+00 : f32
      %161 = vector.broadcast %cst_65 : f32 to vector<8x32xf32>
      %c1_i32_66 = arith.constant 1 : i32
      %162 = vector.broadcast %c1_i32_66 : i32 to vector<8x1xi32>
      %163 = arith.cmpi eq, %143, %162 : vector<8x1xi32>
      %164 = vector.shape_cast %163 : vector<8x1xi1> to vector<8x1xi1>
      %165 = vector.broadcast %164 : vector<8x1xi1> to vector<8x32xi1>
      %166 = arith.select %165, %158, %158 : vector<8x32xi1>, vector<8x32xf32>
      %167 = vector.extract_strided_slice %160 {offsets = [0, 0, 0], sizes = [8, 1, 32], strides = [1, 1, 1]} : vector<8x4x32xf32> to vector<8x1x32xf32>
      %168 = vector.shape_cast %167 : vector<8x1x32xf32> to vector<8x32xf32>
      %c2_i32_67 = arith.constant 2 : i32
      %169 = vector.broadcast %c2_i32_67 : i32 to vector<8x1xi32>
      %170 = arith.cmpi eq, %143, %169 : vector<8x1xi32>
      %171 = vector.shape_cast %170 : vector<8x1xi1> to vector<8x1xi1>
      %172 = vector.broadcast %171 : vector<8x1xi1> to vector<8x32xi1>
      %173 = arith.select %172, %158, %168 : vector<8x32xi1>, vector<8x32xf32>
      %174 = vector.extract_strided_slice %160 {offsets = [0, 1, 0], sizes = [8, 1, 32], strides = [1, 1, 1]} : vector<8x4x32xf32> to vector<8x1x32xf32>
      %175 = vector.shape_cast %174 : vector<8x1x32xf32> to vector<8x32xf32>
      %c3_i32_68 = arith.constant 3 : i32
      %176 = vector.broadcast %c3_i32_68 : i32 to vector<8x1xi32>
      %177 = arith.cmpi eq, %143, %176 : vector<8x1xi32>
      %178 = vector.shape_cast %177 : vector<8x1xi1> to vector<8x1xi1>
      %179 = vector.broadcast %178 : vector<8x1xi1> to vector<8x32xi1>
      %180 = arith.select %179, %158, %175 : vector<8x32xi1>, vector<8x32xf32>
      %181 = vector.extract_strided_slice %160 {offsets = [0, 2, 0], sizes = [8, 1, 32], strides = [1, 1, 1]} : vector<8x4x32xf32> to vector<8x1x32xf32>
      %182 = vector.shape_cast %181 : vector<8x1x32xf32> to vector<8x32xf32>
      %c4_i32 = arith.constant 4 : i32
      %183 = vector.broadcast %c4_i32 : i32 to vector<8x1xi32>
      %184 = arith.cmpi eq, %143, %183 : vector<8x1xi32>
      %185 = vector.shape_cast %184 : vector<8x1xi1> to vector<8x1xi1>
      %186 = vector.broadcast %185 : vector<8x1xi1> to vector<8x32xi1>
      %187 = arith.select %186, %158, %182 : vector<8x32xi1>, vector<8x32xf32>
      %188 = vector.extract_strided_slice %160 {offsets = [0, 3, 0], sizes = [8, 1, 32], strides = [1, 1, 1]} : vector<8x4x32xf32> to vector<8x1x32xf32>
      %189 = vector.shape_cast %188 : vector<8x1x32xf32> to vector<8x32xf32>
      %c5_i32 = arith.constant 5 : i32
      %190 = vector.broadcast %c5_i32 : i32 to vector<8x1xi32>
      %191 = arith.cmpi eq, %143, %190 : vector<8x1xi32>
      %192 = vector.shape_cast %191 : vector<8x1xi1> to vector<8x1xi1>
      %193 = vector.broadcast %192 : vector<8x1xi1> to vector<8x32xi1>
      %194 = arith.select %193, %158, %189 : vector<8x32xi1>, vector<8x32xf32>
      %c6_i32 = arith.constant 6 : i32
      %195 = vector.broadcast %c6_i32 : i32 to vector<8x1xi32>
      %196 = arith.cmpi eq, %143, %195 : vector<8x1xi32>
      %197 = vector.shape_cast %196 : vector<8x1xi1> to vector<8x1xi1>
      %198 = vector.broadcast %197 : vector<8x1xi1> to vector<8x32xi1>
      %199 = arith.select %198, %158, %161 : vector<8x32xi1>, vector<8x32xf32>
      %200 = tpu.concatenate %166, %173, %180, %187, %194, %199 in 0 : vector<8x32xf32>, vector<8x32xf32>, vector<8x32xf32>, vector<8x32xf32>, vector<8x32xf32>, vector<8x32xf32> -> vector<48x32xf32>
      %201 = arith.truncf %200 : vector<48x32xf32> to vector<48x32xbf16>
      %c64 = arith.constant 64 : index
      %c0_69 = arith.constant 0 : index
      %202 = vector.load %arg10[%c64, %c0_69] : memref<368x128xbf16, #tpu.memory_space<vmem>>, vector<32x128xbf16>
      %cst_70 = arith.constant dense<0.000000e+00> : vector<48x128xf32>
      %203 = tpu.matmul %201, %202, %cst_70 {dimension_numbers = #tpu.dot_dimension_numbers<[1], [0], [0], [1], [0, 0, 1, 1], [], []>} : vector<48x32xbf16>, vector<32x128xbf16>, vector<48x128xf32> -> vector<48x128xf32>
      %c128 = arith.constant 128 : index
      %c0_71 = arith.constant 0 : index
      %204 = vector.load %arg10[%c128, %c0_71] : memref<368x128xbf16, #tpu.memory_space<vmem>>, vector<1x128xbf16>
      %205 = arith.extf %204 : vector<1x128xbf16> to vector<1x128xf32>
      %206 = vector.broadcast %205 : vector<1x128xf32> to vector<48x128xf32>
      %207 = arith.addf %203, %206 : vector<48x128xf32>
      %c96 = arith.constant 96 : index
      %c0_72 = arith.constant 0 : index
      %208 = vector.load %arg10[%c96, %c0_72] : memref<368x128xbf16, #tpu.memory_space<vmem>>, vector<32x128xbf16>
      %cst_73 = arith.constant dense<0.000000e+00> : vector<48x128xf32>
      %209 = tpu.matmul %201, %208, %cst_73 {dimension_numbers = #tpu.dot_dimension_numbers<[1], [0], [0], [1], [0, 0, 1, 1], [], []>} : vector<48x32xbf16>, vector<32x128xbf16>, vector<48x128xf32> -> vector<48x128xf32>
      %c136 = arith.constant 136 : index
      %c0_74 = arith.constant 0 : index
      %210 = vector.load %arg10[%c136, %c0_74] : memref<368x128xbf16, #tpu.memory_space<vmem>>, vector<1x128xbf16>
      %211 = arith.extf %210 : vector<1x128xbf16> to vector<1x128xf32>
      %212 = vector.broadcast %211 : vector<1x128xf32> to vector<48x128xf32>
      %213 = arith.addf %209, %212 : vector<48x128xf32>
      %c0_75 = arith.constant 0 : index
      %c0_76 = arith.constant 0 : index
      %214 = vector.load %arg10[%c0_75, %c0_76] : memref<368x128xbf16, #tpu.memory_space<vmem>>, vector<64x128xbf16>
      %215 = tpu.iota {dimensions = array<i32: 0>} : vector<16x1xi32>
      %c8_i32_77 = arith.constant 8 : i32
      %216 = vector.broadcast %c8_i32_77 : i32 to vector<16x1xi32>
      %217 = arith.cmpi slt, %215, %216 : vector<16x1xi32>
      %c1_i32_78 = arith.constant 1 : i32
      %218 = vector.broadcast %c1_i32_78 : i32 to vector<8x1xi32>
      %219 = arith.subi %143, %218 : vector<8x1xi32>
      %c1_i32_79 = arith.constant 1 : i32
      %220 = vector.broadcast %c1_i32_79 : i32 to vector<8x1xi32>
      %221 = arith.subi %143, %220 : vector<8x1xi32>
      %222 = tpu.concatenate %219, %221 in 0 : vector<8x1xi32>, vector<8x1xi32> -> vector<16x1xi32>
      %cst_80 = arith.constant 0.000000e+00 : f32
      %223 = vector.broadcast %cst_80 : f32 to vector<16x32xf32>
      %cst_81 = arith.constant 0.000000e+00 : f32
      %224 = vector.broadcast %cst_81 : f32 to vector<16x32xf32>
      %cst_82 = arith.constant dense<true> : vector<16x1xi1>
      %225 = arith.xori %217, %cst_82 : vector<16x1xi1>
      %c5_i32_83 = arith.constant 5 : i32
      %226 = vector.broadcast %c5_i32_83 : i32 to vector<16x1xi32>
      %227 = arith.cmpi sle, %222, %226 : vector<16x1xi32>
      %228 = arith.andi %225, %227 : vector<16x1xi1>
      %cst_84 = arith.constant 0.000000e+00 : f32
      %229 = vector.shape_cast %228 : vector<16x1xi1> to vector<16x1xi1>
      %230 = vector.broadcast %229 : vector<16x1xi1> to vector<16x32xi1>
      %231 = vector.broadcast %cst_84 : f32 to vector<16x32xf32>
      %232 = arith.select %230, %231, %223 : vector<16x32xi1>, vector<16x32xf32>
      %cst_85 = arith.constant 0.000000e+00 : f32
      %233 = vector.shape_cast %228 : vector<16x1xi1> to vector<16x1xi1>
      %234 = vector.broadcast %233 : vector<16x1xi1> to vector<16x32xi1>
      %235 = vector.broadcast %cst_85 : f32 to vector<16x32xf32>
      %236 = arith.select %234, %235, %224 : vector<16x32xi1>, vector<16x32xf32>
      %cst_86 = arith.constant 0.000000e+00 : f32
      %237 = vector.shape_cast %217 : vector<16x1xi1> to vector<16x1xi1>
      %238 = vector.broadcast %237 : vector<16x1xi1> to vector<16x32xi1>
      %239 = vector.broadcast %cst_86 : f32 to vector<16x32xf32>
      %240 = arith.select %238, %232, %239 : vector<16x32xi1>, vector<16x32xf32>
      %cst_87 = arith.constant 0.000000e+00 : f32
      %241 = vector.shape_cast %217 : vector<16x1xi1> to vector<16x1xi1>
      %242 = vector.broadcast %241 : vector<16x1xi1> to vector<16x32xi1>
      %243 = vector.broadcast %cst_87 : f32 to vector<16x32xf32>
      %244 = arith.select %242, %243, %232 : vector<16x32xi1>, vector<16x32xf32>
      %245 = tpu.concatenate %240, %244 in 1 : vector<16x32xf32>, vector<16x32xf32> -> vector<16x64xf32>
      %246 = vector.extract_strided_slice %207 {offsets = [0, 0], sizes = [8, 128], strides = [1, 1]} : vector<48x128xf32> to vector<8x128xf32>
      %247 = vector.extract_strided_slice %213 {offsets = [40, 0], sizes = [8, 128], strides = [1, 1]} : vector<48x128xf32> to vector<8x128xf32>
      %248 = tpu.concatenate %246, %247 in 0 : vector<8x128xf32>, vector<8x128xf32> -> vector<16x128xf32>
      %249 = arith.truncf %245 : vector<16x64xf32> to vector<16x64xbf16>
      %cst_88 = arith.constant dense<0.000000e+00> : vector<16x128xf32>
      %250 = tpu.matmul %249, %214, %cst_88 {dimension_numbers = #tpu.dot_dimension_numbers<[1], [0], [0], [1], [0, 0, 1, 1], [], []>} : vector<16x64xbf16>, vector<64x128xbf16>, vector<16x128xf32> -> vector<16x128xf32>
      %251 = arith.addf %248, %250 : vector<16x128xf32>
      %252 = arith.negf %251 : vector<16x128xf32>
      %253 = math.exp %252 : vector<16x128xf32>
      %cst_89 = arith.constant 1.000000e+00 : f32
      %254 = vector.broadcast %cst_89 : f32 to vector<16x128xf32>
      %255 = arith.addf %254, %253 : vector<16x128xf32>
      %256 = arith.divf %254, %255 : vector<16x128xf32>
      %257 = math.tanh %251 : vector<16x128xf32>
      %258 = vector.extract_strided_slice %256 {offsets = [0, 0], sizes = [16, 32], strides = [1, 1]} : vector<16x128xf32> to vector<16x32xf32>
      %259 = vector.extract_strided_slice %256 {offsets = [0, 32], sizes = [16, 32], strides = [1, 1]} : vector<16x128xf32> to vector<16x32xf32>
      %260 = vector.extract_strided_slice %256 {offsets = [0, 96], sizes = [16, 32], strides = [1, 1]} : vector<16x128xf32> to vector<16x32xf32>
      %261 = vector.extract_strided_slice %257 {offsets = [0, 64], sizes = [16, 32], strides = [1, 1]} : vector<16x128xf32> to vector<16x32xf32>
      %262 = arith.mulf %259, %236 : vector<16x32xf32>
      %263 = arith.mulf %258, %261 : vector<16x32xf32>
      %264 = arith.addf %262, %263 : vector<16x32xf32>
      %265 = math.tanh %264 : vector<16x32xf32>
      %266 = arith.mulf %260, %265 : vector<16x32xf32>
      %c2_i32_90 = arith.constant 2 : i32
      %267 = vector.broadcast %c2_i32_90 : i32 to vector<8x1xi32>
      %268 = arith.cmpi eq, %143, %267 : vector<8x1xi32>
      %269 = vector.extract_strided_slice %266 {offsets = [0, 0], sizes = [8, 32], strides = [1, 1]} : vector<16x32xf32> to vector<8x32xf32>
      %270 = vector.shape_cast %268 : vector<8x1xi1> to vector<8x1xi1>
      %271 = vector.broadcast %270 : vector<8x1xi1> to vector<8x32xi1>
      %272 = arith.select %271, %269, %161 : vector<8x32xi1>, vector<8x32xf32>
      %cst_91 = arith.constant dense<true> : vector<16x1xi1>
      %273 = arith.xori %217, %cst_91 : vector<16x1xi1>
      %c4_i32_92 = arith.constant 4 : i32
      %274 = vector.broadcast %c4_i32_92 : i32 to vector<16x1xi32>
      %275 = arith.cmpi sle, %222, %274 : vector<16x1xi32>
      %276 = arith.andi %273, %275 : vector<16x1xi1>
      %cst_93 = arith.constant 0.000000e+00 : f32
      %277 = vector.shape_cast %276 : vector<16x1xi1> to vector<16x1xi1>
      %278 = vector.broadcast %277 : vector<16x1xi1> to vector<16x32xi1>
      %279 = vector.broadcast %cst_93 : f32 to vector<16x32xf32>
      %280 = arith.select %278, %279, %266 : vector<16x32xi1>, vector<16x32xf32>
      %cst_94 = arith.constant 0.000000e+00 : f32
      %281 = vector.shape_cast %276 : vector<16x1xi1> to vector<16x1xi1>
      %282 = vector.broadcast %281 : vector<16x1xi1> to vector<16x32xi1>
      %283 = vector.broadcast %cst_94 : f32 to vector<16x32xf32>
      %284 = arith.select %282, %283, %264 : vector<16x32xi1>, vector<16x32xf32>
      %cst_95 = arith.constant 0.000000e+00 : f32
      %285 = vector.shape_cast %217 : vector<16x1xi1> to vector<16x1xi1>
      %286 = vector.broadcast %285 : vector<16x1xi1> to vector<16x32xi1>
      %287 = vector.broadcast %cst_95 : f32 to vector<16x32xf32>
      %288 = arith.select %286, %280, %287 : vector<16x32xi1>, vector<16x32xf32>
      %cst_96 = arith.constant 0.000000e+00 : f32
      %289 = vector.shape_cast %217 : vector<16x1xi1> to vector<16x1xi1>
      %290 = vector.broadcast %289 : vector<16x1xi1> to vector<16x32xi1>
      %291 = vector.broadcast %cst_96 : f32 to vector<16x32xf32>
      %292 = arith.select %290, %291, %280 : vector<16x32xi1>, vector<16x32xf32>
      %293 = tpu.concatenate %288, %292 in 1 : vector<16x32xf32>, vector<16x32xf32> -> vector<16x64xf32>
      %294 = vector.extract_strided_slice %207 {offsets = [8, 0], sizes = [8, 128], strides = [1, 1]} : vector<48x128xf32> to vector<8x128xf32>
      %295 = vector.extract_strided_slice %213 {offsets = [32, 0], sizes = [8, 128], strides = [1, 1]} : vector<48x128xf32> to vector<8x128xf32>
      %296 = tpu.concatenate %294, %295 in 0 : vector<8x128xf32>, vector<8x128xf32> -> vector<16x128xf32>
      %297 = arith.truncf %293 : vector<16x64xf32> to vector<16x64xbf16>
      %cst_97 = arith.constant dense<0.000000e+00> : vector<16x128xf32>
      %298 = tpu.matmul %297, %214, %cst_97 {dimension_numbers = #tpu.dot_dimension_numbers<[1], [0], [0], [1], [0, 0, 1, 1], [], []>} : vector<16x64xbf16>, vector<64x128xbf16>, vector<16x128xf32> -> vector<16x128xf32>
      %299 = arith.addf %296, %298 : vector<16x128xf32>
      %300 = arith.negf %299 : vector<16x128xf32>
      %301 = math.exp %300 : vector<16x128xf32>
      %cst_98 = arith.constant 1.000000e+00 : f32
      %302 = vector.broadcast %cst_98 : f32 to vector<16x128xf32>
      %303 = arith.addf %302, %301 : vector<16x128xf32>
      %304 = arith.divf %302, %303 : vector<16x128xf32>
      %305 = math.tanh %299 : vector<16x128xf32>
      %306 = vector.extract_strided_slice %304 {offsets = [0, 0], sizes = [16, 32], strides = [1, 1]} : vector<16x128xf32> to vector<16x32xf32>
      %307 = vector.extract_strided_slice %304 {offsets = [0, 32], sizes = [16, 32], strides = [1, 1]} : vector<16x128xf32> to vector<16x32xf32>
      %308 = vector.extract_strided_slice %304 {offsets = [0, 96], sizes = [16, 32], strides = [1, 1]} : vector<16x128xf32> to vector<16x32xf32>
      %309 = vector.extract_strided_slice %305 {offsets = [0, 64], sizes = [16, 32], strides = [1, 1]} : vector<16x128xf32> to vector<16x32xf32>
      %310 = arith.mulf %307, %284 : vector<16x32xf32>
      %311 = arith.mulf %306, %309 : vector<16x32xf32>
      %312 = arith.addf %310, %311 : vector<16x32xf32>
      %313 = math.tanh %312 : vector<16x32xf32>
      %314 = arith.mulf %308, %313 : vector<16x32xf32>
      %c3_i32_99 = arith.constant 3 : i32
      %315 = vector.broadcast %c3_i32_99 : i32 to vector<8x1xi32>
      %316 = arith.cmpi eq, %143, %315 : vector<8x1xi32>
      %317 = vector.extract_strided_slice %314 {offsets = [0, 0], sizes = [8, 32], strides = [1, 1]} : vector<16x32xf32> to vector<8x32xf32>
      %318 = vector.shape_cast %316 : vector<8x1xi1> to vector<8x1xi1>
      %319 = vector.broadcast %318 : vector<8x1xi1> to vector<8x32xi1>
      %320 = arith.select %319, %317, %272 : vector<8x32xi1>, vector<8x32xf32>
      %cst_100 = arith.constant dense<true> : vector<16x1xi1>
      %321 = arith.xori %217, %cst_100 : vector<16x1xi1>
      %c3_i32_101 = arith.constant 3 : i32
      %322 = vector.broadcast %c3_i32_101 : i32 to vector<16x1xi32>
      %323 = arith.cmpi sle, %222, %322 : vector<16x1xi32>
      %324 = arith.andi %321, %323 : vector<16x1xi1>
      %cst_102 = arith.constant 0.000000e+00 : f32
      %325 = vector.shape_cast %324 : vector<16x1xi1> to vector<16x1xi1>
      %326 = vector.broadcast %325 : vector<16x1xi1> to vector<16x32xi1>
      %327 = vector.broadcast %cst_102 : f32 to vector<16x32xf32>
      %328 = arith.select %326, %327, %314 : vector<16x32xi1>, vector<16x32xf32>
      %cst_103 = arith.constant 0.000000e+00 : f32
      %329 = vector.shape_cast %324 : vector<16x1xi1> to vector<16x1xi1>
      %330 = vector.broadcast %329 : vector<16x1xi1> to vector<16x32xi1>
      %331 = vector.broadcast %cst_103 : f32 to vector<16x32xf32>
      %332 = arith.select %330, %331, %312 : vector<16x32xi1>, vector<16x32xf32>
      %cst_104 = arith.constant 0.000000e+00 : f32
      %333 = vector.shape_cast %217 : vector<16x1xi1> to vector<16x1xi1>
      %334 = vector.broadcast %333 : vector<16x1xi1> to vector<16x32xi1>
      %335 = vector.broadcast %cst_104 : f32 to vector<16x32xf32>
      %336 = arith.select %334, %328, %335 : vector<16x32xi1>, vector<16x32xf32>
      %cst_105 = arith.constant 0.000000e+00 : f32
      %337 = vector.shape_cast %217 : vector<16x1xi1> to vector<16x1xi1>
      %338 = vector.broadcast %337 : vector<16x1xi1> to vector<16x32xi1>
      %339 = vector.broadcast %cst_105 : f32 to vector<16x32xf32>
      %340 = arith.select %338, %339, %328 : vector<16x32xi1>, vector<16x32xf32>
      %341 = tpu.concatenate %336, %340 in 1 : vector<16x32xf32>, vector<16x32xf32> -> vector<16x64xf32>
      %342 = vector.extract_strided_slice %207 {offsets = [16, 0], sizes = [8, 128], strides = [1, 1]} : vector<48x128xf32> to vector<8x128xf32>
      %343 = vector.extract_strided_slice %213 {offsets = [24, 0], sizes = [8, 128], strides = [1, 1]} : vector<48x128xf32> to vector<8x128xf32>
      %344 = tpu.concatenate %342, %343 in 0 : vector<8x128xf32>, vector<8x128xf32> -> vector<16x128xf32>
      %345 = arith.truncf %341 : vector<16x64xf32> to vector<16x64xbf16>
      %cst_106 = arith.constant dense<0.000000e+00> : vector<16x128xf32>
      %346 = tpu.matmul %345, %214, %cst_106 {dimension_numbers = #tpu.dot_dimension_numbers<[1], [0], [0], [1], [0, 0, 1, 1], [], []>} : vector<16x64xbf16>, vector<64x128xbf16>, vector<16x128xf32> -> vector<16x128xf32>
      %347 = arith.addf %344, %346 : vector<16x128xf32>
      %348 = arith.negf %347 : vector<16x128xf32>
      %349 = math.exp %348 : vector<16x128xf32>
      %cst_107 = arith.constant 1.000000e+00 : f32
      %350 = vector.broadcast %cst_107 : f32 to vector<16x128xf32>
      %351 = arith.addf %350, %349 : vector<16x128xf32>
      %352 = arith.divf %350, %351 : vector<16x128xf32>
      %353 = math.tanh %347 : vector<16x128xf32>
      %354 = vector.extract_strided_slice %352 {offsets = [0, 0], sizes = [16, 32], strides = [1, 1]} : vector<16x128xf32> to vector<16x32xf32>
      %355 = vector.extract_strided_slice %352 {offsets = [0, 32], sizes = [16, 32], strides = [1, 1]} : vector<16x128xf32> to vector<16x32xf32>
      %356 = vector.extract_strided_slice %352 {offsets = [0, 96], sizes = [16, 32], strides = [1, 1]} : vector<16x128xf32> to vector<16x32xf32>
      %357 = vector.extract_strided_slice %353 {offsets = [0, 64], sizes = [16, 32], strides = [1, 1]} : vector<16x128xf32> to vector<16x32xf32>
      %358 = arith.mulf %355, %332 : vector<16x32xf32>
      %359 = arith.mulf %354, %357 : vector<16x32xf32>
      %360 = arith.addf %358, %359 : vector<16x32xf32>
      %361 = math.tanh %360 : vector<16x32xf32>
      %362 = arith.mulf %356, %361 : vector<16x32xf32>
      %c4_i32_108 = arith.constant 4 : i32
      %363 = vector.broadcast %c4_i32_108 : i32 to vector<8x1xi32>
      %364 = arith.cmpi eq, %143, %363 : vector<8x1xi32>
      %365 = vector.extract_strided_slice %362 {offsets = [0, 0], sizes = [8, 32], strides = [1, 1]} : vector<16x32xf32> to vector<8x32xf32>
      %366 = vector.shape_cast %364 : vector<8x1xi1> to vector<8x1xi1>
      %367 = vector.broadcast %366 : vector<8x1xi1> to vector<8x32xi1>
      %368 = arith.select %367, %365, %320 : vector<8x32xi1>, vector<8x32xf32>
      %cst_109 = arith.constant dense<true> : vector<16x1xi1>
      %369 = arith.xori %217, %cst_109 : vector<16x1xi1>
      %c2_i32_110 = arith.constant 2 : i32
      %370 = vector.broadcast %c2_i32_110 : i32 to vector<16x1xi32>
      %371 = arith.cmpi sle, %222, %370 : vector<16x1xi32>
      %372 = arith.andi %369, %371 : vector<16x1xi1>
      %cst_111 = arith.constant 0.000000e+00 : f32
      %373 = vector.shape_cast %372 : vector<16x1xi1> to vector<16x1xi1>
      %374 = vector.broadcast %373 : vector<16x1xi1> to vector<16x32xi1>
      %375 = vector.broadcast %cst_111 : f32 to vector<16x32xf32>
      %376 = arith.select %374, %375, %362 : vector<16x32xi1>, vector<16x32xf32>
      %cst_112 = arith.constant 0.000000e+00 : f32
      %377 = vector.shape_cast %372 : vector<16x1xi1> to vector<16x1xi1>
      %378 = vector.broadcast %377 : vector<16x1xi1> to vector<16x32xi1>
      %379 = vector.broadcast %cst_112 : f32 to vector<16x32xf32>
      %380 = arith.select %378, %379, %360 : vector<16x32xi1>, vector<16x32xf32>
      %cst_113 = arith.constant 0.000000e+00 : f32
      %381 = vector.shape_cast %217 : vector<16x1xi1> to vector<16x1xi1>
      %382 = vector.broadcast %381 : vector<16x1xi1> to vector<16x32xi1>
      %383 = vector.broadcast %cst_113 : f32 to vector<16x32xf32>
      %384 = arith.select %382, %376, %383 : vector<16x32xi1>, vector<16x32xf32>
      %cst_114 = arith.constant 0.000000e+00 : f32
      %385 = vector.shape_cast %217 : vector<16x1xi1> to vector<16x1xi1>
      %386 = vector.broadcast %385 : vector<16x1xi1> to vector<16x32xi1>
      %387 = vector.broadcast %cst_114 : f32 to vector<16x32xf32>
      %388 = arith.select %386, %387, %376 : vector<16x32xi1>, vector<16x32xf32>
      %389 = tpu.concatenate %384, %388 in 1 : vector<16x32xf32>, vector<16x32xf32> -> vector<16x64xf32>
      %390 = vector.extract_strided_slice %207 {offsets = [24, 0], sizes = [8, 128], strides = [1, 1]} : vector<48x128xf32> to vector<8x128xf32>
      %391 = vector.extract_strided_slice %213 {offsets = [16, 0], sizes = [8, 128], strides = [1, 1]} : vector<48x128xf32> to vector<8x128xf32>
      %392 = tpu.concatenate %390, %391 in 0 : vector<8x128xf32>, vector<8x128xf32> -> vector<16x128xf32>
      %393 = arith.truncf %389 : vector<16x64xf32> to vector<16x64xbf16>
      %cst_115 = arith.constant dense<0.000000e+00> : vector<16x128xf32>
      %394 = tpu.matmul %393, %214, %cst_115 {dimension_numbers = #tpu.dot_dimension_numbers<[1], [0], [0], [1], [0, 0, 1, 1], [], []>} : vector<16x64xbf16>, vector<64x128xbf16>, vector<16x128xf32> -> vector<16x128xf32>
      %395 = arith.addf %392, %394 : vector<16x128xf32>
      %396 = arith.negf %395 : vector<16x128xf32>
      %397 = math.exp %396 : vector<16x128xf32>
      %cst_116 = arith.constant 1.000000e+00 : f32
      %398 = vector.broadcast %cst_116 : f32 to vector<16x128xf32>
      %399 = arith.addf %398, %397 : vector<16x128xf32>
      %400 = arith.divf %398, %399 : vector<16x128xf32>
      %401 = math.tanh %395 : vector<16x128xf32>
      %402 = vector.extract_strided_slice %400 {offsets = [0, 0], sizes = [16, 32], strides = [1, 1]} : vector<16x128xf32> to vector<16x32xf32>
      %403 = vector.extract_strided_slice %400 {offsets = [0, 32], sizes = [16, 32], strides = [1, 1]} : vector<16x128xf32> to vector<16x32xf32>
      %404 = vector.extract_strided_slice %400 {offsets = [0, 96], sizes = [16, 32], strides = [1, 1]} : vector<16x128xf32> to vector<16x32xf32>
      %405 = vector.extract_strided_slice %401 {offsets = [0, 64], sizes = [16, 32], strides = [1, 1]} : vector<16x128xf32> to vector<16x32xf32>
      %406 = arith.mulf %403, %380 : vector<16x32xf32>
      %407 = arith.mulf %402, %405 : vector<16x32xf32>
      %408 = arith.addf %406, %407 : vector<16x32xf32>
      %409 = math.tanh %408 : vector<16x32xf32>
      %410 = arith.mulf %404, %409 : vector<16x32xf32>
      %c5_i32_117 = arith.constant 5 : i32
      %411 = vector.broadcast %c5_i32_117 : i32 to vector<8x1xi32>
      %412 = arith.cmpi eq, %143, %411 : vector<8x1xi32>
      %413 = vector.extract_strided_slice %410 {offsets = [0, 0], sizes = [8, 32], strides = [1, 1]} : vector<16x32xf32> to vector<8x32xf32>
      %414 = vector.shape_cast %412 : vector<8x1xi1> to vector<8x1xi1>
      %415 = vector.broadcast %414 : vector<8x1xi1> to vector<8x32xi1>
      %416 = arith.select %415, %413, %368 : vector<8x32xi1>, vector<8x32xf32>
      %cst_118 = arith.constant dense<true> : vector<16x1xi1>
      %417 = arith.xori %217, %cst_118 : vector<16x1xi1>
      %c1_i32_119 = arith.constant 1 : i32
      %418 = vector.broadcast %c1_i32_119 : i32 to vector<16x1xi32>
      %419 = arith.cmpi sle, %222, %418 : vector<16x1xi32>
      %420 = arith.andi %417, %419 : vector<16x1xi1>
      %cst_120 = arith.constant 0.000000e+00 : f32
      %421 = vector.shape_cast %420 : vector<16x1xi1> to vector<16x1xi1>
      %422 = vector.broadcast %421 : vector<16x1xi1> to vector<16x32xi1>
      %423 = vector.broadcast %cst_120 : f32 to vector<16x32xf32>
      %424 = arith.select %422, %423, %410 : vector<16x32xi1>, vector<16x32xf32>
      %cst_121 = arith.constant 0.000000e+00 : f32
      %425 = vector.shape_cast %420 : vector<16x1xi1> to vector<16x1xi1>
      %426 = vector.broadcast %425 : vector<16x1xi1> to vector<16x32xi1>
      %427 = vector.broadcast %cst_121 : f32 to vector<16x32xf32>
      %428 = arith.select %426, %427, %408 : vector<16x32xi1>, vector<16x32xf32>
      %cst_122 = arith.constant 0.000000e+00 : f32
      %429 = vector.shape_cast %217 : vector<16x1xi1> to vector<16x1xi1>
      %430 = vector.broadcast %429 : vector<16x1xi1> to vector<16x32xi1>
      %431 = vector.broadcast %cst_122 : f32 to vector<16x32xf32>
      %432 = arith.select %430, %424, %431 : vector<16x32xi1>, vector<16x32xf32>
      %cst_123 = arith.constant 0.000000e+00 : f32
      %433 = vector.shape_cast %217 : vector<16x1xi1> to vector<16x1xi1>
      %434 = vector.broadcast %433 : vector<16x1xi1> to vector<16x32xi1>
      %435 = vector.broadcast %cst_123 : f32 to vector<16x32xf32>
      %436 = arith.select %434, %435, %424 : vector<16x32xi1>, vector<16x32xf32>
      %437 = tpu.concatenate %432, %436 in 1 : vector<16x32xf32>, vector<16x32xf32> -> vector<16x64xf32>
      %438 = vector.extract_strided_slice %207 {offsets = [32, 0], sizes = [8, 128], strides = [1, 1]} : vector<48x128xf32> to vector<8x128xf32>
      %439 = vector.extract_strided_slice %213 {offsets = [8, 0], sizes = [8, 128], strides = [1, 1]} : vector<48x128xf32> to vector<8x128xf32>
      %440 = tpu.concatenate %438, %439 in 0 : vector<8x128xf32>, vector<8x128xf32> -> vector<16x128xf32>
      %441 = arith.truncf %437 : vector<16x64xf32> to vector<16x64xbf16>
      %cst_124 = arith.constant dense<0.000000e+00> : vector<16x128xf32>
      %442 = tpu.matmul %441, %214, %cst_124 {dimension_numbers = #tpu.dot_dimension_numbers<[1], [0], [0], [1], [0, 0, 1, 1], [], []>} : vector<16x64xbf16>, vector<64x128xbf16>, vector<16x128xf32> -> vector<16x128xf32>
      %443 = arith.addf %440, %442 : vector<16x128xf32>
      %444 = arith.negf %443 : vector<16x128xf32>
      %445 = math.exp %444 : vector<16x128xf32>
      %cst_125 = arith.constant 1.000000e+00 : f32
      %446 = vector.broadcast %cst_125 : f32 to vector<16x128xf32>
      %447 = arith.addf %446, %445 : vector<16x128xf32>
      %448 = arith.divf %446, %447 : vector<16x128xf32>
      %449 = math.tanh %443 : vector<16x128xf32>
      %450 = vector.extract_strided_slice %448 {offsets = [0, 0], sizes = [16, 32], strides = [1, 1]} : vector<16x128xf32> to vector<16x32xf32>
      %451 = vector.extract_strided_slice %448 {offsets = [0, 32], sizes = [16, 32], strides = [1, 1]} : vector<16x128xf32> to vector<16x32xf32>
      %452 = vector.extract_strided_slice %448 {offsets = [0, 96], sizes = [16, 32], strides = [1, 1]} : vector<16x128xf32> to vector<16x32xf32>
      %453 = vector.extract_strided_slice %449 {offsets = [0, 64], sizes = [16, 32], strides = [1, 1]} : vector<16x128xf32> to vector<16x32xf32>
      %454 = arith.mulf %451, %428 : vector<16x32xf32>
      %455 = arith.mulf %450, %453 : vector<16x32xf32>
      %456 = arith.addf %454, %455 : vector<16x32xf32>
      %457 = math.tanh %456 : vector<16x32xf32>
      %458 = arith.mulf %452, %457 : vector<16x32xf32>
      %c6_i32_126 = arith.constant 6 : i32
      %459 = vector.broadcast %c6_i32_126 : i32 to vector<8x1xi32>
      %460 = arith.cmpi eq, %143, %459 : vector<8x1xi32>
      %461 = vector.extract_strided_slice %458 {offsets = [0, 0], sizes = [8, 32], strides = [1, 1]} : vector<16x32xf32> to vector<8x32xf32>
      %462 = vector.shape_cast %460 : vector<8x1xi1> to vector<8x1xi1>
      %463 = vector.broadcast %462 : vector<8x1xi1> to vector<8x32xi1>
      %464 = arith.select %463, %461, %416 : vector<8x32xi1>, vector<8x32xf32>
      %465 = vector.extract_strided_slice %458 {offsets = [8, 0], sizes = [8, 32], strides = [1, 1]} : vector<16x32xf32> to vector<8x32xf32>
      %466 = tpu.concatenate %464, %465 in 1 : vector<8x32xf32>, vector<8x32xf32> -> vector<8x64xf32>
      %467 = arith.truncf %466 : vector<8x64xf32> to vector<8x64xbf16>
      %c144 = arith.constant 144 : index
      %c0_127 = arith.constant 0 : index
      %468 = vector.load %arg10[%c144, %c0_127] : memref<368x128xbf16, #tpu.memory_space<vmem>>, vector<64x128xbf16>
      %cst_128 = arith.constant dense<0.000000e+00> : vector<8x128xf32>
      %469 = tpu.matmul %467, %468, %cst_128 {dimension_numbers = #tpu.dot_dimension_numbers<[1], [0], [0], [1], [0, 0, 1, 1], [], []>} : vector<8x64xbf16>, vector<64x128xbf16>, vector<8x128xf32> -> vector<8x128xf32>
      %c208 = arith.constant 208 : index
      %c0_129 = arith.constant 0 : index
      %470 = vector.load %arg10[%c208, %c0_129] : memref<368x128xbf16, #tpu.memory_space<vmem>>, vector<1x128xbf16>
      %471 = arith.extf %470 : vector<1x128xbf16> to vector<1x128xf32>
      %472 = vector.broadcast %471 : vector<1x128xf32> to vector<8x128xf32>
      %473 = arith.addf %469, %472 : vector<8x128xf32>
      %cst_130 = arith.constant 0.000000e+00 : f32
      %474 = vector.broadcast %cst_130 : f32 to vector<8x128xf32>
      %475 = arith.maximumf %473, %474 : vector<8x128xf32>
      %476 = vector.extract_strided_slice %475 {offsets = [0, 0], sizes = [8, 32], strides = [1, 1]} : vector<8x128xf32> to vector<8x32xf32>
      %c0_131 = arith.constant 0 : index
      %c0_132 = arith.constant 0 : index
      %477 = vector.load %arg14[%c0_131, %c0_132] : memref<8x32xf32, #tpu.memory_space<vmem>>, vector<8x32xf32>
      tpu.vector_store %arg14[%c0_131, %c0_132], %476 {strides = array<i32>} : memref<8x32xf32, #tpu.memory_space<vmem>>, vector<8x32xf32>,
    } else {
    }
    %c2_i32 = arith.constant 2 : i32
    %54 = vector.broadcast %c2_i32 : i32 to vector<8x1xi32>
    %55 = arith.cmpi eq, %4, %54 : vector<8x1xi32>
    %c0_17 = arith.constant 0 : index
    %c0_18 = arith.constant 0 : index
    %56 = vector.load %arg14[%c0_17, %c0_18] : memref<8x32xf32, #tpu.memory_space<vmem>>, vector<8x32xf32>
    %57 = vector.shape_cast %55 : vector<8x1xi1> to vector<8x1xi1>
    %58 = vector.broadcast %57 : vector<8x1xi1> to vector<8x32xi1>
    %59 = arith.select %58, %56, %48 : vector<8x32xi1>, vector<8x32xf32>
    %c0_19 = arith.constant 0 : index
    %c0_20 = arith.constant 0 : index
    %c0_21 = arith.constant 0 : index
    %60 = vector.load %arg12[%c0_19, %c0_20, %c0_21] : memref<2x8x32xf32, #tpu.memory_space<vmem>>, vector<2x8x32xf32>
    %c0_22 = arith.constant 0 : index
    %c0_23 = arith.constant 0 : index
    %c0_24 = arith.constant 0 : index
    %61 = vector.load %arg13[%c0_22, %c0_23, %c0_24] : memref<2x8x32xf32, #tpu.memory_space<vmem>>, vector<2x8x32xf32>
    %cst_25 = arith.constant 0.000000e+00 : f32
    %62 = vector.broadcast %cst_25 : f32 to vector<8x32xf32>
    %63 = vector.extract_strided_slice %60 {offsets = [0, 0, 0], sizes = [1, 8, 32], strides = [1, 1, 1]} : vector<2x8x32xf32> to vector<1x8x32xf32>
    %64 = vector.shape_cast %63 : vector<1x8x32xf32> to vector<8x32xf32>
    %65 = tpu.concatenate %64, %62 in 1 : vector<8x32xf32>, vector<8x32xf32> -> vector<8x64xf32>
    %66 = vector.extract_strided_slice %60 {offsets = [1, 0, 0], sizes = [1, 8, 32], strides = [1, 1, 1]} : vector<2x8x32xf32> to vector<1x8x32xf32>
    %67 = vector.shape_cast %66 : vector<1x8x32xf32> to vector<8x32xf32>
    %68 = tpu.concatenate %62, %67 in 1 : vector<8x32xf32>, vector<8x32xf32> -> vector<8x64xf32>
    %69 = tpu.concatenate %65, %68 in 0 : vector<8x64xf32>, vector<8x64xf32> -> vector<16x64xf32>
    %70 = arith.truncf %69 : vector<16x64xf32> to vector<16x64xbf16>
    %c296 = arith.constant 296 : index
    %c0_26 = arith.constant 0 : index
    %71 = vector.load %arg10[%c296, %c0_26] : memref<368x128xbf16, #tpu.memory_space<vmem>>, vector<64x128xbf16>
    %cst_27 = arith.constant dense<0.000000e+00> : vector<16x128xf32>
    %72 = tpu.matmul %70, %71, %cst_27 {dimension_numbers = #tpu.dot_dimension_numbers<[1], [0], [0], [1], [0, 0, 1, 1], [], []>} : vector<16x64xbf16>, vector<64x128xbf16>, vector<16x128xf32> -> vector<16x128xf32>
    %c360 = arith.constant 360 : index
    %c0_28 = arith.constant 0 : index
    %73 = vector.load %arg10[%c360, %c0_28] : memref<368x128xbf16, #tpu.memory_space<vmem>>, vector<2x128xbf16>
    %74 = arith.extf %73 : vector<2x128xbf16> to vector<2x128xf32>
    %75 = arith.truncf %59 : vector<8x32xf32> to vector<8x32xbf16>
    %c232 = arith.constant 232 : index
    %c0_29 = arith.constant 0 : index
    %76 = vector.load %arg10[%c232, %c0_29] : memref<368x128xbf16, #tpu.memory_space<vmem>>, vector<32x128xbf16>
    %cst_30 = arith.constant dense<0.000000e+00> : vector<8x128xf32>
    %77 = tpu.matmul %75, %76, %cst_30 {dimension_numbers = #tpu.dot_dimension_numbers<[1], [0], [0], [1], [0, 0, 1, 1], [], []>} : vector<8x32xbf16>, vector<32x128xbf16>, vector<8x128xf32> -> vector<8x128xf32>
    %78 = vector.extract_strided_slice %72 {offsets = [0, 0], sizes = [8, 128], strides = [1, 1]} : vector<16x128xf32> to vector<8x128xf32>
    %79 = arith.addf %77, %78 : vector<8x128xf32>
    %80 = vector.extract_strided_slice %74 {offsets = [0, 0], sizes = [1, 128], strides = [1, 1]} : vector<2x128xf32> to vector<1x128xf32>
    %81 = vector.broadcast %80 : vector<1x128xf32> to vector<8x128xf32>
    %82 = arith.addf %79, %81 : vector<8x128xf32>
    %83 = vector.extract_strided_slice %61 {offsets = [0, 0, 0], sizes = [1, 8, 32], strides = [1, 1, 1]} : vector<2x8x32xf32> to vector<1x8x32xf32>
    %84 = vector.shape_cast %83 : vector<1x8x32xf32> to vector<8x32xf32>
    %85 = arith.negf %82 : vector<8x128xf32>
    %86 = math.exp %85 : vector<8x128xf32>
    %cst_31 = arith.constant 1.000000e+00 : f32
    %87 = vector.broadcast %cst_31 : f32 to vector<8x128xf32>
    %88 = arith.addf %87, %86 : vector<8x128xf32>
    %89 = arith.divf %87, %88 : vector<8x128xf32>
    %90 = math.tanh %82 : vector<8x128xf32>
    %91 = vector.extract_strided_slice %89 {offsets = [0, 0], sizes = [8, 32], strides = [1, 1]} : vector<8x128xf32> to vector<8x32xf32>
    %92 = vector.extract_strided_slice %89 {offsets = [0, 32], sizes = [8, 32], strides = [1, 1]} : vector<8x128xf32> to vector<8x32xf32>
    %93 = vector.extract_strided_slice %89 {offsets = [0, 96], sizes = [8, 32], strides = [1, 1]} : vector<8x128xf32> to vector<8x32xf32>
    %94 = vector.extract_strided_slice %90 {offsets = [0, 64], sizes = [8, 32], strides = [1, 1]} : vector<8x128xf32> to vector<8x32xf32>
    %95 = arith.mulf %92, %84 : vector<8x32xf32>
    %96 = arith.mulf %91, %94 : vector<8x32xf32>
    %97 = arith.addf %95, %96 : vector<8x32xf32>
    %98 = math.tanh %97 : vector<8x32xf32>
    %99 = arith.mulf %93, %98 : vector<8x32xf32>
    %c0_32 = arith.constant 0 : index
    %c0_33 = arith.constant 0 : index
    %c0_34 = arith.constant 0 : index
    %100 = vector.load %arg12[%c0_32, %c0_33, %c0_34] : memref<2x8x32xf32, #tpu.memory_space<vmem>>, vector<1x8x32xf32>
    %101 = vector.shape_cast %100 : vector<1x8x32xf32> to vector<8x32xf32>
    %102 = vector.shape_cast %99 : vector<8x32xf32> to vector<1x8x32xf32>
    tpu.vector_store %arg12[%c0_32, %c0_33, %c0_34], %102 {strides = array<i32>} : memref<2x8x32xf32, #tpu.memory_space<vmem>>, vector<1x8x32xf32>,
    %c0_35 = arith.constant 0 : index
    %c0_36 = arith.constant 0 : index
    %c0_37 = arith.constant 0 : index
    %103 = vector.load %arg13[%c0_35, %c0_36, %c0_37] : memref<2x8x32xf32, #tpu.memory_space<vmem>>, vector<1x8x32xf32>
    %104 = vector.shape_cast %103 : vector<1x8x32xf32> to vector<8x32xf32>
    %105 = vector.shape_cast %97 : vector<8x32xf32> to vector<1x8x32xf32>
    tpu.vector_store %arg13[%c0_35, %c0_36, %c0_37], %105 {strides = array<i32>} : memref<2x8x32xf32, #tpu.memory_space<vmem>>, vector<1x8x32xf32>,
    %106 = arith.truncf %99 : vector<8x32xf32> to vector<8x32xbf16>
    %c264 = arith.constant 264 : index
    %c0_38 = arith.constant 0 : index
    %107 = vector.load %arg10[%c264, %c0_38] : memref<368x128xbf16, #tpu.memory_space<vmem>>, vector<32x128xbf16>
    %cst_39 = arith.constant dense<0.000000e+00> : vector<8x128xf32>
    %108 = tpu.matmul %106, %107, %cst_39 {dimension_numbers = #tpu.dot_dimension_numbers<[1], [0], [0], [1], [0, 0, 1, 1], [], []>} : vector<8x32xbf16>, vector<32x128xbf16>, vector<8x128xf32> -> vector<8x128xf32>
    %109 = vector.extract_strided_slice %72 {offsets = [8, 0], sizes = [8, 128], strides = [1, 1]} : vector<16x128xf32> to vector<8x128xf32>
    %110 = arith.addf %108, %109 : vector<8x128xf32>
    %111 = vector.extract_strided_slice %74 {offsets = [1, 0], sizes = [1, 128], strides = [1, 1]} : vector<2x128xf32> to vector<1x128xf32>
    %112 = vector.broadcast %111 : vector<1x128xf32> to vector<8x128xf32>
    %113 = arith.addf %110, %112 : vector<8x128xf32>
    %114 = vector.extract_strided_slice %61 {offsets = [1, 0, 0], sizes = [1, 8, 32], strides = [1, 1, 1]} : vector<2x8x32xf32> to vector<1x8x32xf32>
    %115 = vector.shape_cast %114 : vector<1x8x32xf32> to vector<8x32xf32>
    %116 = arith.negf %113 : vector<8x128xf32>
    %117 = math.exp %116 : vector<8x128xf32>
    %cst_40 = arith.constant 1.000000e+00 : f32
    %118 = vector.broadcast %cst_40 : f32 to vector<8x128xf32>
    %119 = arith.addf %118, %117 : vector<8x128xf32>
    %120 = arith.divf %118, %119 : vector<8x128xf32>
    %121 = math.tanh %113 : vector<8x128xf32>
    %122 = vector.extract_strided_slice %120 {offsets = [0, 0], sizes = [8, 32], strides = [1, 1]} : vector<8x128xf32> to vector<8x32xf32>
    %123 = vector.extract_strided_slice %120 {offsets = [0, 32], sizes = [8, 32], strides = [1, 1]} : vector<8x128xf32> to vector<8x32xf32>
    %124 = vector.extract_strided_slice %120 {offsets = [0, 96], sizes = [8, 32], strides = [1, 1]} : vector<8x128xf32> to vector<8x32xf32>
    %125 = vector.extract_strided_slice %121 {offsets = [0, 64], sizes = [8, 32], strides = [1, 1]} : vector<8x128xf32> to vector<8x32xf32>
    %126 = arith.mulf %123, %115 : vector<8x32xf32>
    %127 = arith.mulf %122, %125 : vector<8x32xf32>
    %128 = arith.addf %126, %127 : vector<8x32xf32>
    %129 = math.tanh %128 : vector<8x32xf32>
    %130 = arith.mulf %124, %129 : vector<8x32xf32>
    %c1 = arith.constant 1 : index
    %c0_41 = arith.constant 0 : index
    %c0_42 = arith.constant 0 : index
    %131 = vector.load %arg12[%c1, %c0_41, %c0_42] : memref<2x8x32xf32, #tpu.memory_space<vmem>>, vector<1x8x32xf32>
    %132 = vector.shape_cast %131 : vector<1x8x32xf32> to vector<8x32xf32>
    %133 = vector.shape_cast %130 : vector<8x32xf32> to vector<1x8x32xf32>
    tpu.vector_store %arg12[%c1, %c0_41, %c0_42], %133 {strides = array<i32>} : memref<2x8x32xf32, #tpu.memory_space<vmem>>, vector<1x8x32xf32>,
    %c1_43 = arith.constant 1 : index
    %c0_44 = arith.constant 0 : index
    %c0_45 = arith.constant 0 : index
    %134 = vector.load %arg13[%c1_43, %c0_44, %c0_45] : memref<2x8x32xf32, #tpu.memory_space<vmem>>, vector<1x8x32xf32>
    %135 = vector.shape_cast %134 : vector<1x8x32xf32> to vector<8x32xf32>
    %136 = vector.shape_cast %128 : vector<8x32xf32> to vector<1x8x32xf32>
    tpu.vector_store %arg13[%c1_43, %c0_44, %c0_45], %136 {strides = array<i32>} : memref<2x8x32xf32, #tpu.memory_space<vmem>>, vector<1x8x32xf32>,
    %c0_46 = arith.constant 0 : index
    %c0_47 = arith.constant 0 : index
    %c0_48 = arith.constant 0 : index
    %137 = vector.load %arg11[%c0_46, %c0_47, %c0_48] : memref<1x8x32xf32, #tpu.memory_space<vmem>>, vector<1x8x32xf32>
    %138 = vector.shape_cast %137 : vector<1x8x32xf32> to vector<8x32xf32>
    %139 = vector.shape_cast %130 : vector<8x32xf32> to vector<1x8x32xf32>
    tpu.vector_store %arg11[%c0_46, %c0_47, %c0_48], %139 {strides = array<i32>} : memref<1x8x32xf32, #tpu.memory_space<vmem>>, vector<1x8x32xf32>,
    return
  }
  func.func @transform_0(%arg0: i32, %arg1: memref<6xi32, #tpu.memory_space<smem>>) -> (i32, i32, i32) {
    %c0_i32 = arith.constant 0 : i32
    %c0_i32_0 = arith.constant 0 : i32
    %c0_i32_1 = arith.constant 0 : i32
    return %arg0, %c0_i32, %c0_i32_0 : i32, i32, i32
  }
  func.func @transform_1(%arg0: i32, %arg1: memref<6xi32, #tpu.memory_space<smem>>) -> (i32, i32, i32) {
    %c0_i32 = arith.constant 0 : i32
    %c0_i32_0 = arith.constant 0 : i32
    %c0_i32_1 = arith.constant 0 : i32
    return %arg0, %c0_i32, %c0_i32_0 : i32, i32, i32
  }
  func.func @transform_2(%arg0: i32, %arg1: memref<6xi32, #tpu.memory_space<smem>>) -> (i32, i32, i32) {
    %c0_i32 = arith.constant 0 : i32
    %c0_i32_0 = arith.constant 0 : i32
    %c0_i32_1 = arith.constant 0 : i32
    return %arg0, %c0_i32, %c0_i32_0 : i32, i32, i32
  }
  func.func @transform_3(%arg0: i32, %arg1: memref<6xi32, #tpu.memory_space<smem>>) -> (i32, i32, i32, i32) {
    %c0_i32 = arith.constant 0 : i32
    %c0_i32_0 = arith.constant 0 : i32
    %c0_i32_1 = arith.constant 0 : i32
    %c0_i32_2 = arith.constant 0 : i32
    return %arg0, %c0_i32, %c0_i32_0, %c0_i32_1 : i32, i32, i32, i32
  }
  func.func @transform_4(%arg0: i32, %arg1: memref<6xi32, #tpu.memory_space<smem>>) -> (i32, i32, i32) {
    %c0_i32 = arith.constant 0 : i32
    %c0_i32_0 = arith.constant 0 : i32
    %c0_i32_1 = arith.constant 0 : i32
    return %arg0, %c0_i32, %c0_i32_0 : i32, i32, i32
  }
  func.func @transform_5(%arg0: i32, %arg1: memref<6xi32, #tpu.memory_space<smem>>) -> (i32, i32, i32) {
    %c0_i32 = arith.constant 0 : i32
    %c0_i32_0 = arith.constant 0 : i32
    %c0_i32_1 = arith.constant 0 : i32
    %c0_i32_2 = arith.constant 0 : i32
    return %c0_i32, %c0_i32_0, %c0_i32_1 : i32, i32, i32
  }
  func.func @transform_6(%arg0: i32, %arg1: memref<6xi32, #tpu.memory_space<smem>>) -> (i32, i32, i32) {
    %c0_i32 = arith.constant 0 : i32
    %c0_i32_0 = arith.constant 0 : i32
    %c0_i32_1 = arith.constant 0 : i32
    %c0_i32_2 = arith.constant 0 : i32
    return %c0_i32, %c0_i32_0, %c0_i32_1 : i32, i32, i32
  }
  func.func @transform_7(%arg0: i32, %arg1: memref<6xi32, #tpu.memory_space<smem>>) -> (i32, i32, i32) {
    %c0_i32 = arith.constant 0 : i32
    %c0_i32_0 = arith.constant 0 : i32
    %c0_i32_1 = arith.constant 0 : i32
    %c0_i32_2 = arith.constant 0 : i32
    return %c0_i32, %c0_i32_0, %c0_i32_1 : i32, i32, i32
  }
  func.func @transform_8(%arg0: i32, %arg1: memref<6xi32, #tpu.memory_space<smem>>) -> (i32, i32) {
    %c0_i32 = arith.constant 0 : i32
    %c0_i32_0 = arith.constant 0 : i32
    %c0_i32_1 = arith.constant 0 : i32
    return %c0_i32, %c0_i32_0 : i32, i32
  }
  func.func @transform_9(%arg0: i32, %arg1: memref<6xi32, #tpu.memory_space<smem>>) -> (i32, i32, i32) {
    %c0_i32 = arith.constant 0 : i32
    %c0_i32_0 = arith.constant 0 : i32
    %c0_i32_1 = arith.constant 0 : i32
    return %arg0, %c0_i32, %c0_i32_0 : i32, i32, i32
  }
  func.func @transform_10(%arg0: i32, %arg1: memref<6xi32, #tpu.memory_space<smem>>) -> (i32, i32, i32) {
    %c0_i32 = arith.constant 0 : i32
    %c0_i32_0 = arith.constant 0 : i32
    %c0_i32_1 = arith.constant 0 : i32
    %c0_i32_2 = arith.constant 0 : i32
    return %c0_i32, %c0_i32_0, %c0_i32_1 : i32, i32, i32
  }
  func.func @transform_11(%arg0: i32, %arg1: memref<6xi32, #tpu.memory_space<smem>>) -> (i32, i32, i32) {
    %c0_i32 = arith.constant 0 : i32
    %c0_i32_0 = arith.constant 0 : i32
    %c0_i32_1 = arith.constant 0 : i32
    %c0_i32_2 = arith.constant 0 : i32
    return %c0_i32, %c0_i32_0, %c0_i32_1 : i32, i32, i32
  }
}

</mosaic_0001>

<llo_original>
// kernel: rnng_cell_forward.1
$region0: #{rnng_cell_forward.1}
  #allocation0 [shape = 'u32[]', space=smem, size = 0x4, offset = 0x4, fixed_abs, tag = 'smem constant byte address 0x4 - core index']
  #allocation1 [shape = 'u32[144,128]{1,0:T(1,128)}', space=vmem, size = 0x12000, scoped, tag = 'internal scratch']
  #allocation2 [shape = 'f32[8,32]{1,0:T(8,128)}', space=vmem, size = 0x1000, scoped, tag = 'scratch operand']
  #allocation3 [shape = 's32[1]{0}', space=sflag, size = 0x4, scoped, tag = 'scoped memory for rnng_cell_forward.1']
  #allocation4 [shape = 'u8[512]{0}', space=smem, size = 0x200, scoped, tag = 'prefetched SMEM operand 0']
  %s0 = inlined_call_operand.vmem [shape: s32[6], index: 0, kind: input, shape index: {}]
  %s1 = inlined_call_operand.vmem [shape: s32[6,8,1], index: 1, kind: input, shape index: {}]
  %s2 = inlined_call_operand.vmem [shape: s32[6,8,1], index: 2, kind: input, shape index: {}]
  %s3 = inlined_call_operand.vmem [shape: s32[6,8,1], index: 3, kind: input, shape index: {}]
  %s4 = inlined_call_operand.vmem [shape: f32[6,8,4,32], index: 4, kind: input, shape index: {}]
  %s5 = inlined_call_operand.vmem [shape: s32[6,8,1], index: 5, kind: input, shape index: {}]
  %s6 = inlined_call_operand.vmem [shape: f32[8,8,32], index: 6, kind: input, shape index: {}]
  %s7 = inlined_call_operand.vmem [shape: f32[2,8,32], index: 7, kind: input, shape index: {}]
  %s8 = inlined_call_operand.vmem [shape: f32[2,8,32], index: 8, kind: input, shape index: {}]
  %s9 = inlined_call_operand.vmem [shape: bf16[368,128], index: 9, kind: input, shape index: {}]
  %s10 = inlined_call_operand.vmem [shape: f32[6,8,32], index: 10, kind: output, shape index: {0}]
  %s11 = inlined_call_operand.vmem [shape: f32[2,8,32], index: 11, kind: output, shape index: {1}]
  %s12 = inlined_call_operand.vmem [shape: f32[2,8,32], index: 12, kind: output, shape index: {2}]
  %13 = xla_tuple %s10, %s11, %s12
  %s14 = sld [smem:[#allocation0]]
  $region93: #{rnng_cell_forward.1} parent=0
    _
  %s16 = ssub.s32 1, %s14
  %s17 = scalar_select 0, %s16, %s14
  %s18 = sshll.u32 %s0, 4
  %s19 = int_to_ptr.vmem [resolvable:$true] %s18
  %21 = dma.vmem_to_smem %s19, 16, [#allocation4], [#allocation3]
  %22 = dma.done [#allocation3], 16
  %23 = sfence
  loop: start=0, step=1, limit=8
  $region2: #{rnng_cell_forward.1} parent=0 // loop_pre_header
    _
  $region3: #{rnng_cell_forward.1} parent=0 // loop_header
    %s25 = sphi 0, %s29
    %p26 = scmp.ge.s32.totalorder %s25, 8
    %s35 = sphi 0, %s37
    %s38 = sphi 0, %s35
    %s39 = sphi 0, %s38
    %s55 = sphi 0, %s39
    %s61 = sphi 0, %s63
    %s64 = sphi 0, %s61
    %s65 = sphi 0, %s64
    %s81 = sphi 0, %s65
    %s87 = sphi 0, %s89
    %s90 = sphi 0, %s87
    %s91 = sphi 0, %s90
    %s107 = sphi 0, %s91
    %s113 = sphi 0, %s115
    %s116 = sphi 0, %s113
    %s117 = sphi 0, %s116
    %s133 = sphi 0, %s117
    %s139 = sphi 0, %s141
    %s142 = sphi 0, %s139
    %s143 = sphi 0, %s142
    %s159 = sphi 0, %s143
    %s163 = sphi 0, %s163
    %s165 = sphi 0, %s163
    %s166 = sphi 0, %s165
    %s180 = sphi 0, %s166
    %s184 = sphi 0, %s184
    %s186 = sphi 0, %s184
    %s187 = sphi 0, %s186
    %s201 = sphi 0, %s187
    %s205 = sphi 0, %s205
    %s207 = sphi 0, %s205
    %s208 = sphi 0, %s207
    %s222 = sphi 0, %s208
    %s226 = sphi 0, %s226
    %s228 = sphi 0, %s226
    %s229 = sphi 0, %s228
    %s243 = sphi 0, %s229
    %s249 = sphi 0, %s251
    %s252 = sphi 0, %s249
    %s253 = sphi 0, %s252
    %s269 = sphi 0, %s253
    %s273 = sphi 0, %s273
    %s275 = sphi 0, %s273
    %s276 = sphi 0, %s275
    %s290 = sphi 0, %s276
    %s294 = sphi 0, %s294
    %s296 = sphi 0, %s294
    %s297 = sphi 0, %s296
    %s311 = sphi 0, %s297
  $region4: #{rnng_cell_forward.1} parent=0 // loop_header_branch
    %28 = sbr.rel (%p26) target = $region8
  $region5: #{rnng_cell_forward.1} parent=0 // loop_body
    %s30 = ssub.s32 %s25, 1
    %s31 = ssub.s32 %s25, 2
    %s32 = sadd.s32 %s25, 1
    %s33 = ssub.s32 %s25, %s32
    %p34 = scmp.eq.s32.totalorder %s33, 0
    %s36 = sadd.s32 %s35, 1
    %s37 = scalar_select %p34, %s35, %s36
    %p40 = pneg %p34
    %p41 = scmp.eq.s32.totalorder %s25, 5
    %p42 = por %p40, %p41
    %p43 = scmp.ne.s32.totalorder %s35, %s38
    %p44 = scmp.eq.s32.totalorder %s25, 0
    %p45 = por %p43, %p44
    %p46 = scmp.ne.s32.totalorder %s35, %s38
    %p47 = scmp.eq.s32.totalorder %s30, 5
    %p48 = por %p46, %p47
    %p49 = scmp.ne.s32.totalorder %s38, %s39
    %p50 = scmp.eq.s32.totalorder %s30, 0
    %p51 = por %p49, %p50
    %p52 = scmp.ne.s32.totalorder %s38, %s39
    %p53 = scmp.eq.s32.totalorder %s31, 5
    %p54 = por %p52, %p53
    %p56 = scmp.ne.s32.totalorder %s39, %s55
    %p57 = scmp.eq.s32.totalorder %s31, 0
    %p58 = por %p56, %p57
    %s59 = ssub.s32 %s25, %s32
    %p60 = scmp.eq.s32.totalorder %s59, 0
    %s62 = sadd.s32 %s61, 1
    %s63 = scalar_select %p60, %s61, %s62
    %p66 = pneg %p60
    %p67 = scmp.eq.s32.totalorder %s25, 5
    %p68 = por %p66, %p67
    %p69 = scmp.ne.s32.totalorder %s61, %s64
    %p70 = scmp.eq.s32.totalorder %s25, 0
    %p71 = por %p69, %p70
    %p72 = scmp.ne.s32.totalorder %s61, %s64
    %p73 = scmp.eq.s32.totalorder %s30, 5
    %p74 = por %p72, %p73
    %p75 = scmp.ne.s32.totalorder %s64, %s65
    %p76 = scmp.eq.s32.totalorder %s30, 0
    %p77 = por %p75, %p76
    %p78 = scmp.ne.s32.totalorder %s64, %s65
    %p79 = scmp.eq.s32.totalorder %s31, 5
    %p80 = por %p78, %p79
    %p82 = scmp.ne.s32.totalorder %s65, %s81
    %p83 = scmp.eq.s32.totalorder %s31, 0
    %p84 = por %p82, %p83
    %s85 = ssub.s32 %s25, %s32
    %p86 = scmp.eq.s32.totalorder %s85, 0
    %s88 = sadd.s32 %s87, 1
    %s89 = scalar_select %p86, %s87, %s88
    %p92 = pneg %p86
    %p93 = scmp.eq.s32.totalorder %s25, 5
    %p94 = por %p92, %p93
    %p95 = scmp.ne.s32.totalorder %s87, %s90
    %p96 = scmp.eq.s32.totalorder %s25, 0
    %p97 = por %p95, %p96
    %p98 = scmp.ne.s32.totalorder %s87, %s90
    %p99 = scmp.eq.s32.totalorder %s30, 5
    %p100 = por %p98, %p99
    %p101 = scmp.ne.s32.totalorder %s90, %s91
    %p102 = scmp.eq.s32.totalorder %s30, 0
    %p103 = por %p101, %p102
    %p104 = scmp.ne.s32.totalorder %s90, %s91
    %p105 = scmp.eq.s32.totalorder %s31, 5
    %p106 = por %p104, %p105
    %p108 = scmp.ne.s32.totalorder %s91, %s107
    %p109 = scmp.eq.s32.totalorder %s31, 0
    %p110 = por %p108, %p109
    %s111 = ssub.s32 %s25, %s32
    %p112 = scmp.eq.s32.totalorder %s111, 0
    %s114 = sadd.s32 %s113, 1
    %s115 = scalar_select %p112, %s113, %s114
    %p118 = pneg %p112
    %p119 = scmp.eq.s32.totalorder %s25, 5
    %p120 = por %p118, %p119
    %p121 = scmp.ne.s32.totalorder %s113, %s116
    %p122 = scmp.eq.s32.totalorder %s25, 0
    %p123 = por %p121, %p122
    %p124 = scmp.ne.s32.totalorder %s113, %s116
    %p125 = scmp.eq.s32.totalorder %s30, 5
    %p126 = por %p124, %p125
    %p127 = scmp.ne.s32.totalorder %s116, %s117
    %p128 = scmp.eq.s32.totalorder %s30, 0
    %p129 = por %p127, %p128
    %p130 = scmp.ne.s32.totalorder %s116, %s117
    %p131 = scmp.eq.s32.totalorder %s31, 5
    %p132 = por %p130, %p131
    %p134 = scmp.ne.s32.totalorder %s117, %s133
    %p135 = scmp.eq.s32.totalorder %s31, 0
    %p136 = por %p134, %p135
    %s137 = ssub.s32 %s25, %s32
    %p138 = scmp.eq.s32.totalorder %s137, 0
    %s140 = sadd.s32 %s139, 1
    %s141 = scalar_select %p138, %s139, %s140
    %p144 = pneg %p138
    %p145 = scmp.eq.s32.totalorder %s25, 5
    %p146 = por %p144, %p145
    %p147 = scmp.ne.s32.totalorder %s139, %s142
    %p148 = scmp.eq.s32.totalorder %s25, 0
    %p149 = por %p147, %p148
    %p150 = scmp.ne.s32.totalorder %s139, %s142
    %p151 = scmp.eq.s32.totalorder %s30, 5
    %p152 = por %p150, %p151
    %p153 = scmp.ne.s32.totalorder %s142, %s143
    %p154 = scmp.eq.s32.totalorder %s30, 0
    %p155 = por %p153, %p154
    %p156 = scmp.ne.s32.totalorder %s142, %s143
    %p157 = scmp.eq.s32.totalorder %s31, 5
    %p158 = por %p156, %p157
    %p160 = scmp.ne.s32.totalorder %s143, %s159
    %p161 = scmp.eq.s32.totalorder %s31, 0
    %p162 = por %p160, %p161
    %s164 = sadd.s32 %s163, 1
    %p167 = scmp.eq.s32.totalorder %s25, 5
    %p168 = scmp.ne.s32.totalorder %s163, %s165
    %p169 = scmp.eq.s32.totalorder %s25, 0
    %p170 = por %p168, %p169
    %p171 = scmp.ne.s32.totalorder %s163, %s165
    %p172 = scmp.eq.s32.totalorder %s30, 5
    %p173 = por %p171, %p172
    %p174 = scmp.ne.s32.totalorder %s165, %s166
    %p175 = scmp.eq.s32.totalorder %s30, 0
    %p176 = por %p174, %p175
    %p177 = scmp.ne.s32.totalorder %s165, %s166
    %p178 = scmp.eq.s32.totalorder %s31, 5
    %p179 = por %p177, %p178
    %p181 = scmp.ne.s32.totalorder %s166, %s180
    %p182 = scmp.eq.s32.totalorder %s31, 0
    %p183 = por %p181, %p182
    %s185 = sadd.s32 %s184, 1
    %p188 = scmp.eq.s32.totalorder %s25, 5
    %p189 = scmp.ne.s32.totalorder %s184, %s186
    %p190 = scmp.eq.s32.totalorder %s25, 0
    %p191 = por %p189, %p190
    %p192 = scmp.ne.s32.totalorder %s184, %s186
    %p193 = scmp.eq.s32.totalorder %s30, 5
    %p194 = por %p192, %p193
    %p195 = scmp.ne.s32.totalorder %s186, %s187
    %p196 = scmp.eq.s32.totalorder %s30, 0
    %p197 = por %p195, %p196
    %p198 = scmp.ne.s32.totalorder %s186, %s187
    %p199 = scmp.eq.s32.totalorder %s31, 5
    %p200 = por %p198, %p199
    %p202 = scmp.ne.s32.totalorder %s187, %s201
    %p203 = scmp.eq.s32.totalorder %s31, 0
    %p204 = por %p202, %p203
    %s206 = sadd.s32 %s205, 1
    %p209 = scmp.eq.s32.totalorder %s25, 5
    %p210 = scmp.ne.s32.totalorder %s205, %s207
    %p211 = scmp.eq.s32.totalorder %s25, 0
    %p212 = por %p210, %p211
    %p213 = scmp.ne.s32.totalorder %s205, %s207
    %p214 = scmp.eq.s32.totalorder %s30, 5
    %p215 = por %p213, %p214
    %p216 = scmp.ne.s32.totalorder %s207, %s208
    %p217 = scmp.eq.s32.totalorder %s30, 0
    %p218 = por %p216, %p217
    %p219 = scmp.ne.s32.totalorder %s207, %s208
    %p220 = scmp.eq.s32.totalorder %s31, 5
    %p221 = por %p219, %p220
    %p223 = scmp.ne.s32.totalorder %s208, %s222
    %p224 = scmp.eq.s32.totalorder %s31, 0
    %p225 = por %p223, %p224
    %s227 = sadd.s32 %s226, 1
    %p230 = scmp.eq.s32.totalorder %s25, 5
    %p231 = scmp.ne.s32.totalorder %s226, %s228
    %p232 = scmp.eq.s32.totalorder %s25, 0
    %p233 = por %p231, %p232
    %p234 = scmp.ne.s32.totalorder %s226, %s228
    %p235 = scmp.eq.s32.totalorder %s30, 5
    %p236 = por %p234, %p235
    %p237 = scmp.ne.s32.totalorder %s228, %s229
    %p238 = scmp.eq.s32.totalorder %s30, 0
    %p239 = por %p237, %p238
    %p240 = scmp.ne.s32.totalorder %s228, %s229
    %p241 = scmp.eq.s32.totalorder %s31, 5
    %p242 = por %p240, %p241
    %p244 = scmp.ne.s32.totalorder %s229, %s243
    %p245 = scmp.eq.s32.totalorder %s31, 0
    %p246 = por %p244, %p245
    %s247 = ssub.s32 %s25, %s32
    %p248 = scmp.eq.s32.totalorder %s247, 0
    %s250 = sadd.s32 %s249, 1
    %s251 = scalar_select %p248, %s249, %s250
    %p254 = pneg %p248
    %p255 = scmp.eq.s32.totalorder %s25, 5
    %p256 = por %p254, %p255
    %p257 = scmp.ne.s32.totalorder %s249, %s252
    %p258 = scmp.eq.s32.totalorder %s25, 0
    %p259 = por %p257, %p258
    %p260 = scmp.ne.s32.totalorder %s249, %s252
    %p261 = scmp.eq.s32.totalorder %s30, 5
    %p262 = por %p260, %p261
    %p263 = scmp.ne.s32.totalorder %s252, %s253
    %p264 = scmp.eq.s32.totalorder %s30, 0
    %p265 = por %p263, %p264
    %p266 = scmp.ne.s32.totalorder %s252, %s253
    %p267 = scmp.eq.s32.totalorder %s31, 5
    %p268 = por %p266, %p267
    %p270 = scmp.ne.s32.totalorder %s253, %s269
    %p271 = scmp.eq.s32.totalorder %s31, 0
    %p272 = por %p270, %p271
    %s274 = sadd.s32 %s273, 1
    %p277 = scmp.eq.s32.totalorder %s25, 5
    %p278 = scmp.ne.s32.totalorder %s273, %s275
    %p279 = scmp.eq.s32.totalorder %s25, 0
    %p280 = por %p278, %p279
    %p281 = scmp.ne.s32.totalorder %s273, %s275
    %p282 = scmp.eq.s32.totalorder %s30, 5
    %p283 = por %p281, %p282
    %p284 = scmp.ne.s32.totalorder %s275, %s276
    %p285 = scmp.eq.s32.totalorder %s30, 0
    %p286 = por %p284, %p285
    %p287 = scmp.ne.s32.totalorder %s275, %s276
    %p288 = scmp.eq.s32.totalorder %s31, 5
    %p289 = por %p287, %p288
    %p291 = scmp.ne.s32.totalorder %s276, %s290
    %p292 = scmp.eq.s32.totalorder %s31, 0
    %p293 = por %p291, %p292
    %s295 = sadd.s32 %s294, 1
    %p298 = scmp.eq.s32.totalorder %s25, 5
    %p299 = scmp.ne.s32.totalorder %s294, %s296
    %p300 = scmp.eq.s32.totalorder %s25, 0
    %p301 = por %p299, %p300
    %p302 = scmp.ne.s32.totalorder %s294, %s296
    %p303 = scmp.eq.s32.totalorder %s30, 5
    %p304 = por %p302, %p303
    %p305 = scmp.ne.s32.totalorder %s296, %s297
    %p306 = scmp.eq.s32.totalorder %s30, 0
    %p307 = por %p305, %p306
    %p308 = scmp.ne.s32.totalorder %s296, %s297
    %p309 = scmp.eq.s32.totalorder %s31, 5
    %p310 = por %p308, %p309
    %p312 = scmp.ne.s32.totalorder %s297, %s311
    %p313 = scmp.eq.s32.totalorder %s31, 0
    %p314 = por %p312, %p313
    %p315 = scmp.le.s32.totalorder 1, %s25
    %p316 = scmp.lt.s32.totalorder %s25, 7
    %p317 = pnand %p315, %p316
    %p318 = pneg %p317
    // Predicated region
    $region9: #{rnng_cell_forward.1} parent=5 // pred_check
      _
    $region10: #{rnng_cell_forward.1} parent=5 // pred_check_branch
      %320 = sbr.rel (%p317) target = $region12
    $region11: #{rnng_cell_forward.1} parent=5 // pred_region
      %s321 = ssub.s32 %s25, 1
      // Predicated region
      $region13: #{rnng_cell_forward.1} parent=11 // pred_check
        %p322 = pneg %p176
      $region14: #{rnng_cell_forward.1} parent=11 // pred_check_branch
        %324 = sbr.rel (%p322) target = $region16
      $region15: #{rnng_cell_forward.1} parent=11 // pred_region
        _
      $region16: #{rnng_cell_forward.1} parent=11 // pred_fallthru
        _
      // Predicated region
      $region17: #{rnng_cell_forward.1} parent=11 // pred_check
        %p325 = pneg %p197
      $region18: #{rnng_cell_forward.1} parent=11 // pred_check_branch
        %327 = sbr.rel (%p325) target = $region20
      $region19: #{rnng_cell_forward.1} parent=11 // pred_region
        _
      $region20: #{rnng_cell_forward.1} parent=11 // pred_fallthru
        _
      // Predicated region
      $region21: #{rnng_cell_forward.1} parent=11 // pred_check
        %p328 = pneg %p218
      $region22: #{rnng_cell_forward.1} parent=11 // pred_check_branch
        %330 = sbr.rel (%p328) target = $region24
      $region23: #{rnng_cell_forward.1} parent=11 // pred_region
        _
      $region24: #{rnng_cell_forward.1} parent=11 // pred_fallthru
        _
      // Predicated region
      $region25: #{rnng_cell_forward.1} parent=11 // pred_check
        %p331 = pneg %p239
      $region26: #{rnng_cell_forward.1} parent=11 // pred_check_branch
        %333 = sbr.rel (%p331) target = $region28
      $region27: #{rnng_cell_forward.1} parent=11 // pred_region
        _
      $region28: #{rnng_cell_forward.1} parent=11 // pred_fallthru
        _
    $region12: #{rnng_cell_forward.1} parent=5 // pred_fallthru
      _
    %p334 = scmp.lt.s32.totalorder %s25, 6
    // Predicated region
    $region29: #{rnng_cell_forward.1} parent=5 // pred_check
      %p335 = pneg %p334
    $region30: #{rnng_cell_forward.1} parent=5 // pred_check_branch
      %337 = sbr.rel (%p335) target = $region32
    $region31: #{rnng_cell_forward.1} parent=5 // pred_region
      // Predicated region
      $region33: #{rnng_cell_forward.1} parent=31 // pred_check
        %p338 = pneg %p45
      $region34: #{rnng_cell_forward.1} parent=31 // pred_check_branch
        %340 = sbr.rel (%p338) target = $region36
      $region35: #{rnng_cell_forward.1} parent=31 // pred_region
        %p341 = scmp.lt.s32.totalorder %s25, 5
        %s342 = scalar_select %p341, %s25, 5
        %s343 = smul.addr %s342, 8
        %s344 = scalar_lea.vmem %s1, %s343
      $region36: #{rnng_cell_forward.1} parent=31 // pred_fallthru
        _
      // Predicated region
      $region37: #{rnng_cell_forward.1} parent=31 // pred_check
        %p345 = pneg %p71
      $region38: #{rnng_cell_forward.1} parent=31 // pred_check_branch
        %347 = sbr.rel (%p345) target = $region40
      $region39: #{rnng_cell_forward.1} parent=31 // pred_region
        %p348 = scmp.lt.s32.totalorder %s25, 5
        %s349 = scalar_select %p348, %s25, 5
        %s350 = smul.addr %s349, 8
        %s351 = scalar_lea.vmem %s2, %s350
      $region40: #{rnng_cell_forward.1} parent=31 // pred_fallthru
        _
      // Predicated region
      $region41: #{rnng_cell_forward.1} parent=31 // pred_check
        %p352 = pneg %p97
      $region42: #{rnng_cell_forward.1} parent=31 // pred_check_branch
        %354 = sbr.rel (%p352) target = $region44
      $region43: #{rnng_cell_forward.1} parent=31 // pred_region
        %p355 = scmp.lt.s32.totalorder %s25, 5
        %s356 = scalar_select %p355, %s25, 5
        %s357 = smul.addr %s356, 8
        %s358 = scalar_lea.vmem %s3, %s357
      $region44: #{rnng_cell_forward.1} parent=31 // pred_fallthru
        _
      // Predicated region
      $region45: #{rnng_cell_forward.1} parent=31 // pred_check
        %p359 = pneg %p123
      $region46: #{rnng_cell_forward.1} parent=31 // pred_check_branch
        %361 = sbr.rel (%p359) target = $region48
      $region47: #{rnng_cell_forward.1} parent=31 // pred_region
        %p362 = scmp.lt.s32.totalorder %s25, 5
        %s363 = scalar_select %p362, %s25, 5
        %s364 = smul.addr %s363, 8
        %s365 = smul.addr %s364, 4
        %s366 = scalar_lea.vmem %s4, %s365
      $region48: #{rnng_cell_forward.1} parent=31 // pred_fallthru
        _
      // Predicated region
      $region49: #{rnng_cell_forward.1} parent=31 // pred_check
        %p367 = pneg %p149
      $region50: #{rnng_cell_forward.1} parent=31 // pred_check_branch
        %369 = sbr.rel (%p367) target = $region52
      $region51: #{rnng_cell_forward.1} parent=31 // pred_region
        %p370 = scmp.lt.s32.totalorder %s25, 5
        %s371 = scalar_select %p370, %s25, 5
        %s372 = smul.addr %s371, 8
        %s373 = scalar_lea.vmem %s5, %s372
      $region52: #{rnng_cell_forward.1} parent=31 // pred_fallthru
        _
    $region32: #{rnng_cell_forward.1} parent=5 // pred_fallthru
      _
    %p374 = scmp.le.s32.totalorder 1, %s25
    %p375 = scmp.lt.s32.totalorder %s25, 7
    %p376 = pnand %p374, %p375
    %p377 = pneg %p376
    // Predicated region
    $region53: #{rnng_cell_forward.1} parent=5 // pred_check
      _
    $region54: #{rnng_cell_forward.1} parent=5 // pred_check_branch
      %379 = sbr.rel (%p376) target = $region56
    $region55: #{rnng_cell_forward.1} parent=5 // pred_region
      %s380 = ssub.s32 %s25, 1
      %p381 = scmp.lt.s32.totalorder %s30, 5
      %s382 = scalar_select %p381, %s30, 5
      %s383 = smul.addr %s382, 8
      %s384 = scalar_lea.vmem %s1, %s383
      %p385 = pneg %p51
      %p386 = pneg %p48
      %p387 = scmp.lt.s32.totalorder %s30, 5
      %s388 = scalar_select %p387, %s30, 5
      %s389 = smul.addr %s388, 8
      %s390 = scalar_lea.vmem %s2, %s389
      %p391 = pneg %p77
      %p392 = pneg %p74
      %p393 = scmp.lt.s32.totalorder %s30, 5
      %s394 = scalar_select %p393, %s30, 5
      %s395 = smul.addr %s394, 8
      %s396 = scalar_lea.vmem %s3, %s395
      %p397 = pneg %p103
      %p398 = pneg %p100
      %p399 = scmp.lt.s32.totalorder %s30, 5
      %s400 = scalar_select %p399, %s30, 5
      %s401 = smul.addr %s400, 8
      %s402 = smul.addr %s401, 4
      %s403 = scalar_lea.vmem %s4, %s402
      %p404 = pneg %p129
      %p405 = pneg %p126
      %p406 = scmp.lt.s32.totalorder %s30, 5
      %s407 = scalar_select %p406, %s30, 5
      %s408 = smul.addr %s407, 8
      %s409 = scalar_lea.vmem %s5, %s408
      %p410 = pneg %p155
      %p411 = pneg %p152
      %p412 = pneg %p176
      %p413 = pneg %p173
      %p414 = pneg %p197
      %p415 = pneg %p194
      %p416 = pneg %p218
      %p417 = pneg %p215
      %p418 = pneg %p239
      %p419 = pneg %p236
      %p420 = pneg %p265
      %p421 = pneg %p262
      %p422 = scmp.lt.s32.totalorder %s30, 5
      %s423 = scalar_select %p422, %s30, 5
      %s424 = smul.addr %s423, 8
      %s425 = scalar_lea.vmem %s10, %s424
      %p426 = pneg %p286
      %p427 = pneg %p283
      %p428 = pneg %p307
      %p429 = pneg %p304
      %p430 = scmp.lt.s32.totalorder %s30, 5
      %s431 = scalar_select %p430, %s30, 5
      %s432 = smul.addr %s431, 8
      %s433 = scalar_lea.vmem %s1, %s432
      %p434 = scmp.lt.s32.totalorder %s30, 5
      %s435 = scalar_select %p434, %s30, 5
      %s436 = smul.addr %s435, 8
      %s437 = scalar_lea.vmem %s2, %s436
      %p438 = scmp.lt.s32.totalorder %s30, 5
      %s439 = scalar_select %p438, %s30, 5
      %s440 = smul.addr %s439, 8
      %s441 = scalar_lea.vmem %s3, %s440
      %p442 = scmp.lt.s32.totalorder %s30, 5
      %s443 = scalar_select %p442, %s30, 5
      %s444 = smul.addr %s443, 8
      %s445 = smul.addr %s444, 4
      %s446 = scalar_lea.vmem %s4, %s445
      %p447 = scmp.lt.s32.totalorder %s30, 5
      %s448 = scalar_select %p447, %s30, 5
      %s449 = smul.addr %s448, 8
      %s450 = scalar_lea.vmem %s5, %s449
      %p451 = scmp.lt.s32.totalorder %s30, 5
      %s452 = scalar_select %p451, %s30, 5
      %s453 = smul.addr %s452, 8
      %s454 = scalar_lea.vmem %s10, %s453
      %p456 = scmp.eq.s32.totalorder %s30, 0
      // Predicated region
      $region57: #{rnng_cell_forward.1} parent=55 // pred_check
        %p457 = pneg %p456
      $region58: #{rnng_cell_forward.1} parent=55 // pred_check_branch
        %459 = sbr.rel (%p457) target = $region60
      $region59: #{rnng_cell_forward.1} parent=55 // pred_region
        %v460 = vld [vmem:[%s7] sm:$0xff]
        %v461 = vld [vmem:[%s7 + $0x8] sm:$0xff]
        %vm462 = vcmask 261120
        %463 = vst.msk [vmem:[%s11] sm:$0xff] %vm462, %v460
        %464 = vst.msk [vmem:[%s11 + $0x8] sm:$0xff] %vm462, %v461
        %v465 = vld [vmem:[%s8] sm:$0xff]
        %v466 = vld [vmem:[%s8 + $0x8] sm:$0xff]
        %467 = vst.msk [vmem:[%s12] sm:$0xff] %vm462, %v465
        %468 = vst.msk [vmem:[%s12 + $0x8] sm:$0xff] %vm462, %v466
        %469 = vst.msk [vmem:[#allocation2] sm:$0xff] %vm462, 0.0
      $region60: #{rnng_cell_forward.1} parent=55 // pred_fallthru
        _
      %v470 = vld [vmem:[%s433] sm:$0xff]
      %v471 = vld [vmem:[%s437] sm:$0xff]
      %vm472 = vcmp.gt.s32.totalorder %v471, 0
      %v473 = vsel %vm472, %v471, 0
      %vm474 = vcmp.lt.s32.totalorder %v473, 7
      %v475 = vsel %vm474, %v473, 7
      %v476 = vlaneseq
      %v477 = vshrl.u32 %v476, 7
      %v478 = vmul.u32 %v477, 8
      %v479 = vadd.s32 %v478, %v475
      %v480 = vlaneseq
      %v481 = vand.u32 %v480, 127
      %482 = vset.pattern.permute.xlu0 0
      %483 = vperm.xlu0 %482, %v479
      %v484 = vpop.permute.xlu0 %483
      %vm485 = vcmp.eq.s32.totalorder %v481, %v484
      %v486 = vsel %vm485, 1, 0
      %v487 = vcvt.s32.f32 %v486
      %v488 = vld [vmem:[%s6] sm:$0xff]
      %v489 = vld [vmem:[%s6 + $0x8] sm:$0xff]
      %v490 = vld [vmem:[%s6 + $0x10] sm:$0xff]
      %v491 = vld [vmem:[%s6 + $0x18] sm:$0xff]
      %v492 = vld [vmem:[%s6 + $0x20] sm:$0xff]
      %v493 = vld [vmem:[%s6 + $0x28] sm:$0xff]
      %v494 = vld [vmem:[%s6 + $0x30] sm:$0xff]
      %v495 = vld [vmem:[%s6 + $0x38] sm:$0xff]
      %vm496 = vcmask 523264
      %v498 = vsel %vm496, %v487, 0
      %500 = vmatprep.subr.mxu0 0.0
      %501 = vmatpush1.msra.mxu0 %v488
      %502 = vmatprep.subr.mxu0 0.0
      %503 = vmatpush1.msra.mxu0 %v489
      %504 = vmatprep.subr.mxu0 0.0
      %505 = vmatpush1.msra.mxu0 %v490
      %506 = vmatprep.subr.mxu0 0.0
      %507 = vmatpush1.msra.mxu0 %v491
      %508 = vmatprep.subr.mxu0 0.0
      %509 = vmatpush1.msra.mxu0 %v492
      %510 = vmatprep.subr.mxu0 0.0
      %511 = vmatpush1.msra.mxu0 %v493
      %512 = vmatprep.subr.mxu0 0.0
      %513 = vmatpush1.msra.mxu0 %v494
      %514 = vmatprep.subr.mxu0 0.0
      %515 = vmatpush1.msra.mxu0 %v495
      %516 = vmatprep.subr.mxu0 0.0
      %517 = vmatpush1.msra.mxu0 0.0
      %518 = vmatprep.subr.mxu0 0.0
      %519 = vmatpush1.msra.mxu0 0.0
      %520 = vmatprep.subr.mxu0 0.0
      %521 = vmatpush1.msra.mxu0 0.0
      %522 = vmatprep.subr.mxu0 0.0
      %523 = vmatpush1.msra.mxu0 0.0
      %524 = vmatprep.subr.mxu0 0.0
      %525 = vmatpush1.msra.mxu0 0.0
      %526 = vmatprep.subr.mxu0 0.0
      %527 = vmatpush1.msra.mxu0 0.0
      %528 = vmatprep.subr.mxu0 0.0
      %529 = vmatpush1.msra.mxu0 0.0
      %530 = vmatprep.subr.mxu0 0.0
      %531 = vmatpush1.msra.mxu0 0.0
      %532 = vmatprep.subr.mxu0 0.0
      %533 = vmatpush1.msra.mxu0 0.0
      %534 = vmatprep.subr.mxu0 0.0
      %535 = vmatpush1.msra.mxu0 0.0
      %536 = vmatprep.subr.mxu0 0.0
      %537 = vmatpush1.msra.mxu0 0.0
      %538 = vmatprep.subr.mxu0 0.0
      %539 = vmatpush1.msra.mxu0 0.0
      %540 = vmatprep.subr.mxu0 0.0
      %541 = vmatpush1.msra.mxu0 0.0
      %542 = vmatprep.subr.mxu0 0.0
      %543 = vmatpush1.msra.mxu0 0.0
      %544 = vmatprep.subr.mxu0 0.0
      %545 = vmatpush1.msra.mxu0 0.0
      %546 = vmatprep.subr.mxu0 0.0
      %547 = vmatpush1.msra.mxu0 0.0
      %548 = vmatprep.subr.mxu0 0.0
      %549 = vmatpush1.msra.mxu0 0.0
      %550 = vmatprep.subr.mxu0 0.0
      %551 = vmatpush1.msra.mxu0 0.0
      %552 = vmatprep.subr.mxu0 0.0
      %553 = vmatpush1.msra.mxu0 0.0
      %554 = vmatprep.subr.mxu0 0.0
      %555 = vmatpush1.msra.mxu0 0.0
      %556 = vmatprep.subr.mxu0 0.0
      %557 = vmatpush1.msra.mxu0 0.0
      %558 = vmatprep.subr.mxu0 0.0
      %559 = vmatpush1.msra.mxu0 0.0
      %560 = vmatprep.subr.mxu0 0.0
      %561 = vmatpush1.msra.mxu0 0.0
      %562 = vmatprep.subr.mxu0 0.0
      %563 = vmatpush1.msra.mxu0 0.0
      %564 = vmatprep.mubr.f32.mxu0 0.0
      %565 = vmatmul.mubr.f32.gmra.mrb[0].mxu0 %v498
      %v566 = vpop.f32.mrb[0].mxu0
      %v567 = vadd.f32 0.0, %v566
      %v568 = vpop.f32.mrb[0].mxu0
      %569 = vdwg.mxu0
      %v570 = vsub.s32 %v470, 3
      %vm571 = vcmp.gt.s32.totalorder %v570, 0
      %v572 = vsel %vm571, %v570, 0
      %vm573 = vcmp.lt.s32.totalorder %v572, 9
      %v574 = vsel %vm573, %v572, 9
      %575 = vset.pattern.permute.xlu0 0
      %576 = vperm.xlu0 %575, %v574
      %v577 = vpop.permute.xlu0 %576
      %vm578 = vcmp.eq.s32.totalorder %v481, %v577
      %v579 = vsel %vm578, 1, 0
      %v580 = vcvt.s32.f32 %v579
      %v581 = vpack.c.bf16 %v580, %v580
      %v582 = vld [vmem:[%s9 + $0x6c] sm:$0xf]
      %v583 = vld [vmem:[%s9 + $0x70] sm:$0xf]
      %v586 = vunpack.c.l.b16 %v582
      %v587 = vunpack.c.l.b16 %v583
      %v588 = vpack.c.b16 %v587, %v586
      %vm590 = vcmask 130048
      %v592 = vsel %vm590, %v581, 0
      %594 = vmatprep.subr.bf16.mxu0 0
      %595 = vmatpush1.bf16.msra.mxu0 %v588
      %596 = vmatprep.subr.bf16.mxu0 0
      %597 = vmatpush1.bf16.msra.mxu0 0
      %598 = vmatprep.subr.bf16.mxu0 0
      %599 = vmatpush1.bf16.msra.mxu0 0
      %600 = vmatprep.subr.bf16.mxu0 0
      %601 = vmatpush1.bf16.msra.mxu0 0
      %602 = vmatprep.subr.bf16.mxu0 0
      %603 = vmatpush1.bf16.msra.mxu0 0
      %604 = vmatprep.subr.bf16.mxu0 0
      %605 = vmatpush1.bf16.msra.mxu0 0
      %606 = vmatprep.subr.bf16.mxu0 0
      %607 = vmatpush1.bf16.msra.mxu0 0
      %608 = vmatprep.subr.bf16.mxu0 0
      %609 = vmatpush1.bf16.msra.mxu0 0
      %610 = vmatprep.subr.bf16.mxu0 0
      %611 = vmatpush1.bf16.msra.mxu0 0
      %612 = vmatprep.subr.bf16.mxu0 0
      %613 = vmatpush1.bf16.msra.mxu0 0
      %614 = vmatprep.subr.bf16.mxu0 0
      %615 = vmatpush1.bf16.msra.mxu0 0
      %616 = vmatprep.subr.bf16.mxu0 0
      %617 = vmatpush1.bf16.msra.mxu0 0
      %618 = vmatprep.subr.bf16.mxu0 0
      %619 = vmatpush1.bf16.msra.mxu0 0
      %620 = vmatprep.subr.bf16.mxu0 0
      %621 = vmatpush1.bf16.msra.mxu0 0
      %622 = vmatprep.subr.bf16.mxu0 0
      %623 = vmatpush1.bf16.msra.mxu0 0
      %624 = vmatprep.subr.bf16.mxu0 0
      %625 = vmatpush1.bf16.msra.mxu0 0
      %626 = vmatprep.mubr.bf16.mxu0 0
      %627 = vmatmul.mubr.bf16.gmra.mrb[0].mxu0 %v592
      %v628 = vpop.f32.mrb[0].mxu0
      %v629 = vadd.f32 0.0, %v628
      %v630 = vpop.f32.mrb[0].mxu0
      %v631 = vpop.f32.mrb[0].mxu0
      %v632 = vpop.f32.mrb[0].mxu0
      %633 = vdwg.mxu0
      %vm634 = vcmp.eq.s32.totalorder %v470, 1
      %v635 = vsel %vm634, 1, 0
      %636 = vset.pattern.permute.xlu0 0
      %637 = vperm.xlu0 %636, %v635
      %v638 = vpop.permute.xlu0 %637
      %vm639 = vcmp.eq.s32.totalorder %v638, 1
      %v640 = vsel %vm639, %v567, 0.0
      %vm641 = vcmp.ge.s32.totalorder %v470, 3
      %v642 = vsel %vm641, 1, 0
      %643 = vset.pattern.permute.xlu0 0
      %644 = vperm.xlu0 %643, %v642
      %v645 = vpop.permute.xlu0 %644
      %vm646 = vcmp.eq.s32.totalorder %v645, 1
      %v647 = vsel %vm646, %v629, %v640
      %s648 = sld [smem:[#allocation4 + %s30]]
      %p649 = scmp.eq.s32.totalorder %s648, 1
      // Predicated region
      $region61: #{rnng_cell_forward.1} parent=55 // pred_check
        %p650 = pneg %p649
      $region62: #{rnng_cell_forward.1} parent=55 // pred_check_branch
        %652 = sbr.rel (%p650) target = $region64
      $region63: #{rnng_cell_forward.1} parent=55 // pred_region
        %v653 = vld [vmem:[%s450] sm:$0xff]
        %v654 = vadd.s32 %v653, 2
        %v655 = vld [vmem:[%s441] sm:$0xff]
        %vm656 = vcmp.gt.s32.totalorder %v655, 0
        %v657 = vsel %vm656, %v655, 0
        %vm658 = vcmp.lt.s32.totalorder %v657, 9
        %v659 = vsel %vm658, %v657, 9
        %660 = vset.pattern.permute.xlu0 0
        %661 = vperm.xlu0 %660, %v659
        %v662 = vpop.permute.xlu0 %661
        %vm663 = vcmp.eq.s32.totalorder %v481, %v662
        %v664 = vsel %vm663, 1, 0
        %v665 = vcvt.s32.f32 %v664
        %v666 = vpack.c.bf16 %v665, %v665
        %v667 = vld [vmem:[%s9 + $0x6c] sm:$0xf]
        %v668 = vld [vmem:[%s9 + $0x70] sm:$0xf]
        %v671 = vunpack.c.l.b16 %v667
        %v672 = vunpack.c.l.b16 %v668
        %v673 = vpack.c.b16 %v672, %v671
        %v676 = vsel %vm590, %v666, 0
        %678 = vmatprep.subr.bf16.mxu0 0
        %679 = vmatpush1.bf16.msra.mxu0 %v673
        %680 = vmatprep.subr.bf16.mxu0 0
        %681 = vmatpush1.bf16.msra.mxu0 0
        %682 = vmatprep.subr.bf16.mxu0 0
        %683 = vmatpush1.bf16.msra.mxu0 0
        %684 = vmatprep.subr.bf16.mxu0 0
        %685 = vmatpush1.bf16.msra.mxu0 0
        %686 = vmatprep.subr.bf16.mxu0 0
        %687 = vmatpush1.bf16.msra.mxu0 0
        %688 = vmatprep.subr.bf16.mxu0 0
        %689 = vmatpush1.bf16.msra.mxu0 0
        %690 = vmatprep.subr.bf16.mxu0 0
        %691 = vmatpush1.bf16.msra.mxu0 0
        %692 = vmatprep.subr.bf16.mxu0 0
        %693 = vmatpush1.bf16.msra.mxu0 0
        %694 = vmatprep.subr.bf16.mxu0 0
        %695 = vmatpush1.bf16.msra.mxu0 0
        %696 = vmatprep.subr.bf16.mxu0 0
        %697 = vmatpush1.bf16.msra.mxu0 0
        %698 = vmatprep.subr.bf16.mxu0 0
        %699 = vmatpush1.bf16.msra.mxu0 0
        %700 = vmatprep.subr.bf16.mxu0 0
        %701 = vmatpush1.bf16.msra.mxu0 0
        %702 = vmatprep.subr.bf16.mxu0 0
        %703 = vmatpush1.bf16.msra.mxu0 0
        %704 = vmatprep.subr.bf16.mxu0 0
        %705 = vmatpush1.bf16.msra.mxu0 0
        %706 = vmatprep.subr.bf16.mxu0 0
        %707 = vmatpush1.bf16.msra.mxu0 0
        %708 = vmatprep.subr.bf16.mxu0 0
        %709 = vmatpush1.bf16.msra.mxu0 0
        %710 = vmatprep.mubr.bf16.mxu0 0
        %711 = vmatmul.mubr.bf16.gmra.mrb[0].mxu0 %v676
        %v712 = vpop.f32.mrb[0].mxu0
        %v713 = vadd.f32 0.0, %v712
        %v714 = vpop.f32.mrb[0].mxu0
        %v715 = vpop.f32.mrb[0].mxu0
        %v716 = vpop.f32.mrb[0].mxu0
        %717 = vdwg.mxu0
        %v718 = vld [vmem:[%s446] sm:$0xf]
        %v719 = vld [vmem:[%s446 + $0x4] sm:$0xf]
        %v720 = vld [vmem:[%s446 + $0x8] sm:$0xf]
        %v721 = vld [vmem:[%s446 + $0xc] sm:$0xf]
        %v722 = vld [vmem:[%s446 + $0x10] sm:$0xf]
        %v723 = vld [vmem:[%s446 + $0x14] sm:$0xf]
        %v724 = vld [vmem:[%s446 + $0x18] sm:$0xf]
        %v725 = vld [vmem:[%s446 + $0x1c] sm:$0xf]
        %vm726 = vcmp.eq.s32.totalorder %v654, 2
        %v727 = vsel %vm726, 1, 0
        %728 = vset.pattern.permute.xlu0 0
        %729 = vperm.xlu0 %728, %v727
        %v730 = vpop.permute.xlu0 %729
        %vm731 = vcmp.eq.s32.totalorder %v730, 1
        %v740 = vrot.slane %v719, 7
        %vm741 = vcmask 1041409
        %v742 = vsel %vm741, %v740, %v718
        %v743 = vrot.slane %v720, 6
        %vm744 = vcmask 1042434
        %v745 = vsel %vm744, %v743, %v742
        %v746 = vrot.slane %v721, 5
        %vm747 = vcmask 1043459
        %v748 = vsel %vm747, %v746, %v745
        %v749 = vrot.slane %v722, 4
        %vm750 = vcmask 1044484
        %v751 = vsel %vm750, %v749, %v748
        %v752 = vrot.slane %v723, 3
        %vm753 = vcmask 1045509
        %v754 = vsel %vm753, %v752, %v751
        %v755 = vrot.slane %v724, 2
        %vm756 = vcmask 1046534
        %v757 = vsel %vm756, %v755, %v754
        %v758 = vrot.slane %v725, 1
        %vm759 = vcmask 1047559
        %v760 = vsel %vm759, %v758, %v757
        %v762 = vsel %vm731, %v713, %v760
        %vm763 = vcmp.eq.s32.totalorder %v654, 3
        %v764 = vsel %vm763, 1, 0
        %765 = vset.pattern.permute.xlu0 0
        %766 = vperm.xlu0 %765, %v764
        %v767 = vpop.permute.xlu0 %766
        %vm768 = vcmp.eq.s32.totalorder %v767, 1
        %v769 = vrot.slane %v718, 1
        %v770 = vsel %vm741, %v719, %v769
        %v771 = vrot.slane %v720, 7
        %v772 = vsel %vm744, %v771, %v770
        %v773 = vrot.slane %v721, 6
        %v774 = vsel %vm747, %v773, %v772
        %v775 = vrot.slane %v722, 5
        %v776 = vsel %vm750, %v775, %v774
        %v777 = vrot.slane %v723, 4
        %v778 = vsel %vm753, %v777, %v776
        %v779 = vrot.slane %v724, 3
        %v780 = vsel %vm756, %v779, %v778
        %v781 = vrot.slane %v725, 2
        %v782 = vsel %vm759, %v781, %v780
        %v784 = vsel %vm768, %v713, %v782
        %vm785 = vcmp.eq.s32.totalorder %v654, 4
        %v786 = vsel %vm785, 1, 0
        %787 = vset.pattern.permute.xlu0 0
        %788 = vperm.xlu0 %787, %v786
        %v789 = vpop.permute.xlu0 %788
        %vm790 = vcmp.eq.s32.totalorder %v789, 1
        %v791 = vrot.slane %v718, 2
        %v792 = vrot.slane %v719, 1
        %v793 = vsel %vm741, %v792, %v791
        %v794 = vsel %vm744, %v720, %v793
        %v795 = vrot.slane %v721, 7
        %v796 = vsel %vm747, %v795, %v794
        %v797 = vrot.slane %v722, 6
        %v798 = vsel %vm750, %v797, %v796
        %v799 = vrot.slane %v723, 5
        %v800 = vsel %vm753, %v799, %v798
        %v801 = vrot.slane %v724, 4
        %v802 = vsel %vm756, %v801, %v800
        %v803 = vrot.slane %v725, 3
        %v804 = vsel %vm759, %v803, %v802
        %v806 = vsel %vm790, %v713, %v804
        %vm807 = vcmp.eq.s32.totalorder %v654, 5
        %v808 = vsel %vm807, 1, 0
        %809 = vset.pattern.permute.xlu0 0
        %810 = vperm.xlu0 %809, %v808
        %v811 = vpop.permute.xlu0 %810
        %vm812 = vcmp.eq.s32.totalorder %v811, 1
        %v813 = vrot.slane %v718, 3
        %v814 = vrot.slane %v719, 2
        %v815 = vsel %vm741, %v814, %v813
        %v816 = vrot.slane %v720, 1
        %v817 = vsel %vm744, %v816, %v815
        %v818 = vsel %vm747, %v721, %v817
        %v819 = vrot.slane %v722, 7
        %v820 = vsel %vm750, %v819, %v818
        %v821 = vrot.slane %v723, 6
        %v822 = vsel %vm753, %v821, %v820
        %v823 = vrot.slane %v724, 5
        %v824 = vsel %vm756, %v823, %v822
        %v825 = vrot.slane %v725, 4
        %v826 = vsel %vm759, %v825, %v824
        %v828 = vsel %vm812, %v713, %v826
        %vm829 = vcmp.eq.s32.totalorder %v654, 6
        %v830 = vsel %vm829, 1, 0
        %831 = vset.pattern.permute.xlu0 0
        %832 = vperm.xlu0 %831, %v830
        %v833 = vpop.permute.xlu0 %832
        %vm834 = vcmp.eq.s32.totalorder %v833, 1
        %v835 = vsel %vm834, %v713, 0.0
        %v836 = vpack.c.bf16 %v762, %v713
        %v837 = vpack.c.bf16 %v806, %v784
        %v838 = vpack.c.bf16 %v835, %v828
        %v839 = vld [vmem:[%s9 + $0x20] sm:$0xf]
        %v840 = vld [vmem:[%s9 + $0x24] sm:$0xf]
        %v841 = vld [vmem:[%s9 + $0x28] sm:$0xf]
        %v842 = vld [vmem:[%s9 + $0x2c] sm:$0xf]
        %v843 = vld [vmem:[%s9 + $0x40] sm:$0x1]
        %v844 = vunpack.c.l.bf16 %v843
        %v845 = vlaneseq
        %v846 = vshrl.u32 %v845, 7
        %v847 = vsub.s32 0, %v846
        %v848 = vrot.slane %v844, %v847
        %v853 = vunpack.c.l.b16 %v839
        %v854 = vunpack.c.l.b16 %v840
        %v855 = vunpack.c.l.b16 %v841
        %v856 = vunpack.c.l.b16 %v842
        %v857 = vpack.c.b16 %v854, %v853
        %v858 = vpack.c.b16 %v856, %v855
        %vm861 = vcmask 261120
        %v863 = vsel %vm861, %v836, 0
        %v866 = vsel %vm861, %v837, 0
        %v869 = vsel %vm861, %v838, 0
        %871 = vmatprep.subr.bf16.mxu0 0
        %872 = vmatpush1.bf16.msra.mxu0 %v857
        %873 = vmatprep.subr.bf16.mxu0 0
        %874 = vmatpush1.bf16.msra.mxu0 %v858
        %875 = vmatprep.subr.bf16.mxu0 0
        %876 = vmatpush1.bf16.msra.mxu0 0
        %877 = vmatprep.subr.bf16.mxu0 0
        %878 = vmatpush1.bf16.msra.mxu0 0
        %879 = vmatprep.subr.bf16.mxu0 0
        %880 = vmatpush1.bf16.msra.mxu0 0
        %881 = vmatprep.subr.bf16.mxu0 0
        %882 = vmatpush1.bf16.msra.mxu0 0
        %883 = vmatprep.subr.bf16.mxu0 0
        %884 = vmatpush1.bf16.msra.mxu0 0
        %885 = vmatprep.subr.bf16.mxu0 0
        %886 = vmatpush1.bf16.msra.mxu0 0
        %887 = vmatprep.subr.bf16.mxu0 0
        %888 = vmatpush1.bf16.msra.mxu0 0
        %889 = vmatprep.subr.bf16.mxu0 0
        %890 = vmatpush1.bf16.msra.mxu0 0
        %891 = vmatprep.subr.bf16.mxu0 0
        %892 = vmatpush1.bf16.msra.mxu0 0
        %893 = vmatprep.subr.bf16.mxu0 0
        %894 = vmatpush1.bf16.msra.mxu0 0
        %895 = vmatprep.subr.bf16.mxu0 0
        %896 = vmatpush1.bf16.msra.mxu0 0
        %897 = vmatprep.subr.bf16.mxu0 0
        %898 = vmatpush1.bf16.msra.mxu0 0
        %899 = vmatprep.subr.bf16.mxu0 0
        %900 = vmatpush1.bf16.msra.mxu0 0
        %901 = vmatprep.subr.bf16.mxu0 0
        %902 = vmatpush1.bf16.msra.mxu0 0
        %903 = vmatprep.mubr.bf16.mxu0 0
        %904 = vmatmul.mubr.bf16.gmra.mrb[0].mxu0 %v863
        %v905 = vpop.f32.mrb[0].mxu0
        %v906 = vadd.f32 %v848, %v905
        %v907 = vpop.f32.mrb[0].mxu0
        %v908 = vpop.f32.mrb[0].mxu0
        %v909 = vadd.f32 %v848, %v908
        %v910 = vpop.f32.mrb[0].mxu0
        %911 = vmatprep.mubr.bf16.mxu0 0
        %912 = vmatmul.mubr.bf16.gmra.mrb[0].mxu0 %v866
        %v913 = vpop.f32.mrb[0].mxu0
        %v914 = vadd.f32 %v848, %v913
        %v915 = vpop.f32.mrb[0].mxu0
        %v916 = vpop.f32.mrb[0].mxu0
        %v917 = vadd.f32 %v848, %v916
        %v918 = vpop.f32.mrb[0].mxu0
        %919 = vmatprep.mubr.bf16.mxu0 0
        %920 = vmatmul.mubr.bf16.gmra.mrb[0].mxu0 %v869
        %v921 = vpop.f32.mrb[0].mxu0
        %v922 = vadd.f32 %v848, %v921
        %v923 = vpop.f32.mrb[0].mxu0
        %v924 = vpop.f32.mrb[0].mxu0
        %v925 = vpop.f32.mrb[0].mxu0
        %926 = vdwg.mxu0
        %v927 = vld [vmem:[%s9 + $0x30] sm:$0xf]
        %v928 = vld [vmem:[%s9 + $0x34] sm:$0xf]
        %v929 = vld [vmem:[%s9 + $0x38] sm:$0xf]
        %v930 = vld [vmem:[%s9 + $0x3c] sm:$0xf]
        %v931 = vld [vmem:[%s9 + $0x44] sm:$0x1]
        %v932 = vunpack.c.l.bf16 %v931
        %v933 = vlaneseq
        %v934 = vshrl.u32 %v933, 7
        %v935 = vsub.s32 0, %v934
        %v936 = vrot.slane %v932, %v935
        %v941 = vunpack.c.l.b16 %v927
        %v942 = vunpack.c.l.b16 %v928
        %v943 = vunpack.c.l.b16 %v929
        %v944 = vunpack.c.l.b16 %v930
        %v945 = vpack.c.b16 %v942, %v941
        %v946 = vpack.c.b16 %v944, %v943
        %949 = vmatprep.subr.bf16.mxu0 0
        %950 = vmatpush1.bf16.msra.mxu0 %v945
        %951 = vmatprep.subr.bf16.mxu0 0
        %952 = vmatpush1.bf16.msra.mxu0 %v946
        %953 = vmatprep.subr.bf16.mxu0 0
        %954 = vmatpush1.bf16.msra.mxu0 0
        %955 = vmatprep.subr.bf16.mxu0 0
        %956 = vmatpush1.bf16.msra.mxu0 0
        %957 = vmatprep.subr.bf16.mxu0 0
        %958 = vmatpush1.bf16.msra.mxu0 0
        %959 = vmatprep.subr.bf16.mxu0 0
        %960 = vmatpush1.bf16.msra.mxu0 0
        %961 = vmatprep.subr.bf16.mxu0 0
        %962 = vmatpush1.bf16.msra.mxu0 0
        %963 = vmatprep.subr.bf16.mxu0 0
        %964 = vmatpush1.bf16.msra.mxu0 0
        %965 = vmatprep.subr.bf16.mxu0 0
        %966 = vmatpush1.bf16.msra.mxu0 0
        %967 = vmatprep.subr.bf16.mxu0 0
        %968 = vmatpush1.bf16.msra.mxu0 0
        %969 = vmatprep.subr.bf16.mxu0 0
        %970 = vmatpush1.bf16.msra.mxu0 0
        %971 = vmatprep.subr.bf16.mxu0 0
        %972 = vmatpush1.bf16.msra.mxu0 0
        %973 = vmatprep.subr.bf16.mxu0 0
        %974 = vmatpush1.bf16.msra.mxu0 0
        %975 = vmatprep.subr.bf16.mxu0 0
        %976 = vmatpush1.bf16.msra.mxu0 0
        %977 = vmatprep.subr.bf16.mxu0 0
        %978 = vmatpush1.bf16.msra.mxu0 0
        %979 = vmatprep.subr.bf16.mxu0 0
        %980 = vmatpush1.bf16.msra.mxu0 0
        %981 = vmatprep.mubr.bf16.mxu0 0
        %982 = vmatmul.mubr.bf16.gmra.mrb[0].mxu0 %v863
        %v983 = vpop.f32.mrb[0].mxu0
        %v984 = vpop.f32.mrb[0].mxu0
        %v985 = vpop.f32.mrb[0].mxu0
        %v986 = vadd.f32 %v936, %v985
        %v987 = vpop.f32.mrb[0].mxu0
        %988 = vmatprep.mubr.bf16.mxu0 0
        %989 = vmatmul.mubr.bf16.gmra.mrb[0].mxu0 %v866
        %v990 = vpop.f32.mrb[0].mxu0
        %v991 = vadd.f32 %v936, %v990
        %v992 = vpop.f32.mrb[0].mxu0
        %v993 = vpop.f32.mrb[0].mxu0
        %v994 = vadd.f32 %v936, %v993
        %v995 = vpop.f32.mrb[0].mxu0
        %996 = vmatprep.mubr.bf16.mxu0 0
        %997 = vmatmul.mubr.bf16.gmra.mrb[0].mxu0 %v869
        %v998 = vpop.f32.mrb[0].mxu0
        %v999 = vadd.f32 %v936, %v998
        %v1000 = vpop.f32.mrb[0].mxu0
        %v1001 = vpop.f32.mrb[0].mxu0
        %v1002 = vadd.f32 %v936, %v1001
        %v1003 = vpop.f32.mrb[0].mxu0
        %1004 = vdwg.mxu0
        %v1005 = vld [vmem:[%s9] sm:$0xf]
        %v1006 = vld [vmem:[%s9 + $0x4] sm:$0xf]
        %v1007 = vld [vmem:[%s9 + $0x8] sm:$0xf]
        %v1008 = vld [vmem:[%s9 + $0xc] sm:$0xf]
        %v1009 = vld [vmem:[%s9 + $0x10] sm:$0xf]
        %v1010 = vld [vmem:[%s9 + $0x14] sm:$0xf]
        %v1011 = vld [vmem:[%s9 + $0x18] sm:$0xf]
        %v1012 = vld [vmem:[%s9 + $0x1c] sm:$0xf]
        %v1013 = vadd.s32 %v477, 8
        %vm1014 = vcmp.lt.s32.totalorder %v477, 8
        %vm1015 = vcmp.lt.s32.totalorder %v1013, 8
        %v1016 = vsub.s32 %v654, 1
        %v1017 = vpack.c.bf16 0.0, 0.0
        %v1026 = vunpack.c.l.b16 %v1005
        %v1027 = vunpack.c.l.b16 %v1006
        %v1028 = vunpack.c.l.b16 %v1007
        %v1029 = vunpack.c.l.b16 %v1008
        %v1030 = vunpack.c.l.b16 %v1009
        %v1031 = vunpack.c.l.b16 %v1010
        %v1032 = vunpack.c.l.b16 %v1011
        %v1033 = vunpack.c.l.b16 %v1012
        %v1034 = vpack.c.b16 %v1027, %v1026
        %v1035 = vpack.c.b16 %v1029, %v1028
        %v1036 = vpack.c.b16 %v1031, %v1030
        %v1037 = vpack.c.b16 %v1033, %v1032
        %v1043 = vsel %vm496, %v1017, 0
        %1045 = vmatprep.subr.bf16.mxu0 0
        %1046 = vmatpush1.bf16.msra.mxu0 %v1034
        %1047 = vmatprep.subr.bf16.mxu0 0
        %1048 = vmatpush1.bf16.msra.mxu0 %v1035
        %1049 = vmatprep.subr.bf16.mxu0 0
        %1050 = vmatpush1.bf16.msra.mxu0 %v1036
        %1051 = vmatprep.subr.bf16.mxu0 0
        %1052 = vmatpush1.bf16.msra.mxu0 %v1037
        %1053 = vmatprep.subr.bf16.mxu0 0
        %1054 = vmatpush1.bf16.msra.mxu0 0
        %1055 = vmatprep.subr.bf16.mxu0 0
        %1056 = vmatpush1.bf16.msra.mxu0 0
        %1057 = vmatprep.subr.bf16.mxu0 0
        %1058 = vmatpush1.bf16.msra.mxu0 0
        %1059 = vmatprep.subr.bf16.mxu0 0
        %1060 = vmatpush1.bf16.msra.mxu0 0
        %1061 = vmatprep.subr.bf16.mxu0 0
        %1062 = vmatpush1.bf16.msra.mxu0 0
        %1063 = vmatprep.subr.bf16.mxu0 0
        %1064 = vmatpush1.bf16.msra.mxu0 0
        %1065 = vmatprep.subr.bf16.mxu0 0
        %1066 = vmatpush1.bf16.msra.mxu0 0
        %1067 = vmatprep.subr.bf16.mxu0 0
        %1068 = vmatpush1.bf16.msra.mxu0 0
        %1069 = vmatprep.subr.bf16.mxu0 0
        %1070 = vmatpush1.bf16.msra.mxu0 0
        %1071 = vmatprep.subr.bf16.mxu0 0
        %1072 = vmatpush1.bf16.msra.mxu0 0
        %1073 = vmatprep.subr.bf16.mxu0 0
        %1074 = vmatpush1.bf16.msra.mxu0 0
        %1075 = vmatprep.subr.bf16.mxu0 0
        %1076 = vmatpush1.bf16.msra.mxu0 0
        %1077 = vmatprep.mubr.bf16.mxu0 0
        %1078 = vmatmul.mubr.bf16.gmra.mrb[0].mxu0 %v1043
        %v1079 = vpop.f32.mrb[0].mxu0
        %v1080 = vadd.f32 0.0, %v1079
        %v1081 = vpop.f32.mrb[0].mxu0
        %v1082 = vpop.f32.mrb[0].mxu0
        %v1083 = vadd.f32 0.0, %v1082
        %v1084 = vpop.f32.mrb[0].mxu0
        %1085 = vdwg.mxu0
        %v1086 = vadd.f32 %v906, %v1080
        %v1087 = vadd.f32 %v1002, %v1083
        %v1088 = vxor.u32 %v1086, 2147483648
        %v1089 = vxor.u32 %v1087, 2147483648
        %v1090 = vmul.f32 %v1088, 1.442695
        %v1091 = vpow.pop %v1090
        %v1092 = vmul.f32 %v1089, 1.442695
        %v1093 = vpow.pop %v1092
        %v1094 = vadd.f32 %v1091, 1.0
        %v1095 = vadd.f32 %v1093, 1.0
        %v1096 = vrcp.pop %v1094
        %v1097 = vmul.f32 1.0, %v1096
        %v1098 = vrcp.pop %v1095
        %v1099 = vmul.f32 1.0, %v1098
        %v1100 = vtanh.pop %v1086
        %v1101 = vtanh.pop %v1087
        %v1102 = vmul.f32 %v1097, 0.0
        %v1103 = vmul.f32 %v1099, 0.0
        %1106 = vrot.lane.b32.xlu0 %v1100, 64
        %v1107 = vpop.permute.xlu0 %1106
        %1108 = vrot.lane.b32.xlu0 %v1101, 64
        %v1109 = vpop.permute.xlu0 %1108
        %v1112 = vmul.f32 %v1097, %v1107
        %v1113 = vmul.f32 %v1099, %v1109
        %1116 = vrot.lane.b32.xlu0 %v1112, 32
        %v1117 = vpop.permute.xlu0 %1116
        %1118 = vrot.lane.b32.xlu0 %v1113, 32
        %v1119 = vpop.permute.xlu0 %1118
        %v1122 = vadd.f32 %v1102, %v1117
        %v1123 = vadd.f32 %v1103, %v1119
        %v1124 = vtanh.pop %v1122
        %v1125 = vtanh.pop %v1123
        %1128 = vrot.lane.b32.xlu0 %v1124, 64
        %v1129 = vpop.permute.xlu0 %1128
        %1130 = vrot.lane.b32.xlu0 %v1125, 64
        %v1131 = vpop.permute.xlu0 %1130
        %v1134 = vmul.f32 %v1097, %v1129
        %v1135 = vmul.f32 %v1099, %v1131
        %v1136 = vsel %vm731, %v1134, 0.0
        %vm1137 = vmxor %vm1014, 1
        %vm1138 = vmxor %vm1015, 1
        %vm1139 = vcmp.le.s32.totalorder %v1016, 4
        %vm1140 = vmand %vm1137, %vm1139
        %vm1141 = vmand %vm1138, %vm1139
        %v1142 = vsel %vm1140, 1, 0
        %v1143 = vsel %vm1141, 1, 0
        %1144 = vset.pattern.permute.xlu0 0
        %1145 = vperm.xlu0 %1144, %v1142
        %v1146 = vpop.permute.xlu0 %1145
        %1147 = vset.pattern.permute.xlu0 0
        %1148 = vperm.xlu0 %1147, %v1143
        %v1149 = vpop.permute.xlu0 %1148
        %vm1150 = vcmp.eq.s32.totalorder %v1146, 1
        %vm1151 = vcmp.eq.s32.totalorder %v1149, 1
        %v1152 = vsel %vm1150, 0.0, %v1134
        %v1153 = vsel %vm1151, 0.0, %v1135
        %v1154 = vsel %vm1150, 0.0, %v1122
        %v1155 = vsel %vm1151, 0.0, %v1123
        %v1156 = vsel %vm1014, 1, 0
        %v1157 = vsel %vm1015, 1, 0
        %vm1158 = vcmp.eq.s32.totalorder %v1156, 1
        %vm1159 = vcmp.eq.s32.totalorder %v1157, 1
        %v1160 = vsel %vm1158, %v1152, 0.0
        %v1161 = vsel %vm1159, %v1153, 0.0
        %v1162 = vsel %vm1158, 0.0, %v1152
        %v1163 = vsel %vm1159, 0.0, %v1153
        %1166 = vrot.lane.b32.xlu0 %v1160, 32
        %v1167 = vpop.permute.xlu0 %1166
        %1168 = vrot.lane.b32.xlu0 %v1161, 32
        %v1169 = vpop.permute.xlu0 %1168
        %1174 = vrot.lane.b32.xlu0 %v1162, 64
        %v1175 = vpop.permute.xlu0 %1174
        %1176 = vrot.lane.b32.xlu0 %v1163, 64
        %v1177 = vpop.permute.xlu0 %1176
        %v1180 = vsel %vm861, %v1167, %v1175
        %v1181 = vsel %vm861, %v1169, %v1177
        %v1182 = vpack.c.bf16 %v1181, %v1180
        %v1184 = vsel %vm496, %v1182, 0
        %1186 = vmatprep.subr.bf16.mxu0 0
        %1187 = vmatpush1.bf16.msra.mxu0 %v1034
        %1188 = vmatprep.subr.bf16.mxu0 0
        %1189 = vmatpush1.bf16.msra.mxu0 %v1035
        %1190 = vmatprep.subr.bf16.mxu0 0
        %1191 = vmatpush1.bf16.msra.mxu0 %v1036
        %1192 = vmatprep.subr.bf16.mxu0 0
        %1193 = vmatpush1.bf16.msra.mxu0 %v1037
        %1194 = vmatprep.subr.bf16.mxu0 0
        %1195 = vmatpush1.bf16.msra.mxu0 0
        %1196 = vmatprep.subr.bf16.mxu0 0
        %1197 = vmatpush1.bf16.msra.mxu0 0
        %1198 = vmatprep.subr.bf16.mxu0 0
        %1199 = vmatpush1.bf16.msra.mxu0 0
        %1200 = vmatprep.subr.bf16.mxu0 0
        %1201 = vmatpush1.bf16.msra.mxu0 0
        %1202 = vmatprep.subr.bf16.mxu0 0
        %1203 = vmatpush1.bf16.msra.mxu0 0
        %1204 = vmatprep.subr.bf16.mxu0 0
        %1205 = vmatpush1.bf16.msra.mxu0 0
        %1206 = vmatprep.subr.bf16.mxu0 0
        %1207 = vmatpush1.bf16.msra.mxu0 0
        %1208 = vmatprep.subr.bf16.mxu0 0
        %1209 = vmatpush1.bf16.msra.mxu0 0
        %1210 = vmatprep.subr.bf16.mxu0 0
        %1211 = vmatpush1.bf16.msra.mxu0 0
        %1212 = vmatprep.subr.bf16.mxu0 0
        %1213 = vmatpush1.bf16.msra.mxu0 0
        %1214 = vmatprep.subr.bf16.mxu0 0
        %1215 = vmatpush1.bf16.msra.mxu0 0
        %1216 = vmatprep.subr.bf16.mxu0 0
        %1217 = vmatpush1.bf16.msra.mxu0 0
        %1218 = vmatprep.mubr.bf16.mxu0 0
        %1219 = vmatmul.mubr.bf16.gmra.mrb[0].mxu0 %v1184
        %v1220 = vpop.f32.mrb[0].mxu0
        %v1221 = vadd.f32 0.0, %v1220
        %v1222 = vpop.f32.mrb[0].mxu0
        %v1223 = vpop.f32.mrb[0].mxu0
        %v1224 = vadd.f32 0.0, %v1223
        %v1225 = vpop.f32.mrb[0].mxu0
        %1226 = vdwg.mxu0
        %v1227 = vadd.f32 %v909, %v1221
        %v1228 = vadd.f32 %v999, %v1224
        %v1229 = vxor.u32 %v1227, 2147483648
        %v1230 = vxor.u32 %v1228, 2147483648
        %v1231 = vmul.f32 %v1229, 1.442695
        %v1232 = vpow.pop %v1231
        %v1233 = vmul.f32 %v1230, 1.442695
        %v1234 = vpow.pop %v1233
        %v1235 = vadd.f32 %v1232, 1.0
        %v1236 = vadd.f32 %v1234, 1.0
        %v1237 = vrcp.pop %v1235
        %v1238 = vmul.f32 1.0, %v1237
        %v1239 = vrcp.pop %v1236
        %v1240 = vmul.f32 1.0, %v1239
        %v1241 = vtanh.pop %v1227
        %v1242 = vtanh.pop %v1228
        %v1243 = vmul.f32 %v1238, %v1154
        %v1244 = vmul.f32 %v1240, %v1155
        %1247 = vrot.lane.b32.xlu0 %v1241, 64
        %v1248 = vpop.permute.xlu0 %1247
        %1249 = vrot.lane.b32.xlu0 %v1242, 64
        %v1250 = vpop.permute.xlu0 %1249
        %v1253 = vmul.f32 %v1238, %v1248
        %v1254 = vmul.f32 %v1240, %v1250
        %1257 = vrot.lane.b32.xlu0 %v1253, 32
        %v1258 = vpop.permute.xlu0 %1257
        %1259 = vrot.lane.b32.xlu0 %v1254, 32
        %v1260 = vpop.permute.xlu0 %1259
        %v1263 = vadd.f32 %v1243, %v1258
        %v1264 = vadd.f32 %v1244, %v1260
        %v1265 = vtanh.pop %v1263
        %v1266 = vtanh.pop %v1264
        %1269 = vrot.lane.b32.xlu0 %v1265, 64
        %v1270 = vpop.permute.xlu0 %1269
        %1271 = vrot.lane.b32.xlu0 %v1266, 64
        %v1272 = vpop.permute.xlu0 %1271
        %v1275 = vmul.f32 %v1238, %v1270
        %v1276 = vmul.f32 %v1240, %v1272
        %v1277 = vsel %vm768, %v1275, %v1136
        %vm1278 = vcmp.le.s32.totalorder %v1016, 3
        %vm1279 = vmand %vm1137, %vm1278
        %vm1280 = vmand %vm1138, %vm1278
        %v1281 = vsel %vm1279, 1, 0
        %v1282 = vsel %vm1280, 1, 0
        %1283 = vset.pattern.permute.xlu0 0
        %1284 = vperm.xlu0 %1283, %v1281
        %v1285 = vpop.permute.xlu0 %1284
        %1286 = vset.pattern.permute.xlu0 0
        %1287 = vperm.xlu0 %1286, %v1282
        %v1288 = vpop.permute.xlu0 %1287
        %vm1289 = vcmp.eq.s32.totalorder %v1285, 1
        %vm1290 = vcmp.eq.s32.totalorder %v1288, 1
        %v1291 = vsel %vm1289, 0.0, %v1275
        %v1292 = vsel %vm1290, 0.0, %v1276
        %v1293 = vsel %vm1289, 0.0, %v1263
        %v1294 = vsel %vm1290, 0.0, %v1264
        %v1295 = vsel %vm1158, %v1291, 0.0
        %v1296 = vsel %vm1159, %v1292, 0.0
        %v1297 = vsel %vm1158, 0.0, %v1291
        %v1298 = vsel %vm1159, 0.0, %v1292
        %1301 = vrot.lane.b32.xlu0 %v1295, 32
        %v1302 = vpop.permute.xlu0 %1301
        %1303 = vrot.lane.b32.xlu0 %v1296, 32
        %v1304 = vpop.permute.xlu0 %1303
        %1309 = vrot.lane.b32.xlu0 %v1297, 64
        %v1310 = vpop.permute.xlu0 %1309
        %1311 = vrot.lane.b32.xlu0 %v1298, 64
        %v1312 = vpop.permute.xlu0 %1311
        %v1315 = vsel %vm861, %v1302, %v1310
        %v1316 = vsel %vm861, %v1304, %v1312
        %v1317 = vpack.c.bf16 %v1316, %v1315
        %v1319 = vsel %vm496, %v1317, 0
        %1321 = vmatprep.subr.bf16.mxu0 0
        %1322 = vmatpush1.bf16.msra.mxu0 %v1034
        %1323 = vmatprep.subr.bf16.mxu0 0
        %1324 = vmatpush1.bf16.msra.mxu0 %v1035
        %1325 = vmatprep.subr.bf16.mxu0 0
        %1326 = vmatpush1.bf16.msra.mxu0 %v1036
        %1327 = vmatprep.subr.bf16.mxu0 0
        %1328 = vmatpush1.bf16.msra.mxu0 %v1037
        %1329 = vmatprep.subr.bf16.mxu0 0
        %1330 = vmatpush1.bf16.msra.mxu0 0
        %1331 = vmatprep.subr.bf16.mxu0 0
        %1332 = vmatpush1.bf16.msra.mxu0 0
        %1333 = vmatprep.subr.bf16.mxu0 0
        %1334 = vmatpush1.bf16.msra.mxu0 0
        %1335 = vmatprep.subr.bf16.mxu0 0
        %1336 = vmatpush1.bf16.msra.mxu0 0
        %1337 = vmatprep.subr.bf16.mxu0 0
        %1338 = vmatpush1.bf16.msra.mxu0 0
        %1339 = vmatprep.subr.bf16.mxu0 0
        %1340 = vmatpush1.bf16.msra.mxu0 0
        %1341 = vmatprep.subr.bf16.mxu0 0
        %1342 = vmatpush1.bf16.msra.mxu0 0
        %1343 = vmatprep.subr.bf16.mxu0 0
        %1344 = vmatpush1.bf16.msra.mxu0 0
        %1345 = vmatprep.subr.bf16.mxu0 0
        %1346 = vmatpush1.bf16.msra.mxu0 0
        %1347 = vmatprep.subr.bf16.mxu0 0
        %1348 = vmatpush1.bf16.msra.mxu0 0
        %1349 = vmatprep.subr.bf16.mxu0 0
        %1350 = vmatpush1.bf16.msra.mxu0 0
        %1351 = vmatprep.subr.bf16.mxu0 0
        %1352 = vmatpush1.bf16.msra.mxu0 0
        %1353 = vmatprep.mubr.bf16.mxu0 0
        %1354 = vmatmul.mubr.bf16.gmra.mrb[0].mxu0 %v1319
        %v1355 = vpop.f32.mrb[0].mxu0
        %v1356 = vadd.f32 0.0, %v1355
        %v1357 = vpop.f32.mrb[0].mxu0
        %v1358 = vpop.f32.mrb[0].mxu0
        %v1359 = vadd.f32 0.0, %v1358
        %v1360 = vpop.f32.mrb[0].mxu0
        %1361 = vdwg.mxu0
        %v1362 = vadd.f32 %v914, %v1356
        %v1363 = vadd.f32 %v994, %v1359
        %v1364 = vxor.u32 %v1362, 2147483648
        %v1365 = vxor.u32 %v1363, 2147483648
        %v1366 = vmul.f32 %v1364, 1.442695
        %v1367 = vpow.pop %v1366
        %v1368 = vmul.f32 %v1365, 1.442695
        %v1369 = vpow.pop %v1368
        %v1370 = vadd.f32 %v1367, 1.0
        %v1371 = vadd.f32 %v1369, 1.0
        %v1372 = vrcp.pop %v1370
        %v1373 = vmul.f32 1.0, %v1372
        %v1374 = vrcp.pop %v1371
        %v1375 = vmul.f32 1.0, %v1374
        %v1376 = vtanh.pop %v1362
        %v1377 = vtanh.pop %v1363
        %v1378 = vmul.f32 %v1373, %v1293
        %v1379 = vmul.f32 %v1375, %v1294
        %1382 = vrot.lane.b32.xlu0 %v1376, 64
        %v1383 = vpop.permute.xlu0 %1382
        %1384 = vrot.lane.b32.xlu0 %v1377, 64
        %v1385 = vpop.permute.xlu0 %1384
        %v1388 = vmul.f32 %v1373, %v1383
        %v1389 = vmul.f32 %v1375, %v1385
        %1392 = vrot.lane.b32.xlu0 %v1388, 32
        %v1393 = vpop.permute.xlu0 %1392
        %1394 = vrot.lane.b32.xlu0 %v1389, 32
        %v1395 = vpop.permute.xlu0 %1394
        %v1398 = vadd.f32 %v1378, %v1393
        %v1399 = vadd.f32 %v1379, %v1395
        %v1400 = vtanh.pop %v1398
        %v1401 = vtanh.pop %v1399
        %1404 = vrot.lane.b32.xlu0 %v1400, 64
        %v1405 = vpop.permute.xlu0 %1404
        %1406 = vrot.lane.b32.xlu0 %v1401, 64
        %v1407 = vpop.permute.xlu0 %1406
        %v1410 = vmul.f32 %v1373, %v1405
        %v1411 = vmul.f32 %v1375, %v1407
        %v1412 = vsel %vm790, %v1410, %v1277
        %vm1413 = vcmp.le.s32.totalorder %v1016, 2
        %vm1414 = vmand %vm1137, %vm1413
        %vm1415 = vmand %vm1138, %vm1413
        %v1416 = vsel %vm1414, 1, 0
        %v1417 = vsel %vm1415, 1, 0
        %1418 = vset.pattern.permute.xlu0 0
        %1419 = vperm.xlu0 %1418, %v1416
        %v1420 = vpop.permute.xlu0 %1419
        %1421 = vset.pattern.permute.xlu0 0
        %1422 = vperm.xlu0 %1421, %v1417
        %v1423 = vpop.permute.xlu0 %1422
        %vm1424 = vcmp.eq.s32.totalorder %v1420, 1
        %vm1425 = vcmp.eq.s32.totalorder %v1423, 1
        %v1426 = vsel %vm1424, 0.0, %v1410
        %v1427 = vsel %vm1425, 0.0, %v1411
        %v1428 = vsel %vm1424, 0.0, %v1398
        %v1429 = vsel %vm1425, 0.0, %v1399
        %v1430 = vsel %vm1158, %v1426, 0.0
        %v1431 = vsel %vm1159, %v1427, 0.0
        %v1432 = vsel %vm1158, 0.0, %v1426
        %v1433 = vsel %vm1159, 0.0, %v1427
        %1436 = vrot.lane.b32.xlu0 %v1430, 32
        %v1437 = vpop.permute.xlu0 %1436
        %1438 = vrot.lane.b32.xlu0 %v1431, 32
        %v1439 = vpop.permute.xlu0 %1438
        %1444 = vrot.lane.b32.xlu0 %v1432, 64
        %v1445 = vpop.permute.xlu0 %1444
        %1446 = vrot.lane.b32.xlu0 %v1433, 64
        %v1447 = vpop.permute.xlu0 %1446
        %v1450 = vsel %vm861, %v1437, %v1445
        %v1451 = vsel %vm861, %v1439, %v1447
        %v1452 = vpack.c.bf16 %v1451, %v1450
        %v1454 = vsel %vm496, %v1452, 0
        %1456 = vmatprep.subr.bf16.mxu0 0
        %1457 = vmatpush1.bf16.msra.mxu0 %v1034
        %1458 = vmatprep.subr.bf16.mxu0 0
        %1459 = vmatpush1.bf16.msra.mxu0 %v1035
        %1460 = vmatprep.subr.bf16.mxu0 0
        %1461 = vmatpush1.bf16.msra.mxu0 %v1036
        %1462 = vmatprep.subr.bf16.mxu0 0
        %1463 = vmatpush1.bf16.msra.mxu0 %v1037
        %1464 = vmatprep.subr.bf16.mxu0 0
        %1465 = vmatpush1.bf16.msra.mxu0 0
        %1466 = vmatprep.subr.bf16.mxu0 0
        %1467 = vmatpush1.bf16.msra.mxu0 0
        %1468 = vmatprep.subr.bf16.mxu0 0
        %1469 = vmatpush1.bf16.msra.mxu0 0
        %1470 = vmatprep.subr.bf16.mxu0 0
        %1471 = vmatpush1.bf16.msra.mxu0 0
        %1472 = vmatprep.subr.bf16.mxu0 0
        %1473 = vmatpush1.bf16.msra.mxu0 0
        %1474 = vmatprep.subr.bf16.mxu0 0
        %1475 = vmatpush1.bf16.msra.mxu0 0
        %1476 = vmatprep.subr.bf16.mxu0 0
        %1477 = vmatpush1.bf16.msra.mxu0 0
        %1478 = vmatprep.subr.bf16.mxu0 0
        %1479 = vmatpush1.bf16.msra.mxu0 0
        %1480 = vmatprep.subr.bf16.mxu0 0
        %1481 = vmatpush1.bf16.msra.mxu0 0
        %1482 = vmatprep.subr.bf16.mxu0 0
        %1483 = vmatpush1.bf16.msra.mxu0 0
        %1484 = vmatprep.subr.bf16.mxu0 0
        %1485 = vmatpush1.bf16.msra.mxu0 0
        %1486 = vmatprep.subr.bf16.mxu0 0
        %1487 = vmatpush1.bf16.msra.mxu0 0
        %1488 = vmatprep.mubr.bf16.mxu0 0
        %1489 = vmatmul.mubr.bf16.gmra.mrb[0].mxu0 %v1454
        %v1490 = vpop.f32.mrb[0].mxu0
        %v1491 = vadd.f32 0.0, %v1490
        %v1492 = vpop.f32.mrb[0].mxu0
        %v1493 = vpop.f32.mrb[0].mxu0
        %v1494 = vadd.f32 0.0, %v1493
        %v1495 = vpop.f32.mrb[0].mxu0
        %1496 = vdwg.mxu0
        %v1497 = vadd.f32 %v917, %v1491
        %v1498 = vadd.f32 %v991, %v1494
        %v1499 = vxor.u32 %v1497, 2147483648
        %v1500 = vxor.u32 %v1498, 2147483648
        %v1501 = vmul.f32 %v1499, 1.442695
        %v1502 = vpow.pop %v1501
        %v1503 = vmul.f32 %v1500, 1.442695
        %v1504 = vpow.pop %v1503
        %v1505 = vadd.f32 %v1502, 1.0
        %v1506 = vadd.f32 %v1504, 1.0
        %v1507 = vrcp.pop %v1505
        %v1508 = vmul.f32 1.0, %v1507
        %v1509 = vrcp.pop %v1506
        %v1510 = vmul.f32 1.0, %v1509
        %v1511 = vtanh.pop %v1497
        %v1512 = vtanh.pop %v1498
        %v1513 = vmul.f32 %v1508, %v1428
        %v1514 = vmul.f32 %v1510, %v1429
        %1517 = vrot.lane.b32.xlu0 %v1511, 64
        %v1518 = vpop.permute.xlu0 %1517
        %1519 = vrot.lane.b32.xlu0 %v1512, 64
        %v1520 = vpop.permute.xlu0 %1519
        %v1523 = vmul.f32 %v1508, %v1518
        %v1524 = vmul.f32 %v1510, %v1520
        %1527 = vrot.lane.b32.xlu0 %v1523, 32
        %v1528 = vpop.permute.xlu0 %1527
        %1529 = vrot.lane.b32.xlu0 %v1524, 32
        %v1530 = vpop.permute.xlu0 %1529
        %v1533 = vadd.f32 %v1513, %v1528
        %v1534 = vadd.f32 %v1514, %v1530
        %v1535 = vtanh.pop %v1533
        %v1536 = vtanh.pop %v1534
        %1539 = vrot.lane.b32.xlu0 %v1535, 64
        %v1540 = vpop.permute.xlu0 %1539
        %1541 = vrot.lane.b32.xlu0 %v1536, 64
        %v1542 = vpop.permute.xlu0 %1541
        %v1545 = vmul.f32 %v1508, %v1540
        %v1546 = vmul.f32 %v1510, %v1542
        %v1547 = vsel %vm812, %v1545, %v1412
        %vm1548 = vcmp.le.s32.totalorder %v1016, 1
        %vm1549 = vmand %vm1137, %vm1548
        %vm1550 = vmand %vm1138, %vm1548
        %v1551 = vsel %vm1549, 1, 0
        %v1552 = vsel %vm1550, 1, 0
        %1553 = vset.pattern.permute.xlu0 0
        %1554 = vperm.xlu0 %1553, %v1551
        %v1555 = vpop.permute.xlu0 %1554
        %1556 = vset.pattern.permute.xlu0 0
        %1557 = vperm.xlu0 %1556, %v1552
        %v1558 = vpop.permute.xlu0 %1557
        %vm1559 = vcmp.eq.s32.totalorder %v1555, 1
        %vm1560 = vcmp.eq.s32.totalorder %v1558, 1
        %v1561 = vsel %vm1559, 0.0, %v1545
        %v1562 = vsel %vm1560, 0.0, %v1546
        %v1563 = vsel %vm1559, 0.0, %v1533
        %v1564 = vsel %vm1560, 0.0, %v1534
        %v1565 = vsel %vm1158, %v1561, 0.0
        %v1566 = vsel %vm1159, %v1562, 0.0
        %v1567 = vsel %vm1158, 0.0, %v1561
        %v1568 = vsel %vm1159, 0.0, %v1562
        %1571 = vrot.lane.b32.xlu0 %v1565, 32
        %v1572 = vpop.permute.xlu0 %1571
        %1573 = vrot.lane.b32.xlu0 %v1566, 32
        %v1574 = vpop.permute.xlu0 %1573
        %1579 = vrot.lane.b32.xlu0 %v1567, 64
        %v1580 = vpop.permute.xlu0 %1579
        %1581 = vrot.lane.b32.xlu0 %v1568, 64
        %v1582 = vpop.permute.xlu0 %1581
        %v1585 = vsel %vm861, %v1572, %v1580
        %v1586 = vsel %vm861, %v1574, %v1582
        %v1587 = vpack.c.bf16 %v1586, %v1585
        %v1589 = vsel %vm496, %v1587, 0
        %1591 = vmatprep.subr.bf16.mxu0 0
        %1592 = vmatpush1.bf16.msra.mxu0 %v1034
        %1593 = vmatprep.subr.bf16.mxu0 0
        %1594 = vmatpush1.bf16.msra.mxu0 %v1035
        %1595 = vmatprep.subr.bf16.mxu0 0
        %1596 = vmatpush1.bf16.msra.mxu0 %v1036
        %1597 = vmatprep.subr.bf16.mxu0 0
        %1598 = vmatpush1.bf16.msra.mxu0 %v1037
        %1599 = vmatprep.subr.bf16.mxu0 0
        %1600 = vmatpush1.bf16.msra.mxu0 0
        %1601 = vmatprep.subr.bf16.mxu0 0
        %1602 = vmatpush1.bf16.msra.mxu0 0
        %1603 = vmatprep.subr.bf16.mxu0 0
        %1604 = vmatpush1.bf16.msra.mxu0 0
        %1605 = vmatprep.subr.bf16.mxu0 0
        %1606 = vmatpush1.bf16.msra.mxu0 0
        %1607 = vmatprep.subr.bf16.mxu0 0
        %1608 = vmatpush1.bf16.msra.mxu0 0
        %1609 = vmatprep.subr.bf16.mxu0 0
        %1610 = vmatpush1.bf16.msra.mxu0 0
        %1611 = vmatprep.subr.bf16.mxu0 0
        %1612 = vmatpush1.bf16.msra.mxu0 0
        %1613 = vmatprep.subr.bf16.mxu0 0
        %1614 = vmatpush1.bf16.msra.mxu0 0
        %1615 = vmatprep.subr.bf16.mxu0 0
        %1616 = vmatpush1.bf16.msra.mxu0 0
        %1617 = vmatprep.subr.bf16.mxu0 0
        %1618 = vmatpush1.bf16.msra.mxu0 0
        %1619 = vmatprep.subr.bf16.mxu0 0
        %1620 = vmatpush1.bf16.msra.mxu0 0
        %1621 = vmatprep.subr.bf16.mxu0 0
        %1622 = vmatpush1.bf16.msra.mxu0 0
        %1623 = vmatprep.mubr.bf16.mxu0 0
        %1624 = vmatmul.mubr.bf16.gmra.mrb[0].mxu0 %v1589
        %v1625 = vpop.f32.mrb[0].mxu0
        %v1626 = vadd.f32 0.0, %v1625
        %v1627 = vpop.f32.mrb[0].mxu0
        %v1628 = vpop.f32.mrb[0].mxu0
        %v1629 = vadd.f32 0.0, %v1628
        %v1630 = vpop.f32.mrb[0].mxu0
        %1631 = vdwg.mxu0
        %v1632 = vadd.f32 %v922, %v1626
        %v1633 = vadd.f32 %v986, %v1629
        %v1634 = vxor.u32 %v1632, 2147483648
        %v1635 = vxor.u32 %v1633, 2147483648
        %v1636 = vmul.f32 %v1634, 1.442695
        %v1637 = vpow.pop %v1636
        %v1638 = vmul.f32 %v1635, 1.442695
        %v1639 = vpow.pop %v1638
        %v1640 = vadd.f32 %v1637, 1.0
        %v1641 = vadd.f32 %v1639, 1.0
        %v1642 = vrcp.pop %v1640
        %v1643 = vmul.f32 1.0, %v1642
        %v1644 = vrcp.pop %v1641
        %v1645 = vmul.f32 1.0, %v1644
        %v1646 = vtanh.pop %v1632
        %v1647 = vtanh.pop %v1633
        %v1648 = vmul.f32 %v1643, %v1563
        %v1649 = vmul.f32 %v1645, %v1564
        %1652 = vrot.lane.b32.xlu0 %v1646, 64
        %v1653 = vpop.permute.xlu0 %1652
        %1654 = vrot.lane.b32.xlu0 %v1647, 64
        %v1655 = vpop.permute.xlu0 %1654
        %v1658 = vmul.f32 %v1643, %v1653
        %v1659 = vmul.f32 %v1645, %v1655
        %1662 = vrot.lane.b32.xlu0 %v1658, 32
        %v1663 = vpop.permute.xlu0 %1662
        %1664 = vrot.lane.b32.xlu0 %v1659, 32
        %v1665 = vpop.permute.xlu0 %1664
        %v1668 = vadd.f32 %v1648, %v1663
        %v1669 = vadd.f32 %v1649, %v1665
        %v1670 = vtanh.pop %v1668
        %v1671 = vtanh.pop %v1669
        %1674 = vrot.lane.b32.xlu0 %v1670, 64
        %v1675 = vpop.permute.xlu0 %1674
        %1676 = vrot.lane.b32.xlu0 %v1671, 64
        %v1677 = vpop.permute.xlu0 %1676
        %v1680 = vmul.f32 %v1643, %v1675
        %v1681 = vmul.f32 %v1645, %v1677
        %v1682 = vsel %vm834, %v1680, %v1547
        %1684 = vrot.lane.b32.xlu0 %v1682, 32
        %v1685 = vpop.permute.xlu0 %1684
        %1688 = vrot.lane.b32.xlu0 %v1681, 64
        %v1689 = vpop.permute.xlu0 %1688
        %v1691 = vsel %vm861, %v1685, %v1689
        %v1692 = vpack.c.bf16 %v1691, %v1691
        %v1693 = vld [vmem:[%s9 + $0x48] sm:$0xf]
        %v1694 = vld [vmem:[%s9 + $0x4c] sm:$0xf]
        %v1695 = vld [vmem:[%s9 + $0x50] sm:$0xf]
        %v1696 = vld [vmem:[%s9 + $0x54] sm:$0xf]
        %v1697 = vld [vmem:[%s9 + $0x58] sm:$0xf]
        %v1698 = vld [vmem:[%s9 + $0x5c] sm:$0xf]
        %v1699 = vld [vmem:[%s9 + $0x60] sm:$0xf]
        %v1700 = vld [vmem:[%s9 + $0x64] sm:$0xf]
        %v1701 = vld [vmem:[%s9 + $0x68] sm:$0x1]
        %v1702 = vunpack.c.l.bf16 %v1701
        %v1703 = vlaneseq
        %v1704 = vshrl.u32 %v1703, 7
        %v1705 = vsub.s32 0, %v1704
        %v1706 = vrot.slane %v1702, %v1705
        %v1715 = vunpack.c.l.b16 %v1693
        %v1716 = vunpack.c.l.b16 %v1694
        %v1717 = vunpack.c.l.b16 %v1695
        %v1718 = vunpack.c.l.b16 %v1696
        %v1719 = vunpack.c.l.b16 %v1697
        %v1720 = vunpack.c.l.b16 %v1698
        %v1721 = vunpack.c.l.b16 %v1699
        %v1722 = vunpack.c.l.b16 %v1700
        %v1723 = vpack.c.b16 %v1716, %v1715
        %v1724 = vpack.c.b16 %v1718, %v1717
        %v1725 = vpack.c.b16 %v1720, %v1719
        %v1726 = vpack.c.b16 %v1722, %v1721
        %v1732 = vsel %vm496, %v1692, 0
        %1734 = vmatprep.subr.bf16.mxu0 0
        %1735 = vmatpush1.bf16.msra.mxu0 %v1723
        %1736 = vmatprep.subr.bf16.mxu0 0
        %1737 = vmatpush1.bf16.msra.mxu0 %v1724
        %1738 = vmatprep.subr.bf16.mxu0 0
        %1739 = vmatpush1.bf16.msra.mxu0 %v1725
        %1740 = vmatprep.subr.bf16.mxu0 0
        %1741 = vmatpush1.bf16.msra.mxu0 %v1726
        %1742 = vmatprep.subr.bf16.mxu0 0
        %1743 = vmatpush1.bf16.msra.mxu0 0
        %1744 = vmatprep.subr.bf16.mxu0 0
        %1745 = vmatpush1.bf16.msra.mxu0 0
        %1746 = vmatprep.subr.bf16.mxu0 0
        %1747 = vmatpush1.bf16.msra.mxu0 0
        %1748 = vmatprep.subr.bf16.mxu0 0
        %1749 = vmatpush1.bf16.msra.mxu0 0
        %1750 = vmatprep.subr.bf16.mxu0 0
        %1751 = vmatpush1.bf16.msra.mxu0 0
        %1752 = vmatprep.subr.bf16.mxu0 0
        %1753 = vmatpush1.bf16.msra.mxu0 0
        %1754 = vmatprep.subr.bf16.mxu0 0
        %1755 = vmatpush1.bf16.msra.mxu0 0
        %1756 = vmatprep.subr.bf16.mxu0 0
        %1757 = vmatpush1.bf16.msra.mxu0 0
        %1758 = vmatprep.subr.bf16.mxu0 0
        %1759 = vmatpush1.bf16.msra.mxu0 0
        %1760 = vmatprep.subr.bf16.mxu0 0
        %1761 = vmatpush1.bf16.msra.mxu0 0
        %1762 = vmatprep.subr.bf16.mxu0 0
        %1763 = vmatpush1.bf16.msra.mxu0 0
        %1764 = vmatprep.subr.bf16.mxu0 0
        %1765 = vmatpush1.bf16.msra.mxu0 0
        %1766 = vmatprep.mubr.bf16.mxu0 0
        %1767 = vmatmul.mubr.bf16.gmra.mrb[0].mxu0 %v1732
        %v1768 = vpop.f32.mrb[0].mxu0
        %v1769 = vadd.f32 %v1706, %v1768
        %v1770 = vpop.f32.mrb[0].mxu0
        %v1771 = vpop.f32.mrb[0].mxu0
        %v1772 = vpop.f32.mrb[0].mxu0
        %1773 = vdwg.mxu0
        %v1774 = vmax.f32 %v1769, 0.0
        %1775 = vst.msk [vmem:[#allocation2] sm:$0xff] %vm861, %v1774
      $region64: #{rnng_cell_forward.1} parent=55 // pred_fallthru
        _
      %vm1776 = vcmp.eq.s32.totalorder %v470, 2
      %v1777 = vld [vmem:[#allocation2] sm:$0xff]
      %v1778 = vsel %vm1776, 1, 0
      %1779 = vset.pattern.permute.xlu0 0
      %1780 = vperm.xlu0 %1779, %v1778
      %v1781 = vpop.permute.xlu0 %1780
      %vm1782 = vcmp.eq.s32.totalorder %v1781, 1
      %v1783 = vsel %vm1782, %v1777, %v647
      %v1784 = vld [vmem:[%s11] sm:$0xff]
      %v1785 = vld [vmem:[%s11 + $0x8] sm:$0xff]
      %v1786 = vld [vmem:[%s12] sm:$0xff]
      %v1787 = vld [vmem:[%s12 + $0x8] sm:$0xff]
      %vm1788 = vcmask 261120
      %v1789 = vsel %vm1788, %v1784, 0.0
      %1791 = vrot.lane.b32.xlu0 %v1785, 32
      %v1792 = vpop.permute.xlu0 %1791
      %v1794 = vsel %vm1788, 0.0, %v1792
      %v1795 = vpack.c.bf16 %v1794, %v1789
      %v1796 = vld [vmem:[%s9 + $0x94] sm:$0xf]
      %v1797 = vld [vmem:[%s9 + $0x98] sm:$0xf]
      %v1798 = vld [vmem:[%s9 + $0x9c] sm:$0xf]
      %v1799 = vld [vmem:[%s9 + $0xa0] sm:$0xf]
      %v1800 = vld [vmem:[%s9 + $0xa4] sm:$0xf]
      %v1801 = vld [vmem:[%s9 + $0xa8] sm:$0xf]
      %v1802 = vld [vmem:[%s9 + $0xac] sm:$0xf]
      %v1803 = vld [vmem:[%s9 + $0xb0] sm:$0xf]
      %v1812 = vunpack.c.l.b16 %v1796
      %v1813 = vunpack.c.l.b16 %v1797
      %v1814 = vunpack.c.l.b16 %v1798
      %v1815 = vunpack.c.l.b16 %v1799
      %v1816 = vunpack.c.l.b16 %v1800
      %v1817 = vunpack.c.l.b16 %v1801
      %v1818 = vunpack.c.l.b16 %v1802
      %v1819 = vunpack.c.l.b16 %v1803
      %v1820 = vpack.c.b16 %v1813, %v1812
      %v1821 = vpack.c.b16 %v1815, %v1814
      %v1822 = vpack.c.b16 %v1817, %v1816
      %v1823 = vpack.c.b16 %v1819, %v1818
      %v1829 = vsel %vm496, %v1795, 0
      %1831 = vmatprep.subr.bf16.mxu0 0
      %1832 = vmatpush1.bf16.msra.mxu0 %v1820
      %1833 = vmatprep.subr.bf16.mxu0 0
      %1834 = vmatpush1.bf16.msra.mxu0 %v1821
      %1835 = vmatprep.subr.bf16.mxu0 0
      %1836 = vmatpush1.bf16.msra.mxu0 %v1822
      %1837 = vmatprep.subr.bf16.mxu0 0
      %1838 = vmatpush1.bf16.msra.mxu0 %v1823
      %1839 = vmatprep.subr.bf16.mxu0 0
      %1840 = vmatpush1.bf16.msra.mxu0 0
      %1841 = vmatprep.subr.bf16.mxu0 0
      %1842 = vmatpush1.bf16.msra.mxu0 0
      %1843 = vmatprep.subr.bf16.mxu0 0
      %1844 = vmatpush1.bf16.msra.mxu0 0
      %1845 = vmatprep.subr.bf16.mxu0 0
      %1846 = vmatpush1.bf16.msra.mxu0 0
      %1847 = vmatprep.subr.bf16.mxu0 0
      %1848 = vmatpush1.bf16.msra.mxu0 0
      %1849 = vmatprep.subr.bf16.mxu0 0
      %1850 = vmatpush1.bf16.msra.mxu0 0
      %1851 = vmatprep.subr.bf16.mxu0 0
      %1852 = vmatpush1.bf16.msra.mxu0 0
      %1853 = vmatprep.subr.bf16.mxu0 0
      %1854 = vmatpush1.bf16.msra.mxu0 0
      %1855 = vmatprep.subr.bf16.mxu0 0
      %1856 = vmatpush1.bf16.msra.mxu0 0
      %1857 = vmatprep.subr.bf16.mxu0 0
      %1858 = vmatpush1.bf16.msra.mxu0 0
      %1859 = vmatprep.subr.bf16.mxu0 0
      %1860 = vmatpush1.bf16.msra.mxu0 0
      %1861 = vmatprep.subr.bf16.mxu0 0
      %1862 = vmatpush1.bf16.msra.mxu0 0
      %1863 = vmatprep.mubr.bf16.mxu0 0
      %1864 = vmatmul.mubr.bf16.gmra.mrb[0].mxu0 %v1829
      %v1865 = vpop.f32.mrb[0].mxu0
      %v1866 = vadd.f32 0.0, %v1865
      %v1867 = vpop.f32.mrb[0].mxu0
      %v1868 = vpop.f32.mrb[0].mxu0
      %v1869 = vadd.f32 0.0, %v1868
      %v1870 = vpop.f32.mrb[0].mxu0
      %1871 = vdwg.mxu0
      %v1872 = vld [vmem:[%s9 + $0xb4] sm:$0x1]
      %v1873 = vunpack.c.l.bf16 %v1872
      %v1874 = vpack.c.bf16 %v1783, %v1783
      %v1875 = vld [vmem:[%s9 + $0x74] sm:$0xf]
      %v1876 = vld [vmem:[%s9 + $0x78] sm:$0xf]
      %v1877 = vld [vmem:[%s9 + $0x7c] sm:$0xf]
      %v1878 = vld [vmem:[%s9 + $0x80] sm:$0xf]
      %v1883 = vunpack.c.l.b16 %v1875
      %v1884 = vunpack.c.l.b16 %v1876
      %v1885 = vunpack.c.l.b16 %v1877
      %v1886 = vunpack.c.l.b16 %v1878
      %v1887 = vpack.c.b16 %v1884, %v1883
      %v1888 = vpack.c.b16 %v1886, %v1885
      %v1892 = vsel %vm1788, %v1874, 0
      %1894 = vmatprep.subr.bf16.mxu0 0
      %1895 = vmatpush1.bf16.msra.mxu0 %v1887
      %1896 = vmatprep.subr.bf16.mxu0 0
      %1897 = vmatpush1.bf16.msra.mxu0 %v1888
      %1898 = vmatprep.subr.bf16.mxu0 0
      %1899 = vmatpush1.bf16.msra.mxu0 0
      %1900 = vmatprep.subr.bf16.mxu0 0
      %1901 = vmatpush1.bf16.msra.mxu0 0
      %1902 = vmatprep.subr.bf16.mxu0 0
      %1903 = vmatpush1.bf16.msra.mxu0 0
      %1904 = vmatprep.subr.bf16.mxu0 0
      %1905 = vmatpush1.bf16.msra.mxu0 0
      %1906 = vmatprep.subr.bf16.mxu0 0
      %1907 = vmatpush1.bf16.msra.mxu0 0
      %1908 = vmatprep.subr.bf16.mxu0 0
      %1909 = vmatpush1.bf16.msra.mxu0 0
      %1910 = vmatprep.subr.bf16.mxu0 0
      %1911 = vmatpush1.bf16.msra.mxu0 0
      %1912 = vmatprep.subr.bf16.mxu0 0
      %1913 = vmatpush1.bf16.msra.mxu0 0
      %1914 = vmatprep.subr.bf16.mxu0 0
      %1915 = vmatpush1.bf16.msra.mxu0 0
      %1916 = vmatprep.subr.bf16.mxu0 0
      %1917 = vmatpush1.bf16.msra.mxu0 0
      %1918 = vmatprep.subr.bf16.mxu0 0
      %1919 = vmatpush1.bf16.msra.mxu0 0
      %1920 = vmatprep.subr.bf16.mxu0 0
      %1921 = vmatpush1.bf16.msra.mxu0 0
      %1922 = vmatprep.subr.bf16.mxu0 0
      %1923 = vmatpush1.bf16.msra.mxu0 0
      %1924 = vmatprep.subr.bf16.mxu0 0
      %1925 = vmatpush1.bf16.msra.mxu0 0
      %1926 = vmatprep.mubr.bf16.mxu0 0
      %1927 = vmatmul.mubr.bf16.gmra.mrb[0].mxu0 %v1892
      %v1928 = vpop.f32.mrb[0].mxu0
      %v1929 = vadd.f32 %v1866, %v1928
      %v1930 = vpop.f32.mrb[0].mxu0
      %v1931 = vpop.f32.mrb[0].mxu0
      %v1932 = vpop.f32.mrb[0].mxu0
      %1933 = vdwg.mxu0
      %v1934 = vlaneseq
      %v1935 = vshrl.u32 %v1934, 7
      %v1936 = vsub.s32 0, %v1935
      %v1937 = vrot.slane %v1873, %v1936
      %v1938 = vadd.f32 %v1929, %v1937
      %v1939 = vxor.u32 %v1938, 2147483648
      %v1940 = vmul.f32 %v1939, 1.442695
      %v1941 = vpow.pop %v1940
      %v1942 = vadd.f32 %v1941, 1.0
      %v1943 = vrcp.pop %v1942
      %v1944 = vmul.f32 1.0, %v1943
      %v1945 = vtanh.pop %v1938
      %1947 = vrot.lane.b32.xlu0 %v1786, 32
      %v1948 = vpop.permute.xlu0 %1947
      %v1950 = vmul.f32 %v1944, %v1948
      %1952 = vrot.lane.b32.xlu0 %v1945, 64
      %v1953 = vpop.permute.xlu0 %1952
      %v1955 = vmul.f32 %v1944, %v1953
      %1957 = vrot.lane.b32.xlu0 %v1955, 32
      %v1958 = vpop.permute.xlu0 %1957
      %v1960 = vadd.f32 %v1950, %v1958
      %v1961 = vtanh.pop %v1960
      %1963 = vrot.lane.b32.xlu0 %v1961, 64
      %v1964 = vpop.permute.xlu0 %1963
      %v1966 = vmul.f32 %v1944, %v1964
      %1968 = vrot.lane.b32.xlu0 %v1966, 32
      %v1969 = vpop.permute.xlu0 %1968
      %1971 = vst.msk [vmem:[%s11] sm:$0xff] %vm1788, %v1969
      %1973 = vrot.lane.b32.xlu0 %v1960, 96
      %v1974 = vpop.permute.xlu0 %1973
      %1976 = vst.msk [vmem:[%s12] sm:$0xff] %vm1788, %v1974
      %v1977 = vpack.c.bf16 %v1966, %v1966
      %v1978 = vld [vmem:[%s9 + $0x84] sm:$0xf]
      %v1979 = vld [vmem:[%s9 + $0x88] sm:$0xf]
      %v1980 = vld [vmem:[%s9 + $0x8c] sm:$0xf]
      %v1981 = vld [vmem:[%s9 + $0x90] sm:$0xf]
      %1983 = vrot.lane.b32.xlu0 %v1977, 32
      %v1984 = vpop.permute.xlu0 %1983
      %v1989 = vunpack.c.l.b16 %v1978
      %v1990 = vunpack.c.l.b16 %v1979
      %v1991 = vunpack.c.l.b16 %v1980
      %v1992 = vunpack.c.l.b16 %v1981
      %v1993 = vpack.c.b16 %v1990, %v1989
      %v1994 = vpack.c.b16 %v1992, %v1991
      %v1998 = vsel %vm1788, %v1984, 0
      %2000 = vmatprep.subr.bf16.mxu0 0
      %2001 = vmatpush1.bf16.msra.mxu0 %v1993
      %2002 = vmatprep.subr.bf16.mxu0 0
      %2003 = vmatpush1.bf16.msra.mxu0 %v1994
      %2004 = vmatprep.subr.bf16.mxu0 0
      %2005 = vmatpush1.bf16.msra.mxu0 0
      %2006 = vmatprep.subr.bf16.mxu0 0
      %2007 = vmatpush1.bf16.msra.mxu0 0
      %2008 = vmatprep.subr.bf16.mxu0 0
      %2009 = vmatpush1.bf16.msra.mxu0 0
      %2010 = vmatprep.subr.bf16.mxu0 0
      %2011 = vmatpush1.bf16.msra.mxu0 0
      %2012 = vmatprep.subr.bf16.mxu0 0
      %2013 = vmatpush1.bf16.msra.mxu0 0
      %2014 = vmatprep.subr.bf16.mxu0 0
      %2015 = vmatpush1.bf16.msra.mxu0 0
      %2016 = vmatprep.subr.bf16.mxu0 0
      %2017 = vmatpush1.bf16.msra.mxu0 0
      %2018 = vmatprep.subr.bf16.mxu0 0
      %2019 = vmatpush1.bf16.msra.mxu0 0
      %2020 = vmatprep.subr.bf16.mxu0 0
      %2021 = vmatpush1.bf16.msra.mxu0 0
      %2022 = vmatprep.subr.bf16.mxu0 0
      %2023 = vmatpush1.bf16.msra.mxu0 0
      %2024 = vmatprep.subr.bf16.mxu0 0
      %2025 = vmatpush1.bf16.msra.mxu0 0
      %2026 = vmatprep.subr.bf16.mxu0 0
      %2027 = vmatpush1.bf16.msra.mxu0 0
      %2028 = vmatprep.subr.bf16.mxu0 0
      %2029 = vmatpush1.bf16.msra.mxu0 0
      %2030 = vmatprep.subr.bf16.mxu0 0
      %2031 = vmatpush1.bf16.msra.mxu0 0
      %2032 = vmatprep.mubr.bf16.mxu0 0
      %2033 = vmatmul.mubr.bf16.gmra.mrb[0].mxu0 %v1998
      %v2034 = vpop.f32.mrb[0].mxu0
      %v2035 = vadd.f32 %v1869, %v2034
      %v2036 = vpop.f32.mrb[0].mxu0
      %v2037 = vpop.f32.mrb[0].mxu0
      %v2038 = vpop.f32.mrb[0].mxu0
      %2039 = vdwg.mxu0
      %v2040 = vlaneseq
      %v2041 = vshrl.u32 %v2040, 7
      %v2042 = vsub.s32 1, %v2041
      %v2043 = vrot.slane %v1873, %v2042
      %v2044 = vadd.f32 %v2035, %v2043
      %v2045 = vxor.u32 %v2044, 2147483648
      %v2046 = vmul.f32 %v2045, 1.442695
      %v2047 = vpow.pop %v2046
      %v2048 = vadd.f32 %v2047, 1.0
      %v2049 = vrcp.pop %v2048
      %v2050 = vmul.f32 1.0, %v2049
      %v2051 = vtanh.pop %v2044
      %2053 = vrot.lane.b32.xlu0 %v1787, 32
      %v2054 = vpop.permute.xlu0 %2053
      %v2056 = vmul.f32 %v2050, %v2054
      %2058 = vrot.lane.b32.xlu0 %v2051, 64
      %v2059 = vpop.permute.xlu0 %2058
      %v2061 = vmul.f32 %v2050, %v2059
      %2063 = vrot.lane.b32.xlu0 %v2061, 32
      %v2064 = vpop.permute.xlu0 %2063
      %v2066 = vadd.f32 %v2056, %v2064
      %v2067 = vtanh.pop %v2066
      %2069 = vrot.lane.b32.xlu0 %v2067, 64
      %v2070 = vpop.permute.xlu0 %2069
      %v2072 = vmul.f32 %v2050, %v2070
      %2074 = vrot.lane.b32.xlu0 %v2072, 32
      %v2075 = vpop.permute.xlu0 %2074
      %s2077 = scalar_lea.vmem %s11, 8
      %2078 = vst.msk [vmem:[%s2077] sm:$0xff] %vm1788, %v2075
      %2080 = vrot.lane.b32.xlu0 %v2066, 96
      %v2081 = vpop.permute.xlu0 %2080
      %s2083 = scalar_lea.vmem %s12, 8
      %2084 = vst.msk [vmem:[%s2083] sm:$0xff] %vm1788, %v2081
      %2085 = vst.msk [vmem:[%s454] sm:$0xff] %vm1788, %v2075
      %p2086 = scmp.lt.s32.totalorder %s30, 5
      %s2087 = scalar_select %p2086, %s30, 5
      %s2088 = smul.addr %s2087, 8
      %s2089 = scalar_lea.vmem %s10, %s2088
      // Predicated region
      $region65: #{rnng_cell_forward.1} parent=55 // pred_check
        %p2090 = pneg %p262
      $region66: #{rnng_cell_forward.1} parent=55 // pred_check_branch
        %2092 = sbr.rel (%p2090) target = $region68
      $region67: #{rnng_cell_forward.1} parent=55 // pred_region
        _
      $region68: #{rnng_cell_forward.1} parent=55 // pred_fallthru
        _
      // Predicated region
      $region69: #{rnng_cell_forward.1} parent=55 // pred_check
        %p2093 = pneg %p283
      $region70: #{rnng_cell_forward.1} parent=55 // pred_check_branch
        %2095 = sbr.rel (%p2093) target = $region72
      $region71: #{rnng_cell_forward.1} parent=55 // pred_region
        _
      $region72: #{rnng_cell_forward.1} parent=55 // pred_fallthru
        _
      // Predicated region
      $region73: #{rnng_cell_forward.1} parent=55 // pred_check
        %p2096 = pneg %p304
      $region74: #{rnng_cell_forward.1} parent=55 // pred_check_branch
        %2098 = sbr.rel (%p2096) target = $region76
      $region75: #{rnng_cell_forward.1} parent=55 // pred_region
        _
      $region76: #{rnng_cell_forward.1} parent=55 // pred_fallthru
        _
      // Predicated region
      $region77: #{rnng_cell_forward.1} parent=55 // pred_check
        %p2099 = pneg %p283
      $region78: #{rnng_cell_forward.1} parent=55 // pred_check_branch
        %2101 = sbr.rel (%p2099) target = $region80
      $region79: #{rnng_cell_forward.1} parent=55 // pred_region
        _
      $region80: #{rnng_cell_forward.1} parent=55 // pred_fallthru
        _
      // Predicated region
      $region81: #{rnng_cell_forward.1} parent=55 // pred_check
        %p2102 = pneg %p304
      $region82: #{rnng_cell_forward.1} parent=55 // pred_check_branch
        %2104 = sbr.rel (%p2102) target = $region84
      $region83: #{rnng_cell_forward.1} parent=55 // pred_region
        _
      $region84: #{rnng_cell_forward.1} parent=55 // pred_fallthru
        _
    $region56: #{rnng_cell_forward.1} parent=5 // pred_fallthru
      _
    %p2105 = scmp.le.s32.totalorder 2, %s25
    // Predicated region
    $region85: #{rnng_cell_forward.1} parent=5 // pred_check
      %p2106 = pneg %p2105
    $region86: #{rnng_cell_forward.1} parent=5 // pred_check_branch
      %2108 = sbr.rel (%p2106) target = $region88
    $region87: #{rnng_cell_forward.1} parent=5 // pred_region
      %s2109 = ssub.s32 %s25, 2
      // Predicated region
      $region89: #{rnng_cell_forward.1} parent=87 // pred_check
        %p2110 = pneg %p268
      $region90: #{rnng_cell_forward.1} parent=87 // pred_check_branch
        %2112 = sbr.rel (%p2110) target = $region92
      $region91: #{rnng_cell_forward.1} parent=87 // pred_region
        %p2113 = scmp.lt.s32.totalorder %s31, 5
        %s2114 = scalar_select %p2113, %s31, 5
        %s2115 = smul.addr %s2114, 8
        %s2116 = scalar_lea.vmem %s10, %s2115
      $region92: #{rnng_cell_forward.1} parent=87 // pred_fallthru
        _
    $region88: #{rnng_cell_forward.1} parent=5 // pred_fallthru
      _
  $region6: #{rnng_cell_forward.1} parent=0 // loop_footer
    %s29 = sadd.s32 1, %s25
  $region7: #{rnng_cell_forward.1} parent=0 // loop_footer_branch
    %24 = sbr.rel target = $region3
  $region8: #{rnng_cell_forward.1} parent=0 // loop_exit
    _

</llo_original>
